<compile_context>
chip_gen: v5e
topology: v5e:2x2
jax: 0.10.0
libtpu: 0.0.40
codegen_flags: <defaults>
</compile_context>

<pallas_src>
import math

import jax
import jax.numpy as jnp
from jax.experimental import pallas as pl
from jax.experimental.pallas import tpu as pltpu


def _erf_approx(x):
    """erf via Abramowitz & Stegun 7.1.26 (max abs error ~1.5e-7, f32-safe)."""
    a1, a2, a3, a4, a5 = (0.254829592, -0.284496736, 1.421413741,
                          -1.453152027, 1.061405429)
    p = 0.3275911
    sgn = jnp.where(x >= 0.0, 1.0, -1.0)
    ax = jnp.abs(x)
    t = 1.0 / (1.0 + p * ax)
    poly = ((((a5 * t + a4) * t + a3) * t + a2) * t + a1) * t
    return sgn * (1.0 - poly * jnp.exp(-ax * ax))


def _linear_gelu_kernel(x_ref, w_ref, b_ref, o_ref, acc_ref):
    k = pl.program_id(2)

    @pl.when(k == 0)
    def _init():
        acc_ref[...] = jnp.zeros_like(acc_ref)

    acc_ref[...] += jnp.dot(
        x_ref[...], w_ref[...],
        preferred_element_type=jnp.float32,
        precision=jax.lax.Precision.HIGHEST,
    )

    @pl.when(k == pl.num_programs(2) - 1)
    def _finalize():
        z = acc_ref[...] + b_ref[...].astype(jnp.float32)       # (tm,tn)+(1,tn)
        # Exact GELU: 0.5 * z * (1 + erf(z / sqrt(2)))  (matches torch default)
        g = 0.5 * z * (1.0 + _erf_approx(z * 0.7071067811865476))
        o_ref[...] = g.astype(o_ref.dtype)


def _fit_tile(dim, cap, align):
    """Largest tile <= cap that divides dim and is a multiple of `align`,
    falling back to the full dim (always legal for BlockSpec)."""
    if dim <= cap:
        return dim
    t = (cap // align) * align
    while t >= align:
        if dim % t == 0:
            return t
        t -= align
    return dim


def linear_gelu(x, weight, bias, *, tm=256, tn=256, tk=512):
    """y = gelu(x @ weight.T + bias).  x: (..., K), weight: (N, K), bias: (N,)."""
    lead = x.shape[:-1]
    K = x.shape[-1]
    N, K_w = weight.shape
    assert K == K_w and bias.shape == (N,)

    x2d = x.reshape(-1, K)
    M = x2d.shape[0]

    w_t = weight.T                # (K, N): N on the lane axis for the MXU
    b2d = bias.reshape(1, N)

    # ---- tile selection (lane-dense, sublane-aligned) ----------------------
    tn = _fit_tile(N, tn, 128)
    tk = _fit_tile(K, tk, 128)
    tm_eff = tm if M >= tm else ((M + 7) // 8) * 8   # rows: sublane multiple
    m_pad = pl.cdiv(M, tm_eff) * tm_eff
    if m_pad != M:                                   # pad rows instead of a
        x2d = jnp.pad(x2d, ((0, m_pad - M), (0, 0)))  # whole-array fallback tile

    grid = (m_pad // tm_eff, N // tn, K // tk)

    out = pl.pallas_call(
        _linear_gelu_kernel,
        out_shape=jax.ShapeDtypeStruct((m_pad, N), x.dtype),
        grid_spec=pltpu.PrefetchScalarGridSpec(
            num_scalar_prefetch=0,
            grid=grid,
            in_specs=[
                pl.BlockSpec((tm_eff, tk), lambda i, j, k: (i, k)),
                pl.BlockSpec((tk, tn), lambda i, j, k: (k, j)),
                pl.BlockSpec((1, tn), lambda i, j, k: (0, j)),
            ],
            out_specs=pl.BlockSpec((tm_eff, tn), lambda i, j, k: (i, j)),
            scratch_shapes=[pltpu.VMEM((tm_eff, tn), jnp.float32)],
        ),
        compiler_params=pltpu.CompilerParams(
            dimension_semantics=("parallel", "parallel", "arbitrary"),
        ),
    )(x2d, w_t, b2d)

    if m_pad != M:
        out = out[:M]
    return out.reshape(lead + (N,))


def linear_gelu_reference(x, weight, bias):
    z = jnp.einsum("...k,nk->...n", x, weight,
                   precision=jax.lax.Precision.HIGHEST) + bias
    return jax.nn.gelu(z, approximate=False)


if __name__ == "__main__":
    key = jax.random.PRNGKey(0)
    k_x, k_w, k_b = jax.random.split(key, 3)

    # Small stand-in shapes for Linear(4096, 4096): same structure, K = N.
    batch, seq, hidden = 2, 8, 512
    x = jax.random.normal(k_x, (batch, seq, hidden), dtype=jnp.float32)
    # torch.nn.Linear default init: U(-1/sqrt(K), 1/sqrt(K)) for weight & bias.
    bound = 1.0 / math.sqrt(hidden)
    weight = jax.random.uniform(k_w, (hidden, hidden), jnp.float32, -bound, bound)
    bias = jax.random.uniform(k_b, (hidden,), jnp.float32, -bound, bound)

    out = linear_gelu(x, weight, bias)
    out = jax.block_until_ready(out)

    ref = linear_gelu_reference(x, weight, bias)
    assert out.shape == (batch, seq, hidden) and out.dtype == x.dtype
    assert jnp.allclose(out, ref, atol=1e-4, rtol=1e-4), "mismatch vs reference"
    print("KERNEL_OK")
</pallas_src>

<mosaic_0001>
module attributes {stable_mosaic.version = 11 : i64} {
  func.func @_linear_gelu_kernel(%arg0: i32, %arg1: i32, %arg2: i32, %arg3: memref<16x512xf32, #tpu.memory_space<vmem>>, %arg4: memref<512x256xf32, #tpu.memory_space<vmem>>, %arg5: memref<1x256xf32, #tpu.memory_space<vmem>>, %arg6: memref<16x256xf32, #tpu.memory_space<vmem>>, %arg7: memref<16x256xf32, #tpu.memory_space<vmem>>) attributes {dimension_semantics = [#tpu.dimension_semantics<parallel>, #tpu.dimension_semantics<parallel>, #tpu.dimension_semantics<arbitrary>], iteration_bounds = array<i64: 1, 2, 1>, scalar_prefetch = 0 : i64, scratch_operands = 1 : i64, tpu.core_type = #tpu.core_type<tc>, window_params = [{transform_indices = @transform_0, window_bounds = array<i64: 16, 512>}, {transform_indices = @transform_1, window_bounds = array<i64: 512, 256>}, {transform_indices = @transform_2, window_bounds = array<i64: 1, 256>}, {transform_indices = @transform_3, window_bounds = array<i64: 16, 256>}]} {
    %c0_i32 = arith.constant 0 : i32
    %0 = arith.cmpi eq, %arg2, %c0_i32 : i32
    %1 = arith.extui %0 : i1 to i32
    %c0_i32_0 = arith.constant 0 : i32
    %2 = arith.cmpi ne, %1, %c0_i32_0 : i32
    scf.if %2 {
      %cst_10 = arith.constant 0.000000e+00 : f32
      %12 = vector.broadcast %cst_10 : f32 to vector<16x256xf32>
      %c0_11 = arith.constant 0 : index
      %c0_12 = arith.constant 0 : index
      %13 = vector.load %arg7[%c0_11, %c0_12] : memref<16x256xf32, #tpu.memory_space<vmem>>, vector<16x256xf32>
      tpu.vector_store %arg7[%c0_11, %c0_12], %12 {strides = array<i32>} : memref<16x256xf32, #tpu.memory_space<vmem>>, vector<16x256xf32>,
    } else {
    }
    %c0 = arith.constant 0 : index
    %c0_1 = arith.constant 0 : index
    %3 = vector.load %arg7[%c0, %c0_1] : memref<16x256xf32, #tpu.memory_space<vmem>>, vector<16x256xf32>
    %c0_2 = arith.constant 0 : index
    %c0_3 = arith.constant 0 : index
    %4 = vector.load %arg3[%c0_2, %c0_3] : memref<16x512xf32, #tpu.memory_space<vmem>>, vector<16x512xf32>
    %c0_4 = arith.constant 0 : index
    %c0_5 = arith.constant 0 : index
    %5 = vector.load %arg4[%c0_4, %c0_5] : memref<512x256xf32, #tpu.memory_space<vmem>>, vector<512x256xf32>
    %cst = arith.constant dense<0.000000e+00> : vector<16x256xf32>
    %6 = tpu.matmul %4, %5, %cst {dimension_numbers = #tpu.dot_dimension_numbers<[1], [0], [0], [1], [0, 0, 1, 1], [], []>, precision = #tpu.contract_precision<fp32>} : vector<16x512xf32>, vector<512x256xf32>, vector<16x256xf32> -> vector<16x256xf32>
    %7 = arith.addf %3, %6 : vector<16x256xf32>
    %c0_6 = arith.constant 0 : index
    %c0_7 = arith.constant 0 : index
    %8 = vector.load %arg7[%c0_6, %c0_7] : memref<16x256xf32, #tpu.memory_space<vmem>>, vector<16x256xf32>
    tpu.vector_store %arg7[%c0_6, %c0_7], %7 {strides = array<i32>} : memref<16x256xf32, #tpu.memory_space<vmem>>, vector<16x256xf32>,
    %c0_i32_8 = arith.constant 0 : i32
    %9 = arith.cmpi eq, %arg2, %c0_i32_8 : i32
    %10 = arith.extui %9 : i1 to i32
    %c0_i32_9 = arith.constant 0 : i32
    %11 = arith.cmpi ne, %10, %c0_i32_9 : i32
    scf.if %11 {
      %c0_10 = arith.constant 0 : index
      %c0_11 = arith.constant 0 : index
      %12 = vector.load %arg7[%c0_10, %c0_11] : memref<16x256xf32, #tpu.memory_space<vmem>>, vector<16x256xf32>
      %c0_12 = arith.constant 0 : index
      %c0_13 = arith.constant 0 : index
      %13 = vector.load %arg5[%c0_12, %c0_13] : memref<1x256xf32, #tpu.memory_space<vmem>>, vector<1x256xf32>
      %14 = vector.broadcast %13 : vector<1x256xf32> to vector<16x256xf32>
      %15 = arith.addf %12, %14 : vector<16x256xf32>
      %cst_14 = arith.constant 5.000000e-01 : f32
      %16 = vector.broadcast %cst_14 : f32 to vector<16x256xf32>
      %17 = arith.mulf %16, %15 : vector<16x256xf32>
      %cst_15 = arith.constant 0.707106769 : f32
      %18 = vector.broadcast %cst_15 : f32 to vector<16x256xf32>
      %19 = arith.mulf %15, %18 : vector<16x256xf32>
      %cst_16 = arith.constant 0.000000e+00 : f32
      %20 = vector.broadcast %cst_16 : f32 to vector<16x256xf32>
      %21 = arith.cmpf oge, %19, %20 : vector<16x256xf32>
      %cst_17 = arith.constant 1.000000e+00 : f32
      %cst_18 = arith.constant -1.000000e+00 : f32
      %22 = vector.broadcast %cst_17 : f32 to vector<16x256xf32>
      %23 = vector.broadcast %cst_18 : f32 to vector<16x256xf32>
      %24 = arith.select %21, %22, %23 : vector<16x256xi1>, vector<16x256xf32>
      %25 = math.absf %19 : vector<16x256xf32>
      %cst_19 = arith.constant 0.327591091 : f32
      %26 = vector.broadcast %cst_19 : f32 to vector<16x256xf32>
      %27 = arith.mulf %26, %25 : vector<16x256xf32>
      %cst_20 = arith.constant 1.000000e+00 : f32
      %28 = vector.broadcast %cst_20 : f32 to vector<16x256xf32>
      %29 = arith.addf %28, %27 : vector<16x256xf32>
      %cst_21 = arith.constant 1.000000e+00 : f32
      %30 = vector.broadcast %cst_21 : f32 to vector<16x256xf32>
      %31 = arith.divf %30, %29 : vector<16x256xf32>
      %cst_22 = arith.constant 1.06140542 : f32
      %32 = vector.broadcast %cst_22 : f32 to vector<16x256xf32>
      %33 = arith.mulf %32, %31 : vector<16x256xf32>
      %cst_23 = arith.constant -1.45315206 : f32
      %34 = vector.broadcast %cst_23 : f32 to vector<16x256xf32>
      %35 = arith.addf %33, %34 : vector<16x256xf32>
      %36 = arith.mulf %35, %31 : vector<16x256xf32>
      %cst_24 = arith.constant 1.42141378 : f32
      %37 = vector.broadcast %cst_24 : f32 to vector<16x256xf32>
      %38 = arith.addf %36, %37 : vector<16x256xf32>
      %39 = arith.mulf %38, %31 : vector<16x256xf32>
      %cst_25 = arith.constant -0.284496725 : f32
      %40 = vector.broadcast %cst_25 : f32 to vector<16x256xf32>
      %41 = arith.addf %39, %40 : vector<16x256xf32>
      %42 = arith.mulf %41, %31 : vector<16x256xf32>
      %cst_26 = arith.constant 0.254829586 : f32
      %43 = vector.broadcast %cst_26 : f32 to vector<16x256xf32>
      %44 = arith.addf %42, %43 : vector<16x256xf32>
      %45 = arith.mulf %44, %31 : vector<16x256xf32>
      %cst_27 = arith.constant 0.000000e+00 : f32
      %46 = vector.broadcast %cst_27 : f32 to vector<16x256xf32>
      %47 = arith.subf %46, %25 : vector<16x256xf32>
      %48 = arith.mulf %47, %25 : vector<16x256xf32>
      %49 = math.exp %48 : vector<16x256xf32>
      %50 = arith.mulf %45, %49 : vector<16x256xf32>
      %cst_28 = arith.constant 1.000000e+00 : f32
      %51 = vector.broadcast %cst_28 : f32 to vector<16x256xf32>
      %52 = arith.subf %51, %50 : vector<16x256xf32>
      %53 = arith.mulf %24, %52 : vector<16x256xf32>
      %cst_29 = arith.constant 1.000000e+00 : f32
      %54 = vector.broadcast %cst_29 : f32 to vector<16x256xf32>
      %55 = arith.addf %54, %53 : vector<16x256xf32>
      %56 = arith.mulf %17, %55 : vector<16x256xf32>
      %c0_30 = arith.constant 0 : index
      %c0_31 = arith.constant 0 : index
      %57 = vector.load %arg6[%c0_30, %c0_31] : memref<16x256xf32, #tpu.memory_space<vmem>>, vector<16x256xf32>
      tpu.vector_store %arg6[%c0_30, %c0_31], %56 {strides = array<i32>} : memref<16x256xf32, #tpu.memory_space<vmem>>, vector<16x256xf32>,
    } else {
    }
    return
  }
  func.func @transform_0(%arg0: i32, %arg1: i32, %arg2: i32) -> (i32, i32) {
    %c0_i32 = arith.constant 0 : i32
    return %arg0, %arg2 : i32, i32
  }
  func.func @transform_1(%arg0: i32, %arg1: i32, %arg2: i32) -> (i32, i32) {
    %c0_i32 = arith.constant 0 : i32
    return %arg2, %arg1 : i32, i32
  }
  func.func @transform_2(%arg0: i32, %arg1: i32, %arg2: i32) -> (i32, i32) {
    %c0_i32 = arith.constant 0 : i32
    %c0_i32_0 = arith.constant 0 : i32
    return %c0_i32, %arg1 : i32, i32
  }
  func.func @transform_3(%arg0: i32, %arg1: i32, %arg2: i32) -> (i32, i32) {
    %c0_i32 = arith.constant 0 : i32
    return %arg0, %arg1 : i32, i32
  }
}

</mosaic_0001>

<llo_original>
// kernel: tpu_custom_call.1
$region0: #{tpu_custom_call.1}
  #allocation0 [shape = 'u32[]', space=smem, size = 0x4, offset = 0x4, fixed_abs, tag = 'smem constant byte address 0x4 - core index']
  #allocation1 [shape = 'u32[72,128]{1,0:T(1,128)}', space=vmem, size = 0x9000, scoped, tag = 'internal scratch']
  #allocation2 [shape = 'f32[16,256]{1,0:T(8,128)}', space=vmem, size = 0x4000, scoped, tag = 'scratch operand']
  %s0 = inlined_call_operand.hbm [shape: f32[16,512], index: 0, kind: input, shape index: {}]
  %s1 = inlined_call_operand.hbm [shape: f32[512,512], index: 1, kind: input, shape index: {}]
  %s2 = inlined_call_operand.hbm [shape: f32[1,512], index: 2, kind: input, shape index: {}]
  %s3 = inlined_call_operand.hbm [shape: f32[16,512], index: 3, kind: output, shape index: {}]
  %s4 = sld [smem:[#allocation0]]
  $region65: #{tpu_custom_call.1} parent=0
    _
  %s6 = ssub.s32 1, %s4
  %s7 = scalar_select 0, %s6, %s4
  $region1: #{tpu_custom_call.1} parent=0
    #allocation3 [shape = 'u8[32768]{0}', space=vmem, size = 0x8000, scoped, tag = 'input window, operand 0, single buffered']
    #allocation4 [shape = 's32[2]{0}', space=sflag, size = 0x8, scoped, tag = 'scoped memory for tpu_custom_call.1']
    #allocation5 [shape = 's32[2]{0}', space=sflag, size = 0x8, scoped, tag = 'scoped memory for tpu_custom_call.1']
    #allocation6 [shape = 'u8[1048576]{0}', space=vmem, size = 0x100000, scoped, tag = 'input window, operand 1']
    #allocation7 [shape = 's32[2]{0}', space=sflag, size = 0x8, scoped, tag = 'scoped memory for tpu_custom_call.1']
    #allocation8 [shape = 'u8[2048]{0}', space=vmem, size = 0x800, scoped, tag = 'input window, operand 2']
    #allocation9 [shape = 'u8[32768]{0}', space=vmem, size = 0x8000, scoped, tag = 'output window, operand 0']
    %8 = vsyncpa [#allocation4], 0
    %9 = vsyncpa [#allocation7], 0
    %s10 = scalar_lea.sflag [#allocation7], 1
    %11 = vsyncpa %s10, 0
    %12 = vsyncpa [#allocation5], 0
    %s13 = scalar_lea.sflag [#allocation5], 1
    %14 = vsyncpa %s13, 0
    loop: start=0, step=1, limit=4
    $region2: #{tpu_custom_call.1} parent=1 // loop_pre_header
      _
    $region3: #{tpu_custom_call.1} parent=1 // loop_header
      %s16 = sphi 0, %s20
      %p17 = scmp.ge.s32.totalorder %s16, 4
      %s23 = sphi 0, %s42
      %s24 = sphi 0, %s38
      %s25 = sphi 0, %s34
      %s26 = sphi 0, %s23
      %s27 = sphi 0, %s24
      %s28 = sphi 0, %s25
      %s29 = sphi 0, %s26
      %s30 = sphi 0, %s27
      %s31 = sphi 0, %s28
      %s47 = sphi 0, %s49
      %s50 = sphi 0, %s47
      %s51 = sphi 0, %s50
      %s67 = sphi 0, %s51
      %s75 = sphi 0, %s77
      %s78 = sphi 0, %s75
      %s79 = sphi 0, %s78
      %s95 = sphi 0, %s79
      %s101 = sphi 0, %s103
      %s104 = sphi 0, %s101
      %s105 = sphi 0, %s104
      %s121 = sphi 0, %s105
      %s129 = sphi 0, %s131
      %s132 = sphi 0, %s129
      %s133 = sphi 0, %s132
      %s149 = sphi 0, %s133
    $region4: #{tpu_custom_call.1} parent=1 // loop_header_branch
      %19 = sbr.rel (%p17) target = $region8
    $region5: #{tpu_custom_call.1} parent=1 // loop_body
      %s21 = ssub.s32 %s16, 1
      %s22 = ssub.s32 %s16, 2
      %s32 = sadd.s32 1, %s25
      %p33 = scmp.ge.s32.totalorder %s32, 1
      %s34 = scalar_select %p33, 0, %s32
      %s35 = sadd.s32 1, %s24
      %s36 = scalar_select %p33, %s35, %s24
      %p37 = scmp.ge.s32.totalorder %s36, 2
      %s38 = scalar_select %p37, 0, %s36
      %s39 = sadd.s32 1, %s23
      %s40 = scalar_select %p37, %s39, %s23
      %p41 = scmp.ge.s32.totalorder %s40, 1
      %s42 = scalar_select %p41, 0, %s40
      %s43 = ssub.s32 %s23, %s42
      %s44 = ssub.s32 %s25, %s34
      %s45 = sor.u32 %s43, %s44
      %p46 = scmp.eq.s32.totalorder %s45, 0
      %s48 = sadd.s32 %s47, 1
      %s49 = scalar_select %p46, %s47, %s48
      %p52 = pneg %p46
      %p53 = scmp.eq.s32.totalorder %s16, 1
      %p54 = por %p52, %p53
      %p55 = scmp.ne.s32.totalorder %s47, %s50
      %p56 = scmp.eq.s32.totalorder %s16, 0
      %p57 = por %p55, %p56
      %p58 = scmp.ne.s32.totalorder %s47, %s50
      %p59 = scmp.eq.s32.totalorder %s21, 1
      %p60 = por %p58, %p59
      %p61 = scmp.ne.s32.totalorder %s50, %s51
      %p62 = scmp.eq.s32.totalorder %s21, 0
      %p63 = por %p61, %p62
      %p64 = scmp.ne.s32.totalorder %s50, %s51
      %p65 = scmp.eq.s32.totalorder %s22, 1
      %p66 = por %p64, %p65
      %p68 = scmp.ne.s32.totalorder %s51, %s67
      %p69 = scmp.eq.s32.totalorder %s22, 0
      %p70 = por %p68, %p69
      %s71 = ssub.s32 %s25, %s34
      %s72 = ssub.s32 %s24, %s38
      %s73 = sor.u32 %s71, %s72
      %p74 = scmp.eq.s32.totalorder %s73, 0
      %s76 = sadd.s32 %s75, 1
      %s77 = scalar_select %p74, %s75, %s76
      %p80 = pneg %p74
      %p81 = scmp.eq.s32.totalorder %s16, 1
      %p82 = por %p80, %p81
      %p83 = scmp.ne.s32.totalorder %s75, %s78
      %p84 = scmp.eq.s32.totalorder %s16, 0
      %p85 = por %p83, %p84
      %p86 = scmp.ne.s32.totalorder %s75, %s78
      %p87 = scmp.eq.s32.totalorder %s21, 1
      %p88 = por %p86, %p87
      %p89 = scmp.ne.s32.totalorder %s78, %s79
      %p90 = scmp.eq.s32.totalorder %s21, 0
      %p91 = por %p89, %p90
      %p92 = scmp.ne.s32.totalorder %s78, %s79
      %p93 = scmp.eq.s32.totalorder %s22, 1
      %p94 = por %p92, %p93
      %p96 = scmp.ne.s32.totalorder %s79, %s95
      %p97 = scmp.eq.s32.totalorder %s22, 0
      %p98 = por %p96, %p97
      %s99 = ssub.s32 %s24, %s38
      %p100 = scmp.eq.s32.totalorder %s99, 0
      %s102 = sadd.s32 %s101, 1
      %s103 = scalar_select %p100, %s101, %s102
      %p106 = pneg %p100
      %p107 = scmp.eq.s32.totalorder %s16, 1
      %p108 = por %p106, %p107
      %p109 = scmp.ne.s32.totalorder %s101, %s104
      %p110 = scmp.eq.s32.totalorder %s16, 0
      %p111 = por %p109, %p110
      %p112 = scmp.ne.s32.totalorder %s101, %s104
      %p113 = scmp.eq.s32.totalorder %s21, 1
      %p114 = por %p112, %p113
      %p115 = scmp.ne.s32.totalorder %s104, %s105
      %p116 = scmp.eq.s32.totalorder %s21, 0
      %p117 = por %p115, %p116
      %p118 = scmp.ne.s32.totalorder %s104, %s105
      %p119 = scmp.eq.s32.totalorder %s22, 1
      %p120 = por %p118, %p119
      %p122 = scmp.ne.s32.totalorder %s105, %s121
      %p123 = scmp.eq.s32.totalorder %s22, 0
      %p124 = por %p122, %p123
      %s125 = ssub.s32 %s23, %s42
      %s126 = ssub.s32 %s24, %s38
      %s127 = sor.u32 %s125, %s126
      %p128 = scmp.eq.s32.totalorder %s127, 0
      %s130 = sadd.s32 %s129, 1
      %s131 = scalar_select %p128, %s129, %s130
      %p134 = pneg %p128
      %p135 = scmp.eq.s32.totalorder %s16, 1
      %p136 = por %p134, %p135
      %p137 = scmp.ne.s32.totalorder %s129, %s132
      %p138 = scmp.eq.s32.totalorder %s16, 0
      %p139 = por %p137, %p138
      %p140 = scmp.ne.s32.totalorder %s129, %s132
      %p141 = scmp.eq.s32.totalorder %s21, 1
      %p142 = por %p140, %p141
      %p143 = scmp.ne.s32.totalorder %s132, %s133
      %p144 = scmp.eq.s32.totalorder %s21, 0
      %p145 = por %p143, %p144
      %p146 = scmp.ne.s32.totalorder %s132, %s133
      %p147 = scmp.eq.s32.totalorder %s22, 1
      %p148 = por %p146, %p147
      %p150 = scmp.ne.s32.totalorder %s133, %s149
      %p151 = scmp.eq.s32.totalorder %s22, 0
      %p152 = por %p150, %p151
      %p153 = scmp.le.s32.totalorder 1, %s16
      %p154 = scmp.lt.s32.totalorder %s16, 3
      %p155 = pnand %p153, %p154
      %p156 = pneg %p155
      // Predicated region
      $region9: #{tpu_custom_call.1} parent=5 // pred_check
        _
      $region10: #{tpu_custom_call.1} parent=5 // pred_check_branch
        %158 = sbr.rel (%p155) target = $region12
      $region11: #{tpu_custom_call.1} parent=5 // pred_region
        %s159 = ssub.s32 %s16, 1
        // Predicated region
        $region13: #{tpu_custom_call.1} parent=11 // pred_check
          %p160 = pneg %p63
        $region14: #{tpu_custom_call.1} parent=11 // pred_check_branch
          %162 = sbr.rel (%p160) target = $region16
        $region15: #{tpu_custom_call.1} parent=11 // pred_region
          %s163 = smul.u32 2, %s26
          %s164 = smul.u32 4, %s28
          %166 = vsyncadd [#allocation4], 0
          %s167 = smul.addr %s163, 4
          %s168 = sadd.s32 %s164, %s167
          %s169 = smul.addr %s168, 8
          %s170 = scalar_lea.hbm %s0, %s169
          %s171 = sshll.u32 %s170, 4
          %s172 = int_to_ptr.hbm [resolvable:$true] %s171
          %s173 = sshll.u32 [#allocation3], 4
          %s174 = int_to_ptr.vmem [resolvable:$true] %s173
          %179 = dma.hbm_to_vmem [thread:$0]  %s172, 1024, %s174, [#allocation4], 512, 512, 32
        $region16: #{tpu_custom_call.1} parent=11 // pred_fallthru
          _
      $region12: #{tpu_custom_call.1} parent=5 // pred_fallthru
        _
      %p180 = scmp.lt.s32.totalorder %s16, 2
      // Predicated region
      $region17: #{tpu_custom_call.1} parent=5 // pred_check
        %p181 = pneg %p180
      $region18: #{tpu_custom_call.1} parent=5 // pred_check_branch
        %183 = sbr.rel (%p181) target = $region20
      $region19: #{tpu_custom_call.1} parent=5 // pred_region
        // Predicated region
        $region21: #{tpu_custom_call.1} parent=19 // pred_check
          %p184 = pneg %p85
        $region22: #{tpu_custom_call.1} parent=19 // pred_check_branch
          %186 = sbr.rel (%p184) target = $region24
        $region23: #{tpu_custom_call.1} parent=19 // pred_region
          %s187 = sand.u32 %s16, 1
          %s188 = scalar_lea.sflag [#allocation7], %s187
          %s189 = sand.u32 %s75, 1
          %s190 = smul.addr %s189, 1024
          %s191 = scalar_lea.vmem [#allocation6], %s190
          %s192 = smul.u32 64, %s25
          %s193 = smul.u32 2, %s24
          %195 = vsyncadd %s188, 0
          %s196 = smul.addr %s192, 4
          %s197 = sadd.s32 %s193, %s196
          %s198 = smul.addr %s197, 8
          %s199 = scalar_lea.hbm %s1, %s198
          %s200 = sshll.u32 %s199, 4
          %s201 = int_to_ptr.hbm [resolvable:$true] %s200
          %s202 = sshll.u32 %s191, 4
          %s203 = int_to_ptr.vmem [resolvable:$true] %s202
          %208 = dma.hbm_to_vmem [thread:$0]  %s201, 16384, %s203, %s188, 512, 256, 16
        $region24: #{tpu_custom_call.1} parent=19 // pred_fallthru
          _
        // Predicated region
        $region25: #{tpu_custom_call.1} parent=19 // pred_check
          %p209 = pneg %p111
        $region26: #{tpu_custom_call.1} parent=19 // pred_check_branch
          %211 = sbr.rel (%p209) target = $region28
        $region27: #{tpu_custom_call.1} parent=19 // pred_region
          %s212 = sand.u32 %s16, 1
          %s213 = scalar_lea.sflag [#allocation7], %s212
          %s214 = sand.u32 %s101, 1
          %s215 = smul.addr %s214, 2
          %s216 = scalar_lea.vmem [#allocation8], %s215
          %s217 = smul.u32 2, %s24
          %219 = vsyncadd %s213, 0
          %s220 = scalar_lea.hbm %s2, %s217
          %s222 = sshll.u32 %s220, 4
          %s223 = int_to_ptr.hbm [resolvable:$true] %s222
          %s224 = sshll.u32 %s216, 4
          %s225 = int_to_ptr.vmem [resolvable:$true] %s224
          %227 = dma.hbm_to_vmem [thread:$0]  %s223, 32, %s225, %s213
        $region28: #{tpu_custom_call.1} parent=19 // pred_fallthru
          _
      $region20: #{tpu_custom_call.1} parent=5 // pred_fallthru
        _
      %p228 = scmp.le.s32.totalorder 1, %s16
      %p229 = scmp.lt.s32.totalorder %s16, 3
      %p230 = pnand %p228, %p229
      %p231 = pneg %p230
      // Predicated region
      $region29: #{tpu_custom_call.1} parent=5 // pred_check
        _
      $region30: #{tpu_custom_call.1} parent=5 // pred_check_branch
        %233 = sbr.rel (%p230) target = $region32
      $region31: #{tpu_custom_call.1} parent=5 // pred_region
        %s234 = ssub.s32 %s16, 1
        // Predicated region
        $region33: #{tpu_custom_call.1} parent=31 // pred_check
          %p235 = pneg %p63
        $region34: #{tpu_custom_call.1} parent=31 // pred_check_branch
          %237 = sbr.rel (%p235) target = $region36
        $region35: #{tpu_custom_call.1} parent=31 // pred_region
          %239 = dma.done [#allocation4], 1024
        $region36: #{tpu_custom_call.1} parent=31 // pred_fallthru
          _
        %s240 = sand.u32 %s21, 1
        %s241 = scalar_lea.sflag [#allocation7], %s240
        %s242 = sand.u32 %s78, 1
        %s243 = smul.addr %s242, 1024
        %s244 = scalar_lea.vmem [#allocation6], %s243
        // Predicated region
        $region37: #{tpu_custom_call.1} parent=31 // pred_check
          %p245 = pneg %p91
        $region38: #{tpu_custom_call.1} parent=31 // pred_check_branch
          %247 = sbr.rel (%p245) target = $region40
        $region39: #{tpu_custom_call.1} parent=31 // pred_region
          %249 = dma.done %s241, 16384
        $region40: #{tpu_custom_call.1} parent=31 // pred_fallthru
          _
        %s250 = sand.u32 %s21, 1
        %s251 = scalar_lea.sflag [#allocation7], %s250
        %s252 = sand.u32 %s104, 1
        %s253 = smul.addr %s252, 2
        %s254 = scalar_lea.vmem [#allocation8], %s253
        // Predicated region
        $region41: #{tpu_custom_call.1} parent=31 // pred_check
          %p255 = pneg %p117
        $region42: #{tpu_custom_call.1} parent=31 // pred_check_branch
          %257 = sbr.rel (%p255) target = $region44
        $region43: #{tpu_custom_call.1} parent=31 // pred_region
          %259 = dma.done %s251, 32
        $region44: #{tpu_custom_call.1} parent=31 // pred_fallthru
          _
        %p260 = pneg %p63
        %p261 = pneg %p60
        %s262 = sand.u32 %s21, 1
        %s263 = scalar_lea.sflag [#allocation7], %s262
        %s264 = sand.u32 %s78, 1
        %s265 = smul.addr %s264, 1024
        %s266 = scalar_lea.vmem [#allocation6], %s265
        %p267 = pneg %p91
        %p268 = pneg %p88
        %s269 = sand.u32 %s21, 1
        %s270 = scalar_lea.sflag [#allocation7], %s269
        %s271 = sand.u32 %s104, 1
        %s272 = smul.addr %s271, 2
        %s273 = scalar_lea.vmem [#allocation8], %s272
        %p274 = pneg %p117
        %p275 = pneg %p114
        %p276 = pneg %p145
        %p277 = pneg %p142
        %s278 = sand.u32 %s132, 1
        %s279 = scalar_lea.sflag [#allocation5], %s278
        %s280 = sand.u32 %s132, 1
        %s281 = smul.addr %s280, 32
        %s282 = scalar_lea.vmem [#allocation9], %s281
        %s283 = smul.u32 2, %s26
        %s284 = smul.u32 4, %s28
        %s285 = smul.u32 64, %s28
        %s286 = smul.u32 2, %s27
        %s287 = smul.u32 2, %s27
        %s288 = smul.u32 2, %s26
        %s289 = smul.u32 2, %s27
        %p290 = scmp.eq.s32.totalorder %s28, 0
        // Predicated region
        $region45: #{tpu_custom_call.1} parent=31 // pred_check
          %p291 = pneg %p290
        $region46: #{tpu_custom_call.1} parent=31 // pred_check_branch
          %293 = sbr.rel (%p291) target = $region48
        $region47: #{tpu_custom_call.1} parent=31 // pred_region
          %294 = vst [vmem:[#allocation2] sm:$0xff] 0.0
          %295 = vst [vmem:[#allocation2 + $0x8] sm:$0xff] 0.0
          %296 = vst [vmem:[#allocation2 + $0x10] sm:$0xff] 0.0
          %297 = vst [vmem:[#allocation2 + $0x18] sm:$0xff] 0.0
        $region48: #{tpu_custom_call.1} parent=31 // pred_fallthru
          _
        %v298 = vld [vmem:[#allocation2] sm:$0xff]
        %v299 = vld [vmem:[#allocation2 + $0x8] sm:$0xff]
        %v300 = vld [vmem:[#allocation2 + $0x10] sm:$0xff]
        %v301 = vld [vmem:[#allocation2 + $0x18] sm:$0xff]
        %v302 = vld [vmem:[#allocation3] sm:$0xff]
        %v303 = vld [vmem:[#allocation3 + $0x8] sm:$0xff]
        %v304 = vld [vmem:[#allocation3 + $0x10] sm:$0xff]
        %v305 = vld [vmem:[#allocation3 + $0x18] sm:$0xff]
        %v306 = vld [vmem:[#allocation3 + $0x20] sm:$0xff]
        %v307 = vld [vmem:[#allocation3 + $0x28] sm:$0xff]
        %v308 = vld [vmem:[#allocation3 + $0x30] sm:$0xff]
        %v309 = vld [vmem:[#allocation3 + $0x38] sm:$0xff]
        %v310 = vld [vmem:[%s244] sm:$0xff]
        %v311 = vld [vmem:[%s244 + $0x8] sm:$0xff]
        %v312 = vld [vmem:[%s244 + $0x10] sm:$0xff]
        %v313 = vld [vmem:[%s244 + $0x18] sm:$0xff]
        %v314 = vld [vmem:[%s244 + $0x20] sm:$0xff]
        %v315 = vld [vmem:[%s244 + $0x28] sm:$0xff]
        %v316 = vld [vmem:[%s244 + $0x30] sm:$0xff]
        %v317 = vld [vmem:[%s244 + $0x38] sm:$0xff]
        %v318 = vld [vmem:[%s244 + $0x40] sm:$0xff]
        %v319 = vld [vmem:[%s244 + $0x48] sm:$0xff]
        %v320 = vld [vmem:[%s244 + $0x50] sm:$0xff]
        %v321 = vld [vmem:[%s244 + $0x58] sm:$0xff]
        %v322 = vld [vmem:[%s244 + $0x60] sm:$0xff]
        %v323 = vld [vmem:[%s244 + $0x68] sm:$0xff]
        %v324 = vld [vmem:[%s244 + $0x70] sm:$0xff]
        %v325 = vld [vmem:[%s244 + $0x78] sm:$0xff]
        %v326 = vld [vmem:[%s244 + $0x80] sm:$0xff]
        %v327 = vld [vmem:[%s244 + $0x88] sm:$0xff]
        %v328 = vld [vmem:[%s244 + $0x90] sm:$0xff]
        %v329 = vld [vmem:[%s244 + $0x98] sm:$0xff]
        %v330 = vld [vmem:[%s244 + $0xa0] sm:$0xff]
        %v331 = vld [vmem:[%s244 + $0xa8] sm:$0xff]
        %v332 = vld [vmem:[%s244 + $0xb0] sm:$0xff]
        %v333 = vld [vmem:[%s244 + $0xb8] sm:$0xff]
        %v334 = vld [vmem:[%s244 + $0xc0] sm:$0xff]
        %v335 = vld [vmem:[%s244 + $0xc8] sm:$0xff]
        %v336 = vld [vmem:[%s244 + $0xd0] sm:$0xff]
        %v337 = vld [vmem:[%s244 + $0xd8] sm:$0xff]
        %v338 = vld [vmem:[%s244 + $0xe0] sm:$0xff]
        %v339 = vld [vmem:[%s244 + $0xe8] sm:$0xff]
        %v340 = vld [vmem:[%s244 + $0xf0] sm:$0xff]
        %v341 = vld [vmem:[%s244 + $0xf8] sm:$0xff]
        %v342 = vld [vmem:[%s244 + $0x100] sm:$0xff]
        %v343 = vld [vmem:[%s244 + $0x108] sm:$0xff]
        %v344 = vld [vmem:[%s244 + $0x110] sm:$0xff]
        %v345 = vld [vmem:[%s244 + $0x118] sm:$0xff]
        %v346 = vld [vmem:[%s244 + $0x120] sm:$0xff]
        %v347 = vld [vmem:[%s244 + $0x128] sm:$0xff]
        %v348 = vld [vmem:[%s244 + $0x130] sm:$0xff]
        %v349 = vld [vmem:[%s244 + $0x138] sm:$0xff]
        %v350 = vld [vmem:[%s244 + $0x140] sm:$0xff]
        %v351 = vld [vmem:[%s244 + $0x148] sm:$0xff]
        %v352 = vld [vmem:[%s244 + $0x150] sm:$0xff]
        %v353 = vld [vmem:[%s244 + $0x158] sm:$0xff]
        %v354 = vld [vmem:[%s244 + $0x160] sm:$0xff]
        %v355 = vld [vmem:[%s244 + $0x168] sm:$0xff]
        %v356 = vld [vmem:[%s244 + $0x170] sm:$0xff]
        %v357 = vld [vmem:[%s244 + $0x178] sm:$0xff]
        %v358 = vld [vmem:[%s244 + $0x180] sm:$0xff]
        %v359 = vld [vmem:[%s244 + $0x188] sm:$0xff]
        %v360 = vld [vmem:[%s244 + $0x190] sm:$0xff]
        %v361 = vld [vmem:[%s244 + $0x198] sm:$0xff]
        %v362 = vld [vmem:[%s244 + $0x1a0] sm:$0xff]
        %v363 = vld [vmem:[%s244 + $0x1a8] sm:$0xff]
        %v364 = vld [vmem:[%s244 + $0x1b0] sm:$0xff]
        %v365 = vld [vmem:[%s244 + $0x1b8] sm:$0xff]
        %v366 = vld [vmem:[%s244 + $0x1c0] sm:$0xff]
        %v367 = vld [vmem:[%s244 + $0x1c8] sm:$0xff]
        %v368 = vld [vmem:[%s244 + $0x1d0] sm:$0xff]
        %v369 = vld [vmem:[%s244 + $0x1d8] sm:$0xff]
        %v370 = vld [vmem:[%s244 + $0x1e0] sm:$0xff]
        %v371 = vld [vmem:[%s244 + $0x1e8] sm:$0xff]
        %v372 = vld [vmem:[%s244 + $0x1f0] sm:$0xff]
        %v373 = vld [vmem:[%s244 + $0x1f8] sm:$0xff]
        %v374 = vld [vmem:[%s244 + $0x200] sm:$0xff]
        %v375 = vld [vmem:[%s244 + $0x208] sm:$0xff]
        %v376 = vld [vmem:[%s244 + $0x210] sm:$0xff]
        %v377 = vld [vmem:[%s244 + $0x218] sm:$0xff]
        %v378 = vld [vmem:[%s244 + $0x220] sm:$0xff]
        %v379 = vld [vmem:[%s244 + $0x228] sm:$0xff]
        %v380 = vld [vmem:[%s244 + $0x230] sm:$0xff]
        %v381 = vld [vmem:[%s244 + $0x238] sm:$0xff]
        %v382 = vld [vmem:[%s244 + $0x240] sm:$0xff]
        %v383 = vld [vmem:[%s244 + $0x248] sm:$0xff]
        %v384 = vld [vmem:[%s244 + $0x250] sm:$0xff]
        %v385 = vld [vmem:[%s244 + $0x258] sm:$0xff]
        %v386 = vld [vmem:[%s244 + $0x260] sm:$0xff]
        %v387 = vld [vmem:[%s244 + $0x268] sm:$0xff]
        %v388 = vld [vmem:[%s244 + $0x270] sm:$0xff]
        %v389 = vld [vmem:[%s244 + $0x278] sm:$0xff]
        %v390 = vld [vmem:[%s244 + $0x280] sm:$0xff]
        %v391 = vld [vmem:[%s244 + $0x288] sm:$0xff]
        %v392 = vld [vmem:[%s244 + $0x290] sm:$0xff]
        %v393 = vld [vmem:[%s244 + $0x298] sm:$0xff]
        %v394 = vld [vmem:[%s244 + $0x2a0] sm:$0xff]
        %v395 = vld [vmem:[%s244 + $0x2a8] sm:$0xff]
        %v396 = vld [vmem:[%s244 + $0x2b0] sm:$0xff]
        %v397 = vld [vmem:[%s244 + $0x2b8] sm:$0xff]
        %v398 = vld [vmem:[%s244 + $0x2c0] sm:$0xff]
        %v399 = vld [vmem:[%s244 + $0x2c8] sm:$0xff]
        %v400 = vld [vmem:[%s244 + $0x2d0] sm:$0xff]
        %v401 = vld [vmem:[%s244 + $0x2d8] sm:$0xff]
        %v402 = vld [vmem:[%s244 + $0x2e0] sm:$0xff]
        %v403 = vld [vmem:[%s244 + $0x2e8] sm:$0xff]
        %v404 = vld [vmem:[%s244 + $0x2f0] sm:$0xff]
        %v405 = vld [vmem:[%s244 + $0x2f8] sm:$0xff]
        %v406 = vld [vmem:[%s244 + $0x300] sm:$0xff]
        %v407 = vld [vmem:[%s244 + $0x308] sm:$0xff]
        %v408 = vld [vmem:[%s244 + $0x310] sm:$0xff]
        %v409 = vld [vmem:[%s244 + $0x318] sm:$0xff]
        %v410 = vld [vmem:[%s244 + $0x320] sm:$0xff]
        %v411 = vld [vmem:[%s244 + $0x328] sm:$0xff]
        %v412 = vld [vmem:[%s244 + $0x330] sm:$0xff]
        %v413 = vld [vmem:[%s244 + $0x338] sm:$0xff]
        %v414 = vld [vmem:[%s244 + $0x340] sm:$0xff]
        %v415 = vld [vmem:[%s244 + $0x348] sm:$0xff]
        %v416 = vld [vmem:[%s244 + $0x350] sm:$0xff]
        %v417 = vld [vmem:[%s244 + $0x358] sm:$0xff]
        %v418 = vld [vmem:[%s244 + $0x360] sm:$0xff]
        %v419 = vld [vmem:[%s244 + $0x368] sm:$0xff]
        %v420 = vld [vmem:[%s244 + $0x370] sm:$0xff]
        %v421 = vld [vmem:[%s244 + $0x378] sm:$0xff]
        %v422 = vld [vmem:[%s244 + $0x380] sm:$0xff]
        %v423 = vld [vmem:[%s244 + $0x388] sm:$0xff]
        %v424 = vld [vmem:[%s244 + $0x390] sm:$0xff]
        %v425 = vld [vmem:[%s244 + $0x398] sm:$0xff]
        %v426 = vld [vmem:[%s244 + $0x3a0] sm:$0xff]
        %v427 = vld [vmem:[%s244 + $0x3a8] sm:$0xff]
        %v428 = vld [vmem:[%s244 + $0x3b0] sm:$0xff]
        %v429 = vld [vmem:[%s244 + $0x3b8] sm:$0xff]
        %v430 = vld [vmem:[%s244 + $0x3c0] sm:$0xff]
        %v431 = vld [vmem:[%s244 + $0x3c8] sm:$0xff]
        %v432 = vld [vmem:[%s244 + $0x3d0] sm:$0xff]
        %v433 = vld [vmem:[%s244 + $0x3d8] sm:$0xff]
        %v434 = vld [vmem:[%s244 + $0x3e0] sm:$0xff]
        %v435 = vld [vmem:[%s244 + $0x3e8] sm:$0xff]
        %v436 = vld [vmem:[%s244 + $0x3f0] sm:$0xff]
        %v437 = vld [vmem:[%s244 + $0x3f8] sm:$0xff]
        %v438 = vand.u32 %v340, 4294901760
        %439 = vmatpush.msra.mxu0 %v438
        %v440 = vand.u32 %v338, 4294901760
        %441 = vmatpush.msra.mxu0 %v440
        %v442 = vand.u32 %v336, 4294901760
        %443 = vmatpush.msra.mxu0 %v442
        %v444 = vand.u32 %v334, 4294901760
        %445 = vmatpush.msra.mxu0 %v444
        %v446 = vand.u32 %v332, 4294901760
        %447 = vmatpush.msra.mxu0 %v446
        %v448 = vand.u32 %v330, 4294901760
        %449 = vmatpush.msra.mxu0 %v448
        %v450 = vand.u32 %v328, 4294901760
        %451 = vmatpush.msra.mxu0 %v450
        %v452 = vand.u32 %v326, 4294901760
        %453 = vmatpush.msra.mxu0 %v452
        %v454 = vand.u32 %v324, 4294901760
        %455 = vmatpush.msra.mxu0 %v454
        %v456 = vand.u32 %v322, 4294901760
        %457 = vmatpush.msra.mxu0 %v456
        %v458 = vand.u32 %v320, 4294901760
        %459 = vmatpush.msra.mxu0 %v458
        %v460 = vand.u32 %v318, 4294901760
        %461 = vmatpush.msra.mxu0 %v460
        %v462 = vand.u32 %v316, 4294901760
        %463 = vmatpush.msra.mxu0 %v462
        %v464 = vand.u32 %v314, 4294901760
        %465 = vmatpush.msra.mxu0 %v464
        %v466 = vand.u32 %v312, 4294901760
        %467 = vmatpush.msra.mxu0 %v466
        %v468 = vand.u32 %v310, 4294901760
        %469 = vmatpush.msra.mxu0 %v468
        %v470 = vand.u32 %v302, 4294901760
        %v471 = vsub.f32 %v302, %v470
        %v472 = vand.u32 %v471, 4294901760
        %v473 = vsub.f32 %v471, %v472
        %v474 = vand.u32 %v473, 4294901760
        %475 = vmatmul.f32.gmra.mxu0 %v474
        %v476 = vpop.f32.mrf.mxu0
        %v477 = vadd.f32 0.0, %v476
        %v478 = vand.u32 %v306, 4294901760
        %v479 = vsub.f32 %v306, %v478
        %v480 = vand.u32 %v479, 4294901760
        %v481 = vsub.f32 %v479, %v480
        %v482 = vand.u32 %v481, 4294901760
        %483 = vmatmul.f32.gmra.mxu0 %v482
        %v484 = vpop.f32.mrf.mxu0
        %v485 = vadd.f32 0.0, %v484
        %486 = vdwg.mxu0
        %v487 = vand.u32 %v340, 4294901760
        %v488 = vsub.f32 %v340, %v487
        %v489 = vand.u32 %v488, 4294901760
        %v490 = vsub.f32 %v488, %v489
        %v491 = vand.u32 %v490, 4294901760
        %492 = vmatpush.msra.mxu0 %v491
        %v493 = vand.u32 %v338, 4294901760
        %v494 = vsub.f32 %v338, %v493
        %v495 = vand.u32 %v494, 4294901760
        %v496 = vsub.f32 %v494, %v495
        %v497 = vand.u32 %v496, 4294901760
        %498 = vmatpush.msra.mxu0 %v497
        %v499 = vand.u32 %v336, 4294901760
        %v500 = vsub.f32 %v336, %v499
        %v501 = vand.u32 %v500, 4294901760
        %v502 = vsub.f32 %v500, %v501
        %v503 = vand.u32 %v502, 4294901760
        %504 = vmatpush.msra.mxu0 %v503
        %v505 = vand.u32 %v334, 4294901760
        %v506 = vsub.f32 %v334, %v505
        %v507 = vand.u32 %v506, 4294901760
        %v508 = vsub.f32 %v506, %v507
        %v509 = vand.u32 %v508, 4294901760
        %510 = vmatpush.msra.mxu0 %v509
        %v511 = vand.u32 %v332, 4294901760
        %v512 = vsub.f32 %v332, %v511
        %v513 = vand.u32 %v512, 4294901760
        %v514 = vsub.f32 %v512, %v513
        %v515 = vand.u32 %v514, 4294901760
        %516 = vmatpush.msra.mxu0 %v515
        %v517 = vand.u32 %v330, 4294901760
        %v518 = vsub.f32 %v330, %v517
        %v519 = vand.u32 %v518, 4294901760
        %v520 = vsub.f32 %v518, %v519
        %v521 = vand.u32 %v520, 4294901760
        %522 = vmatpush.msra.mxu0 %v521
        %v523 = vand.u32 %v328, 4294901760
        %v524 = vsub.f32 %v328, %v523
        %v525 = vand.u32 %v524, 4294901760
        %v526 = vsub.f32 %v524, %v525
        %v527 = vand.u32 %v526, 4294901760
        %528 = vmatpush.msra.mxu0 %v527
        %v529 = vand.u32 %v326, 4294901760
        %v530 = vsub.f32 %v326, %v529
        %v531 = vand.u32 %v530, 4294901760
        %v532 = vsub.f32 %v530, %v531
        %v533 = vand.u32 %v532, 4294901760
        %534 = vmatpush.msra.mxu0 %v533
        %v535 = vand.u32 %v324, 4294901760
        %v536 = vsub.f32 %v324, %v535
        %v537 = vand.u32 %v536, 4294901760
        %v538 = vsub.f32 %v536, %v537
        %v539 = vand.u32 %v538, 4294901760
        %540 = vmatpush.msra.mxu0 %v539
        %v541 = vand.u32 %v322, 4294901760
        %v542 = vsub.f32 %v322, %v541
        %v543 = vand.u32 %v542, 4294901760
        %v544 = vsub.f32 %v542, %v543
        %v545 = vand.u32 %v544, 4294901760
        %546 = vmatpush.msra.mxu0 %v545
        %v547 = vand.u32 %v320, 4294901760
        %v548 = vsub.f32 %v320, %v547
        %v549 = vand.u32 %v548, 4294901760
        %v550 = vsub.f32 %v548, %v549
        %v551 = vand.u32 %v550, 4294901760
        %552 = vmatpush.msra.mxu0 %v551
        %v553 = vand.u32 %v318, 4294901760
        %v554 = vsub.f32 %v318, %v553
        %v555 = vand.u32 %v554, 4294901760
        %v556 = vsub.f32 %v554, %v555
        %v557 = vand.u32 %v556, 4294901760
        %558 = vmatpush.msra.mxu0 %v557
        %v559 = vand.u32 %v316, 4294901760
        %v560 = vsub.f32 %v316, %v559
        %v561 = vand.u32 %v560, 4294901760
        %v562 = vsub.f32 %v560, %v561
        %v563 = vand.u32 %v562, 4294901760
        %564 = vmatpush.msra.mxu0 %v563
        %v565 = vand.u32 %v314, 4294901760
        %v566 = vsub.f32 %v314, %v565
        %v567 = vand.u32 %v566, 4294901760
        %v568 = vsub.f32 %v566, %v567
        %v569 = vand.u32 %v568, 4294901760
        %570 = vmatpush.msra.mxu0 %v569
        %v571 = vand.u32 %v312, 4294901760
        %v572 = vsub.f32 %v312, %v571
        %v573 = vand.u32 %v572, 4294901760
        %v574 = vsub.f32 %v572, %v573
        %v575 = vand.u32 %v574, 4294901760
        %576 = vmatpush.msra.mxu0 %v575
        %v577 = vand.u32 %v310, 4294901760
        %v578 = vsub.f32 %v310, %v577
        %v579 = vand.u32 %v578, 4294901760
        %v580 = vsub.f32 %v578, %v579
        %v581 = vand.u32 %v580, 4294901760
        %582 = vmatpush.msra.mxu0 %v581
        %v583 = vand.u32 %v302, 4294901760
        %584 = vmatmul.f32.gmra.mxu0 %v583
        %v585 = vpop.f32.mrf.mxu0
        %v586 = vadd.f32 %v477, %v585
        %v587 = vand.u32 %v306, 4294901760
        %588 = vmatmul.f32.gmra.mxu0 %v587
        %v589 = vpop.f32.mrf.mxu0
        %v590 = vadd.f32 %v485, %v589
        %591 = vdwg.mxu0
        %v592 = vand.u32 %v340, 4294901760
        %v593 = vsub.f32 %v340, %v592
        %594 = vmatpush.msra.mxu0 %v593
        %v595 = vand.u32 %v338, 4294901760
        %v596 = vsub.f32 %v338, %v595
        %597 = vmatpush.msra.mxu0 %v596
        %v598 = vand.u32 %v336, 4294901760
        %v599 = vsub.f32 %v336, %v598
        %600 = vmatpush.msra.mxu0 %v599
        %v601 = vand.u32 %v334, 4294901760
        %v602 = vsub.f32 %v334, %v601
        %603 = vmatpush.msra.mxu0 %v602
        %v604 = vand.u32 %v332, 4294901760
        %v605 = vsub.f32 %v332, %v604
        %606 = vmatpush.msra.mxu0 %v605
        %v607 = vand.u32 %v330, 4294901760
        %v608 = vsub.f32 %v330, %v607
        %609 = vmatpush.msra.mxu0 %v608
        %v610 = vand.u32 %v328, 4294901760
        %v611 = vsub.f32 %v328, %v610
        %612 = vmatpush.msra.mxu0 %v611
        %v613 = vand.u32 %v326, 4294901760
        %v614 = vsub.f32 %v326, %v613
        %615 = vmatpush.msra.mxu0 %v614
        %v616 = vand.u32 %v324, 4294901760
        %v617 = vsub.f32 %v324, %v616
        %618 = vmatpush.msra.mxu0 %v617
        %v619 = vand.u32 %v322, 4294901760
        %v620 = vsub.f32 %v322, %v619
        %621 = vmatpush.msra.mxu0 %v620
        %v622 = vand.u32 %v320, 4294901760
        %v623 = vsub.f32 %v320, %v622
        %624 = vmatpush.msra.mxu0 %v623
        %v625 = vand.u32 %v318, 4294901760
        %v626 = vsub.f32 %v318, %v625
        %627 = vmatpush.msra.mxu0 %v626
        %v628 = vand.u32 %v316, 4294901760
        %v629 = vsub.f32 %v316, %v628
        %630 = vmatpush.msra.mxu0 %v629
        %v631 = vand.u32 %v314, 4294901760
        %v632 = vsub.f32 %v314, %v631
        %633 = vmatpush.msra.mxu0 %v632
        %v634 = vand.u32 %v312, 4294901760
        %v635 = vsub.f32 %v312, %v634
        %636 = vmatpush.msra.mxu0 %v635
        %v637 = vand.u32 %v310, 4294901760
        %v638 = vsub.f32 %v310, %v637
        %639 = vmatpush.msra.mxu0 %v638
        %v640 = vand.u32 %v302, 4294901760
        %v641 = vsub.f32 %v302, %v640
        %642 = vmatmul.f32.gmra.mxu0 %v641
        %v643 = vpop.f32.mrf.mxu0
        %v644 = vadd.f32 %v586, %v643
        %v645 = vand.u32 %v306, 4294901760
        %v646 = vsub.f32 %v306, %v645
        %647 = vmatmul.f32.gmra.mxu0 %v646
        %v648 = vpop.f32.mrf.mxu0
        %v649 = vadd.f32 %v590, %v648
        %650 = vdwg.mxu0
        %v651 = vand.u32 %v340, 4294901760
        %652 = vmatpush.msra.mxu0 %v651
        %v653 = vand.u32 %v338, 4294901760
        %654 = vmatpush.msra.mxu0 %v653
        %v655 = vand.u32 %v336, 4294901760
        %656 = vmatpush.msra.mxu0 %v655
        %v657 = vand.u32 %v334, 4294901760
        %658 = vmatpush.msra.mxu0 %v657
        %v659 = vand.u32 %v332, 4294901760
        %660 = vmatpush.msra.mxu0 %v659
        %v661 = vand.u32 %v330, 4294901760
        %662 = vmatpush.msra.mxu0 %v661
        %v663 = vand.u32 %v328, 4294901760
        %664 = vmatpush.msra.mxu0 %v663
        %v665 = vand.u32 %v326, 4294901760
        %666 = vmatpush.msra.mxu0 %v665
        %v667 = vand.u32 %v324, 4294901760
        %668 = vmatpush.msra.mxu0 %v667
        %v669 = vand.u32 %v322, 4294901760
        %670 = vmatpush.msra.mxu0 %v669
        %v671 = vand.u32 %v320, 4294901760
        %672 = vmatpush.msra.mxu0 %v671
        %v673 = vand.u32 %v318, 4294901760
        %674 = vmatpush.msra.mxu0 %v673
        %v675 = vand.u32 %v316, 4294901760
        %676 = vmatpush.msra.mxu0 %v675
        %v677 = vand.u32 %v314, 4294901760
        %678 = vmatpush.msra.mxu0 %v677
        %v679 = vand.u32 %v312, 4294901760
        %680 = vmatpush.msra.mxu0 %v679
        %v681 = vand.u32 %v310, 4294901760
        %682 = vmatpush.msra.mxu0 %v681
        %v683 = vand.u32 %v302, 4294901760
        %v684 = vsub.f32 %v302, %v683
        %v685 = vand.u32 %v684, 4294901760
        %686 = vmatmul.f32.gmra.mxu0 %v685
        %v687 = vpop.f32.mrf.mxu0
        %v688 = vadd.f32 %v644, %v687
        %v689 = vand.u32 %v306, 4294901760
        %v690 = vsub.f32 %v306, %v689
        %v691 = vand.u32 %v690, 4294901760
        %692 = vmatmul.f32.gmra.mxu0 %v691
        %v693 = vpop.f32.mrf.mxu0
        %v694 = vadd.f32 %v649, %v693
        %695 = vdwg.mxu0
        %v696 = vand.u32 %v340, 4294901760
        %v697 = vsub.f32 %v340, %v696
        %v698 = vand.u32 %v697, 4294901760
        %699 = vmatpush.msra.mxu0 %v698
        %v700 = vand.u32 %v338, 4294901760
        %v701 = vsub.f32 %v338, %v700
        %v702 = vand.u32 %v701, 4294901760
        %703 = vmatpush.msra.mxu0 %v702
        %v704 = vand.u32 %v336, 4294901760
        %v705 = vsub.f32 %v336, %v704
        %v706 = vand.u32 %v705, 4294901760
        %707 = vmatpush.msra.mxu0 %v706
        %v708 = vand.u32 %v334, 4294901760
        %v709 = vsub.f32 %v334, %v708
        %v710 = vand.u32 %v709, 4294901760
        %711 = vmatpush.msra.mxu0 %v710
        %v712 = vand.u32 %v332, 4294901760
        %v713 = vsub.f32 %v332, %v712
        %v714 = vand.u32 %v713, 4294901760
        %715 = vmatpush.msra.mxu0 %v714
        %v716 = vand.u32 %v330, 4294901760
        %v717 = vsub.f32 %v330, %v716
        %v718 = vand.u32 %v717, 4294901760
        %719 = vmatpush.msra.mxu0 %v718
        %v720 = vand.u32 %v328, 4294901760
        %v721 = vsub.f32 %v328, %v720
        %v722 = vand.u32 %v721, 4294901760
        %723 = vmatpush.msra.mxu0 %v722
        %v724 = vand.u32 %v326, 4294901760
        %v725 = vsub.f32 %v326, %v724
        %v726 = vand.u32 %v725, 4294901760
        %727 = vmatpush.msra.mxu0 %v726
        %v728 = vand.u32 %v324, 4294901760
        %v729 = vsub.f32 %v324, %v728
        %v730 = vand.u32 %v729, 4294901760
        %731 = vmatpush.msra.mxu0 %v730
        %v732 = vand.u32 %v322, 4294901760
        %v733 = vsub.f32 %v322, %v732
        %v734 = vand.u32 %v733, 4294901760
        %735 = vmatpush.msra.mxu0 %v734
        %v736 = vand.u32 %v320, 4294901760
        %v737 = vsub.f32 %v320, %v736
        %v738 = vand.u32 %v737, 4294901760
        %739 = vmatpush.msra.mxu0 %v738
        %v740 = vand.u32 %v318, 4294901760
        %v741 = vsub.f32 %v318, %v740
        %v742 = vand.u32 %v741, 4294901760
        %743 = vmatpush.msra.mxu0 %v742
        %v744 = vand.u32 %v316, 4294901760
        %v745 = vsub.f32 %v316, %v744
        %v746 = vand.u32 %v745, 4294901760
        %747 = vmatpush.msra.mxu0 %v746
        %v748 = vand.u32 %v314, 4294901760
        %v749 = vsub.f32 %v314, %v748
        %v750 = vand.u32 %v749, 4294901760
        %751 = vmatpush.msra.mxu0 %v750
        %v752 = vand.u32 %v312, 4294901760
        %v753 = vsub.f32 %v312, %v752
        %v754 = vand.u32 %v753, 4294901760
        %755 = vmatpush.msra.mxu0 %v754
        %v756 = vand.u32 %v310, 4294901760
        %v757 = vsub.f32 %v310, %v756
        %v758 = vand.u32 %v757, 4294901760
        %759 = vmatpush.msra.mxu0 %v758
        %v760 = vand.u32 %v302, 4294901760
        %761 = vmatmul.f32.gmra.mxu0 %v760
        %v762 = vpop.f32.mrf.mxu0
        %v763 = vadd.f32 %v688, %v762
        %v764 = vand.u32 %v306, 4294901760
        %765 = vmatmul.f32.gmra.mxu0 %v764
        %v766 = vpop.f32.mrf.mxu0
        %v767 = vadd.f32 %v694, %v766
        %768 = vdwg.mxu0
        %v769 = vand.u32 %v340, 4294901760
        %770 = vmatpush.msra.mxu0 %v769
        %v771 = vand.u32 %v338, 4294901760
        %772 = vmatpush.msra.mxu0 %v771
        %v773 = vand.u32 %v336, 4294901760
        %774 = vmatpush.msra.mxu0 %v773
        %v775 = vand.u32 %v334, 4294901760
        %776 = vmatpush.msra.mxu0 %v775
        %v777 = vand.u32 %v332, 4294901760
        %778 = vmatpush.msra.mxu0 %v777
        %v779 = vand.u32 %v330, 4294901760
        %780 = vmatpush.msra.mxu0 %v779
        %v781 = vand.u32 %v328, 4294901760
        %782 = vmatpush.msra.mxu0 %v781
        %v783 = vand.u32 %v326, 4294901760
        %784 = vmatpush.msra.mxu0 %v783
        %v785 = vand.u32 %v324, 4294901760
        %786 = vmatpush.msra.mxu0 %v785
        %v787 = vand.u32 %v322, 4294901760
        %788 = vmatpush.msra.mxu0 %v787
        %v789 = vand.u32 %v320, 4294901760
        %790 = vmatpush.msra.mxu0 %v789
        %v791 = vand.u32 %v318, 4294901760
        %792 = vmatpush.msra.mxu0 %v791
        %v793 = vand.u32 %v316, 4294901760
        %794 = vmatpush.msra.mxu0 %v793
        %v795 = vand.u32 %v314, 4294901760
        %796 = vmatpush.msra.mxu0 %v795
        %v797 = vand.u32 %v312, 4294901760
        %798 = vmatpush.msra.mxu0 %v797
        %v799 = vand.u32 %v310, 4294901760
        %800 = vmatpush.msra.mxu0 %v799
        %v801 = vand.u32 %v302, 4294901760
        %802 = vmatmul.f32.gmra.mxu0 %v801
        %v803 = vpop.f32.mrf.mxu0
        %v804 = vadd.f32 %v763, %v803
        %v805 = vand.u32 %v306, 4294901760
        %806 = vmatmul.f32.gmra.mxu0 %v805
        %v807 = vpop.f32.mrf.mxu0
        %v808 = vadd.f32 %v767, %v807
        %809 = vdwg.mxu0
        %v810 = vand.u32 %v372, 4294901760
        %811 = vmatpush.msra.mxu0 %v810
        %v812 = vand.u32 %v370, 4294901760
        %813 = vmatpush.msra.mxu0 %v812
        %v814 = vand.u32 %v368, 4294901760
        %815 = vmatpush.msra.mxu0 %v814
        %v816 = vand.u32 %v366, 4294901760
        %817 = vmatpush.msra.mxu0 %v816
        %v818 = vand.u32 %v364, 4294901760
        %819 = vmatpush.msra.mxu0 %v818
        %v820 = vand.u32 %v362, 4294901760
        %821 = vmatpush.msra.mxu0 %v820
        %v822 = vand.u32 %v360, 4294901760
        %823 = vmatpush.msra.mxu0 %v822
        %v824 = vand.u32 %v358, 4294901760
        %825 = vmatpush.msra.mxu0 %v824
        %v826 = vand.u32 %v356, 4294901760
        %827 = vmatpush.msra.mxu0 %v826
        %v828 = vand.u32 %v354, 4294901760
        %829 = vmatpush.msra.mxu0 %v828
        %v830 = vand.u32 %v352, 4294901760
        %831 = vmatpush.msra.mxu0 %v830
        %v832 = vand.u32 %v350, 4294901760
        %833 = vmatpush.msra.mxu0 %v832
        %v834 = vand.u32 %v348, 4294901760
        %835 = vmatpush.msra.mxu0 %v834
        %v836 = vand.u32 %v346, 4294901760
        %837 = vmatpush.msra.mxu0 %v836
        %v838 = vand.u32 %v344, 4294901760
        %839 = vmatpush.msra.mxu0 %v838
        %v840 = vand.u32 %v342, 4294901760
        %841 = vmatpush.msra.mxu0 %v840
        %v842 = vand.u32 %v303, 4294901760
        %v843 = vsub.f32 %v303, %v842
        %v844 = vand.u32 %v843, 4294901760
        %v845 = vsub.f32 %v843, %v844
        %v846 = vand.u32 %v845, 4294901760
        %847 = vmatmul.f32.gmra.mxu0 %v846
        %v848 = vpop.f32.mrf.mxu0
        %v849 = vadd.f32 %v804, %v848
        %v850 = vand.u32 %v307, 4294901760
        %v851 = vsub.f32 %v307, %v850
        %v852 = vand.u32 %v851, 4294901760
        %v853 = vsub.f32 %v851, %v852
        %v854 = vand.u32 %v853, 4294901760
        %855 = vmatmul.f32.gmra.mxu0 %v854
        %v856 = vpop.f32.mrf.mxu0
        %v857 = vadd.f32 %v808, %v856
        %858 = vdwg.mxu0
        %v859 = vand.u32 %v372, 4294901760
        %v860 = vsub.f32 %v372, %v859
        %v861 = vand.u32 %v860, 4294901760
        %v862 = vsub.f32 %v860, %v861
        %v863 = vand.u32 %v862, 4294901760
        %864 = vmatpush.msra.mxu0 %v863
        %v865 = vand.u32 %v370, 4294901760
        %v866 = vsub.f32 %v370, %v865
        %v867 = vand.u32 %v866, 4294901760
        %v868 = vsub.f32 %v866, %v867
        %v869 = vand.u32 %v868, 4294901760
        %870 = vmatpush.msra.mxu0 %v869
        %v871 = vand.u32 %v368, 4294901760
        %v872 = vsub.f32 %v368, %v871
        %v873 = vand.u32 %v872, 4294901760
        %v874 = vsub.f32 %v872, %v873
        %v875 = vand.u32 %v874, 4294901760
        %876 = vmatpush.msra.mxu0 %v875
        %v877 = vand.u32 %v366, 4294901760
        %v878 = vsub.f32 %v366, %v877
        %v879 = vand.u32 %v878, 4294901760
        %v880 = vsub.f32 %v878, %v879
        %v881 = vand.u32 %v880, 4294901760
        %882 = vmatpush.msra.mxu0 %v881
        %v883 = vand.u32 %v364, 4294901760
        %v884 = vsub.f32 %v364, %v883
        %v885 = vand.u32 %v884, 4294901760
        %v886 = vsub.f32 %v884, %v885
        %v887 = vand.u32 %v886, 4294901760
        %888 = vmatpush.msra.mxu0 %v887
        %v889 = vand.u32 %v362, 4294901760
        %v890 = vsub.f32 %v362, %v889
        %v891 = vand.u32 %v890, 4294901760
        %v892 = vsub.f32 %v890, %v891
        %v893 = vand.u32 %v892, 4294901760
        %894 = vmatpush.msra.mxu0 %v893
        %v895 = vand.u32 %v360, 4294901760
        %v896 = vsub.f32 %v360, %v895
        %v897 = vand.u32 %v896, 4294901760
        %v898 = vsub.f32 %v896, %v897
        %v899 = vand.u32 %v898, 4294901760
        %900 = vmatpush.msra.mxu0 %v899
        %v901 = vand.u32 %v358, 4294901760
        %v902 = vsub.f32 %v358, %v901
        %v903 = vand.u32 %v902, 4294901760
        %v904 = vsub.f32 %v902, %v903
        %v905 = vand.u32 %v904, 4294901760
        %906 = vmatpush.msra.mxu0 %v905
        %v907 = vand.u32 %v356, 4294901760
        %v908 = vsub.f32 %v356, %v907
        %v909 = vand.u32 %v908, 4294901760
        %v910 = vsub.f32 %v908, %v909
        %v911 = vand.u32 %v910, 4294901760
        %912 = vmatpush.msra.mxu0 %v911
        %v913 = vand.u32 %v354, 4294901760
        %v914 = vsub.f32 %v354, %v913
        %v915 = vand.u32 %v914, 4294901760
        %v916 = vsub.f32 %v914, %v915
        %v917 = vand.u32 %v916, 4294901760
        %918 = vmatpush.msra.mxu0 %v917
        %v919 = vand.u32 %v352, 4294901760
        %v920 = vsub.f32 %v352, %v919
        %v921 = vand.u32 %v920, 4294901760
        %v922 = vsub.f32 %v920, %v921
        %v923 = vand.u32 %v922, 4294901760
        %924 = vmatpush.msra.mxu0 %v923
        %v925 = vand.u32 %v350, 4294901760
        %v926 = vsub.f32 %v350, %v925
        %v927 = vand.u32 %v926, 4294901760
        %v928 = vsub.f32 %v926, %v927
        %v929 = vand.u32 %v928, 4294901760
        %930 = vmatpush.msra.mxu0 %v929
        %v931 = vand.u32 %v348, 4294901760
        %v932 = vsub.f32 %v348, %v931
        %v933 = vand.u32 %v932, 4294901760
        %v934 = vsub.f32 %v932, %v933
        %v935 = vand.u32 %v934, 4294901760
        %936 = vmatpush.msra.mxu0 %v935
        %v937 = vand.u32 %v346, 4294901760
        %v938 = vsub.f32 %v346, %v937
        %v939 = vand.u32 %v938, 4294901760
        %v940 = vsub.f32 %v938, %v939
        %v941 = vand.u32 %v940, 4294901760
        %942 = vmatpush.msra.mxu0 %v941
        %v943 = vand.u32 %v344, 4294901760
        %v944 = vsub.f32 %v344, %v943
        %v945 = vand.u32 %v944, 4294901760
        %v946 = vsub.f32 %v944, %v945
        %v947 = vand.u32 %v946, 4294901760
        %948 = vmatpush.msra.mxu0 %v947
        %v949 = vand.u32 %v342, 4294901760
        %v950 = vsub.f32 %v342, %v949
        %v951 = vand.u32 %v950, 4294901760
        %v952 = vsub.f32 %v950, %v951
        %v953 = vand.u32 %v952, 4294901760
        %954 = vmatpush.msra.mxu0 %v953
        %v955 = vand.u32 %v303, 4294901760
        %956 = vmatmul.f32.gmra.mxu0 %v955
        %v957 = vpop.f32.mrf.mxu0
        %v958 = vadd.f32 %v849, %v957
        %v959 = vand.u32 %v307, 4294901760
        %960 = vmatmul.f32.gmra.mxu0 %v959
        %v961 = vpop.f32.mrf.mxu0
        %v962 = vadd.f32 %v857, %v961
        %963 = vdwg.mxu0
        %v964 = vand.u32 %v372, 4294901760
        %v965 = vsub.f32 %v372, %v964
        %966 = vmatpush.msra.mxu0 %v965
        %v967 = vand.u32 %v370, 4294901760
        %v968 = vsub.f32 %v370, %v967
        %969 = vmatpush.msra.mxu0 %v968
        %v970 = vand.u32 %v368, 4294901760
        %v971 = vsub.f32 %v368, %v970
        %972 = vmatpush.msra.mxu0 %v971
        %v973 = vand.u32 %v366, 4294901760
        %v974 = vsub.f32 %v366, %v973
        %975 = vmatpush.msra.mxu0 %v974
        %v976 = vand.u32 %v364, 4294901760
        %v977 = vsub.f32 %v364, %v976
        %978 = vmatpush.msra.mxu0 %v977
        %v979 = vand.u32 %v362, 4294901760
        %v980 = vsub.f32 %v362, %v979
        %981 = vmatpush.msra.mxu0 %v980
        %v982 = vand.u32 %v360, 4294901760
        %v983 = vsub.f32 %v360, %v982
        %984 = vmatpush.msra.mxu0 %v983
        %v985 = vand.u32 %v358, 4294901760
        %v986 = vsub.f32 %v358, %v985
        %987 = vmatpush.msra.mxu0 %v986
        %v988 = vand.u32 %v356, 4294901760
        %v989 = vsub.f32 %v356, %v988
        %990 = vmatpush.msra.mxu0 %v989
        %v991 = vand.u32 %v354, 4294901760
        %v992 = vsub.f32 %v354, %v991
        %993 = vmatpush.msra.mxu0 %v992
        %v994 = vand.u32 %v352, 4294901760
        %v995 = vsub.f32 %v352, %v994
        %996 = vmatpush.msra.mxu0 %v995
        %v997 = vand.u32 %v350, 4294901760
        %v998 = vsub.f32 %v350, %v997
        %999 = vmatpush.msra.mxu0 %v998
        %v1000 = vand.u32 %v348, 4294901760
        %v1001 = vsub.f32 %v348, %v1000
        %1002 = vmatpush.msra.mxu0 %v1001
        %v1003 = vand.u32 %v346, 4294901760
        %v1004 = vsub.f32 %v346, %v1003
        %1005 = vmatpush.msra.mxu0 %v1004
        %v1006 = vand.u32 %v344, 4294901760
        %v1007 = vsub.f32 %v344, %v1006
        %1008 = vmatpush.msra.mxu0 %v1007
        %v1009 = vand.u32 %v342, 4294901760
        %v1010 = vsub.f32 %v342, %v1009
        %1011 = vmatpush.msra.mxu0 %v1010
        %v1012 = vand.u32 %v303, 4294901760
        %v1013 = vsub.f32 %v303, %v1012
        %1014 = vmatmul.f32.gmra.mxu0 %v1013
        %v1015 = vpop.f32.mrf.mxu0
        %v1016 = vadd.f32 %v958, %v1015
        %v1017 = vand.u32 %v307, 4294901760
        %v1018 = vsub.f32 %v307, %v1017
        %1019 = vmatmul.f32.gmra.mxu0 %v1018
        %v1020 = vpop.f32.mrf.mxu0
        %v1021 = vadd.f32 %v962, %v1020
        %1022 = vdwg.mxu0
        %v1023 = vand.u32 %v372, 4294901760
        %1024 = vmatpush.msra.mxu0 %v1023
        %v1025 = vand.u32 %v370, 4294901760
        %1026 = vmatpush.msra.mxu0 %v1025
        %v1027 = vand.u32 %v368, 4294901760
        %1028 = vmatpush.msra.mxu0 %v1027
        %v1029 = vand.u32 %v366, 4294901760
        %1030 = vmatpush.msra.mxu0 %v1029
        %v1031 = vand.u32 %v364, 4294901760
        %1032 = vmatpush.msra.mxu0 %v1031
        %v1033 = vand.u32 %v362, 4294901760
        %1034 = vmatpush.msra.mxu0 %v1033
        %v1035 = vand.u32 %v360, 4294901760
        %1036 = vmatpush.msra.mxu0 %v1035
        %v1037 = vand.u32 %v358, 4294901760
        %1038 = vmatpush.msra.mxu0 %v1037
        %v1039 = vand.u32 %v356, 4294901760
        %1040 = vmatpush.msra.mxu0 %v1039
        %v1041 = vand.u32 %v354, 4294901760
        %1042 = vmatpush.msra.mxu0 %v1041
        %v1043 = vand.u32 %v352, 4294901760
        %1044 = vmatpush.msra.mxu0 %v1043
        %v1045 = vand.u32 %v350, 4294901760
        %1046 = vmatpush.msra.mxu0 %v1045
        %v1047 = vand.u32 %v348, 4294901760
        %1048 = vmatpush.msra.mxu0 %v1047
        %v1049 = vand.u32 %v346, 4294901760
        %1050 = vmatpush.msra.mxu0 %v1049
        %v1051 = vand.u32 %v344, 4294901760
        %1052 = vmatpush.msra.mxu0 %v1051
        %v1053 = vand.u32 %v342, 4294901760
        %1054 = vmatpush.msra.mxu0 %v1053
        %v1055 = vand.u32 %v303, 4294901760
        %v1056 = vsub.f32 %v303, %v1055
        %v1057 = vand.u32 %v1056, 4294901760
        %1058 = vmatmul.f32.gmra.mxu0 %v1057
        %v1059 = vpop.f32.mrf.mxu0
        %v1060 = vadd.f32 %v1016, %v1059
        %v1061 = vand.u32 %v307, 4294901760
        %v1062 = vsub.f32 %v307, %v1061
        %v1063 = vand.u32 %v1062, 4294901760
        %1064 = vmatmul.f32.gmra.mxu0 %v1063
        %v1065 = vpop.f32.mrf.mxu0
        %v1066 = vadd.f32 %v1021, %v1065
        %1067 = vdwg.mxu0
        %v1068 = vand.u32 %v372, 4294901760
        %v1069 = vsub.f32 %v372, %v1068
        %v1070 = vand.u32 %v1069, 4294901760
        %1071 = vmatpush.msra.mxu0 %v1070
        %v1072 = vand.u32 %v370, 4294901760
        %v1073 = vsub.f32 %v370, %v1072
        %v1074 = vand.u32 %v1073, 4294901760
        %1075 = vmatpush.msra.mxu0 %v1074
        %v1076 = vand.u32 %v368, 4294901760
        %v1077 = vsub.f32 %v368, %v1076
        %v1078 = vand.u32 %v1077, 4294901760
        %1079 = vmatpush.msra.mxu0 %v1078
        %v1080 = vand.u32 %v366, 4294901760
        %v1081 = vsub.f32 %v366, %v1080
        %v1082 = vand.u32 %v1081, 4294901760
        %1083 = vmatpush.msra.mxu0 %v1082
        %v1084 = vand.u32 %v364, 4294901760
        %v1085 = vsub.f32 %v364, %v1084
        %v1086 = vand.u32 %v1085, 4294901760
        %1087 = vmatpush.msra.mxu0 %v1086
        %v1088 = vand.u32 %v362, 4294901760
        %v1089 = vsub.f32 %v362, %v1088
        %v1090 = vand.u32 %v1089, 4294901760
        %1091 = vmatpush.msra.mxu0 %v1090
        %v1092 = vand.u32 %v360, 4294901760
        %v1093 = vsub.f32 %v360, %v1092
        %v1094 = vand.u32 %v1093, 4294901760
        %1095 = vmatpush.msra.mxu0 %v1094
        %v1096 = vand.u32 %v358, 4294901760
        %v1097 = vsub.f32 %v358, %v1096
        %v1098 = vand.u32 %v1097, 4294901760
        %1099 = vmatpush.msra.mxu0 %v1098
        %v1100 = vand.u32 %v356, 4294901760
        %v1101 = vsub.f32 %v356, %v1100
        %v1102 = vand.u32 %v1101, 4294901760
        %1103 = vmatpush.msra.mxu0 %v1102
        %v1104 = vand.u32 %v354, 4294901760
        %v1105 = vsub.f32 %v354, %v1104
        %v1106 = vand.u32 %v1105, 4294901760
        %1107 = vmatpush.msra.mxu0 %v1106
        %v1108 = vand.u32 %v352, 4294901760
        %v1109 = vsub.f32 %v352, %v1108
        %v1110 = vand.u32 %v1109, 4294901760
        %1111 = vmatpush.msra.mxu0 %v1110
        %v1112 = vand.u32 %v350, 4294901760
        %v1113 = vsub.f32 %v350, %v1112
        %v1114 = vand.u32 %v1113, 4294901760
        %1115 = vmatpush.msra.mxu0 %v1114
        %v1116 = vand.u32 %v348, 4294901760
        %v1117 = vsub.f32 %v348, %v1116
        %v1118 = vand.u32 %v1117, 4294901760
        %1119 = vmatpush.msra.mxu0 %v1118
        %v1120 = vand.u32 %v346, 4294901760
        %v1121 = vsub.f32 %v346, %v1120
        %v1122 = vand.u32 %v1121, 4294901760
        %1123 = vmatpush.msra.mxu0 %v1122
        %v1124 = vand.u32 %v344, 4294901760
        %v1125 = vsub.f32 %v344, %v1124
        %v1126 = vand.u32 %v1125, 4294901760
        %1127 = vmatpush.msra.mxu0 %v1126
        %v1128 = vand.u32 %v342, 4294901760
        %v1129 = vsub.f32 %v342, %v1128
        %v1130 = vand.u32 %v1129, 4294901760
        %1131 = vmatpush.msra.mxu0 %v1130
        %v1132 = vand.u32 %v303, 4294901760
        %1133 = vmatmul.f32.gmra.mxu0 %v1132
        %v1134 = vpop.f32.mrf.mxu0
        %v1135 = vadd.f32 %v1060, %v1134
        %v1136 = vand.u32 %v307, 4294901760
        %1137 = vmatmul.f32.gmra.mxu0 %v1136
        %v1138 = vpop.f32.mrf.mxu0
        %v1139 = vadd.f32 %v1066, %v1138
        %1140 = vdwg.mxu0
        %v1141 = vand.u32 %v372, 4294901760
        %1142 = vmatpush.msra.mxu0 %v1141
        %v1143 = vand.u32 %v370, 4294901760
        %1144 = vmatpush.msra.mxu0 %v1143
        %v1145 = vand.u32 %v368, 4294901760
        %1146 = vmatpush.msra.mxu0 %v1145
        %v1147 = vand.u32 %v366, 4294901760
        %1148 = vmatpush.msra.mxu0 %v1147
        %v1149 = vand.u32 %v364, 4294901760
        %1150 = vmatpush.msra.mxu0 %v1149
        %v1151 = vand.u32 %v362, 4294901760
        %1152 = vmatpush.msra.mxu0 %v1151
        %v1153 = vand.u32 %v360, 4294901760
        %1154 = vmatpush.msra.mxu0 %v1153
        %v1155 = vand.u32 %v358, 4294901760
        %1156 = vmatpush.msra.mxu0 %v1155
        %v1157 = vand.u32 %v356, 4294901760
        %1158 = vmatpush.msra.mxu0 %v1157
        %v1159 = vand.u32 %v354, 4294901760
        %1160 = vmatpush.msra.mxu0 %v1159
        %v1161 = vand.u32 %v352, 4294901760
        %1162 = vmatpush.msra.mxu0 %v1161
        %v1163 = vand.u32 %v350, 4294901760
        %1164 = vmatpush.msra.mxu0 %v1163
        %v1165 = vand.u32 %v348, 4294901760
        %1166 = vmatpush.msra.mxu0 %v1165
        %v1167 = vand.u32 %v346, 4294901760
        %1168 = vmatpush.msra.mxu0 %v1167
        %v1169 = vand.u32 %v344, 4294901760
        %1170 = vmatpush.msra.mxu0 %v1169
        %v1171 = vand.u32 %v342, 4294901760
        %1172 = vmatpush.msra.mxu0 %v1171
        %v1173 = vand.u32 %v303, 4294901760
        %1174 = vmatmul.f32.gmra.mxu0 %v1173
        %v1175 = vpop.f32.mrf.mxu0
        %v1176 = vadd.f32 %v1135, %v1175
        %v1177 = vand.u32 %v307, 4294901760
        %1178 = vmatmul.f32.gmra.mxu0 %v1177
        %v1179 = vpop.f32.mrf.mxu0
        %v1180 = vadd.f32 %v1139, %v1179
        %1181 = vdwg.mxu0
        %v1182 = vand.u32 %v404, 4294901760
        %1183 = vmatpush.msra.mxu0 %v1182
        %v1184 = vand.u32 %v402, 4294901760
        %1185 = vmatpush.msra.mxu0 %v1184
        %v1186 = vand.u32 %v400, 4294901760
        %1187 = vmatpush.msra.mxu0 %v1186
        %v1188 = vand.u32 %v398, 4294901760
        %1189 = vmatpush.msra.mxu0 %v1188
        %v1190 = vand.u32 %v396, 4294901760
        %1191 = vmatpush.msra.mxu0 %v1190
        %v1192 = vand.u32 %v394, 4294901760
        %1193 = vmatpush.msra.mxu0 %v1192
        %v1194 = vand.u32 %v392, 4294901760
        %1195 = vmatpush.msra.mxu0 %v1194
        %v1196 = vand.u32 %v390, 4294901760
        %1197 = vmatpush.msra.mxu0 %v1196
        %v1198 = vand.u32 %v388, 4294901760
        %1199 = vmatpush.msra.mxu0 %v1198
        %v1200 = vand.u32 %v386, 4294901760
        %1201 = vmatpush.msra.mxu0 %v1200
        %v1202 = vand.u32 %v384, 4294901760
        %1203 = vmatpush.msra.mxu0 %v1202
        %v1204 = vand.u32 %v382, 4294901760
        %1205 = vmatpush.msra.mxu0 %v1204
        %v1206 = vand.u32 %v380, 4294901760
        %1207 = vmatpush.msra.mxu0 %v1206
        %v1208 = vand.u32 %v378, 4294901760
        %1209 = vmatpush.msra.mxu0 %v1208
        %v1210 = vand.u32 %v376, 4294901760
        %1211 = vmatpush.msra.mxu0 %v1210
        %v1212 = vand.u32 %v374, 4294901760
        %1213 = vmatpush.msra.mxu0 %v1212
        %v1214 = vand.u32 %v304, 4294901760
        %v1215 = vsub.f32 %v304, %v1214
        %v1216 = vand.u32 %v1215, 4294901760
        %v1217 = vsub.f32 %v1215, %v1216
        %v1218 = vand.u32 %v1217, 4294901760
        %1219 = vmatmul.f32.gmra.mxu0 %v1218
        %v1220 = vpop.f32.mrf.mxu0
        %v1221 = vadd.f32 %v1176, %v1220
        %v1222 = vand.u32 %v308, 4294901760
        %v1223 = vsub.f32 %v308, %v1222
        %v1224 = vand.u32 %v1223, 4294901760
        %v1225 = vsub.f32 %v1223, %v1224
        %v1226 = vand.u32 %v1225, 4294901760
        %1227 = vmatmul.f32.gmra.mxu0 %v1226
        %v1228 = vpop.f32.mrf.mxu0
        %v1229 = vadd.f32 %v1180, %v1228
        %1230 = vdwg.mxu0
        %v1231 = vand.u32 %v404, 4294901760
        %v1232 = vsub.f32 %v404, %v1231
        %v1233 = vand.u32 %v1232, 4294901760
        %v1234 = vsub.f32 %v1232, %v1233
        %v1235 = vand.u32 %v1234, 4294901760
        %1236 = vmatpush.msra.mxu0 %v1235
        %v1237 = vand.u32 %v402, 4294901760
        %v1238 = vsub.f32 %v402, %v1237
        %v1239 = vand.u32 %v1238, 4294901760
        %v1240 = vsub.f32 %v1238, %v1239
        %v1241 = vand.u32 %v1240, 4294901760
        %1242 = vmatpush.msra.mxu0 %v1241
        %v1243 = vand.u32 %v400, 4294901760
        %v1244 = vsub.f32 %v400, %v1243
        %v1245 = vand.u32 %v1244, 4294901760
        %v1246 = vsub.f32 %v1244, %v1245
        %v1247 = vand.u32 %v1246, 4294901760
        %1248 = vmatpush.msra.mxu0 %v1247
        %v1249 = vand.u32 %v398, 4294901760
        %v1250 = vsub.f32 %v398, %v1249
        %v1251 = vand.u32 %v1250, 4294901760
        %v1252 = vsub.f32 %v1250, %v1251
        %v1253 = vand.u32 %v1252, 4294901760
        %1254 = vmatpush.msra.mxu0 %v1253
        %v1255 = vand.u32 %v396, 4294901760
        %v1256 = vsub.f32 %v396, %v1255
        %v1257 = vand.u32 %v1256, 4294901760
        %v1258 = vsub.f32 %v1256, %v1257
        %v1259 = vand.u32 %v1258, 4294901760
        %1260 = vmatpush.msra.mxu0 %v1259
        %v1261 = vand.u32 %v394, 4294901760
        %v1262 = vsub.f32 %v394, %v1261
        %v1263 = vand.u32 %v1262, 4294901760
        %v1264 = vsub.f32 %v1262, %v1263
        %v1265 = vand.u32 %v1264, 4294901760
        %1266 = vmatpush.msra.mxu0 %v1265
        %v1267 = vand.u32 %v392, 4294901760
        %v1268 = vsub.f32 %v392, %v1267
        %v1269 = vand.u32 %v1268, 4294901760
        %v1270 = vsub.f32 %v1268, %v1269
        %v1271 = vand.u32 %v1270, 4294901760
        %1272 = vmatpush.msra.mxu0 %v1271
        %v1273 = vand.u32 %v390, 4294901760
        %v1274 = vsub.f32 %v390, %v1273
        %v1275 = vand.u32 %v1274, 4294901760
        %v1276 = vsub.f32 %v1274, %v1275
        %v1277 = vand.u32 %v1276, 4294901760
        %1278 = vmatpush.msra.mxu0 %v1277
        %v1279 = vand.u32 %v388, 4294901760
        %v1280 = vsub.f32 %v388, %v1279
        %v1281 = vand.u32 %v1280, 4294901760
        %v1282 = vsub.f32 %v1280, %v1281
        %v1283 = vand.u32 %v1282, 4294901760
        %1284 = vmatpush.msra.mxu0 %v1283
        %v1285 = vand.u32 %v386, 4294901760
        %v1286 = vsub.f32 %v386, %v1285
        %v1287 = vand.u32 %v1286, 4294901760
        %v1288 = vsub.f32 %v1286, %v1287
        %v1289 = vand.u32 %v1288, 4294901760
        %1290 = vmatpush.msra.mxu0 %v1289
        %v1291 = vand.u32 %v384, 4294901760
        %v1292 = vsub.f32 %v384, %v1291
        %v1293 = vand.u32 %v1292, 4294901760
        %v1294 = vsub.f32 %v1292, %v1293
        %v1295 = vand.u32 %v1294, 4294901760
        %1296 = vmatpush.msra.mxu0 %v1295
        %v1297 = vand.u32 %v382, 4294901760
        %v1298 = vsub.f32 %v382, %v1297
        %v1299 = vand.u32 %v1298, 4294901760
        %v1300 = vsub.f32 %v1298, %v1299
        %v1301 = vand.u32 %v1300, 4294901760
        %1302 = vmatpush.msra.mxu0 %v1301
        %v1303 = vand.u32 %v380, 4294901760
        %v1304 = vsub.f32 %v380, %v1303
        %v1305 = vand.u32 %v1304, 4294901760
        %v1306 = vsub.f32 %v1304, %v1305
        %v1307 = vand.u32 %v1306, 4294901760
        %1308 = vmatpush.msra.mxu0 %v1307
        %v1309 = vand.u32 %v378, 4294901760
        %v1310 = vsub.f32 %v378, %v1309
        %v1311 = vand.u32 %v1310, 4294901760
        %v1312 = vsub.f32 %v1310, %v1311
        %v1313 = vand.u32 %v1312, 4294901760
        %1314 = vmatpush.msra.mxu0 %v1313
        %v1315 = vand.u32 %v376, 4294901760
        %v1316 = vsub.f32 %v376, %v1315
        %v1317 = vand.u32 %v1316, 4294901760
        %v1318 = vsub.f32 %v1316, %v1317
        %v1319 = vand.u32 %v1318, 4294901760
        %1320 = vmatpush.msra.mxu0 %v1319
        %v1321 = vand.u32 %v374, 4294901760
        %v1322 = vsub.f32 %v374, %v1321
        %v1323 = vand.u32 %v1322, 4294901760
        %v1324 = vsub.f32 %v1322, %v1323
        %v1325 = vand.u32 %v1324, 4294901760
        %1326 = vmatpush.msra.mxu0 %v1325
        %v1327 = vand.u32 %v304, 4294901760
        %1328 = vmatmul.f32.gmra.mxu0 %v1327
        %v1329 = vpop.f32.mrf.mxu0
        %v1330 = vadd.f32 %v1221, %v1329
        %v1331 = vand.u32 %v308, 4294901760
        %1332 = vmatmul.f32.gmra.mxu0 %v1331
        %v1333 = vpop.f32.mrf.mxu0
        %v1334 = vadd.f32 %v1229, %v1333
        %1335 = vdwg.mxu0
        %v1336 = vand.u32 %v404, 4294901760
        %v1337 = vsub.f32 %v404, %v1336
        %1338 = vmatpush.msra.mxu0 %v1337
        %v1339 = vand.u32 %v402, 4294901760
        %v1340 = vsub.f32 %v402, %v1339
        %1341 = vmatpush.msra.mxu0 %v1340
        %v1342 = vand.u32 %v400, 4294901760
        %v1343 = vsub.f32 %v400, %v1342
        %1344 = vmatpush.msra.mxu0 %v1343
        %v1345 = vand.u32 %v398, 4294901760
        %v1346 = vsub.f32 %v398, %v1345
        %1347 = vmatpush.msra.mxu0 %v1346
        %v1348 = vand.u32 %v396, 4294901760
        %v1349 = vsub.f32 %v396, %v1348
        %1350 = vmatpush.msra.mxu0 %v1349
        %v1351 = vand.u32 %v394, 4294901760
        %v1352 = vsub.f32 %v394, %v1351
        %1353 = vmatpush.msra.mxu0 %v1352
        %v1354 = vand.u32 %v392, 4294901760
        %v1355 = vsub.f32 %v392, %v1354
        %1356 = vmatpush.msra.mxu0 %v1355
        %v1357 = vand.u32 %v390, 4294901760
        %v1358 = vsub.f32 %v390, %v1357
        %1359 = vmatpush.msra.mxu0 %v1358
        %v1360 = vand.u32 %v388, 4294901760
        %v1361 = vsub.f32 %v388, %v1360
        %1362 = vmatpush.msra.mxu0 %v1361
        %v1363 = vand.u32 %v386, 4294901760
        %v1364 = vsub.f32 %v386, %v1363
        %1365 = vmatpush.msra.mxu0 %v1364
        %v1366 = vand.u32 %v384, 4294901760
        %v1367 = vsub.f32 %v384, %v1366
        %1368 = vmatpush.msra.mxu0 %v1367
        %v1369 = vand.u32 %v382, 4294901760
        %v1370 = vsub.f32 %v382, %v1369
        %1371 = vmatpush.msra.mxu0 %v1370
        %v1372 = vand.u32 %v380, 4294901760
        %v1373 = vsub.f32 %v380, %v1372
        %1374 = vmatpush.msra.mxu0 %v1373
        %v1375 = vand.u32 %v378, 4294901760
        %v1376 = vsub.f32 %v378, %v1375
        %1377 = vmatpush.msra.mxu0 %v1376
        %v1378 = vand.u32 %v376, 4294901760
        %v1379 = vsub.f32 %v376, %v1378
        %1380 = vmatpush.msra.mxu0 %v1379
        %v1381 = vand.u32 %v374, 4294901760
        %v1382 = vsub.f32 %v374, %v1381
        %1383 = vmatpush.msra.mxu0 %v1382
        %v1384 = vand.u32 %v304, 4294901760
        %v1385 = vsub.f32 %v304, %v1384
        %1386 = vmatmul.f32.gmra.mxu0 %v1385
        %v1387 = vpop.f32.mrf.mxu0
        %v1388 = vadd.f32 %v1330, %v1387
        %v1389 = vand.u32 %v308, 4294901760
        %v1390 = vsub.f32 %v308, %v1389
        %1391 = vmatmul.f32.gmra.mxu0 %v1390
        %v1392 = vpop.f32.mrf.mxu0
        %v1393 = vadd.f32 %v1334, %v1392
        %1394 = vdwg.mxu0
        %v1395 = vand.u32 %v404, 4294901760
        %1396 = vmatpush.msra.mxu0 %v1395
        %v1397 = vand.u32 %v402, 4294901760
        %1398 = vmatpush.msra.mxu0 %v1397
        %v1399 = vand.u32 %v400, 4294901760
        %1400 = vmatpush.msra.mxu0 %v1399
        %v1401 = vand.u32 %v398, 4294901760
        %1402 = vmatpush.msra.mxu0 %v1401
        %v1403 = vand.u32 %v396, 4294901760
        %1404 = vmatpush.msra.mxu0 %v1403
        %v1405 = vand.u32 %v394, 4294901760
        %1406 = vmatpush.msra.mxu0 %v1405
        %v1407 = vand.u32 %v392, 4294901760
        %1408 = vmatpush.msra.mxu0 %v1407
        %v1409 = vand.u32 %v390, 4294901760
        %1410 = vmatpush.msra.mxu0 %v1409
        %v1411 = vand.u32 %v388, 4294901760
        %1412 = vmatpush.msra.mxu0 %v1411
        %v1413 = vand.u32 %v386, 4294901760
        %1414 = vmatpush.msra.mxu0 %v1413
        %v1415 = vand.u32 %v384, 4294901760
        %1416 = vmatpush.msra.mxu0 %v1415
        %v1417 = vand.u32 %v382, 4294901760
        %1418 = vmatpush.msra.mxu0 %v1417
        %v1419 = vand.u32 %v380, 4294901760
        %1420 = vmatpush.msra.mxu0 %v1419
        %v1421 = vand.u32 %v378, 4294901760
        %1422 = vmatpush.msra.mxu0 %v1421
        %v1423 = vand.u32 %v376, 4294901760
        %1424 = vmatpush.msra.mxu0 %v1423
        %v1425 = vand.u32 %v374, 4294901760
        %1426 = vmatpush.msra.mxu0 %v1425
        %v1427 = vand.u32 %v304, 4294901760
        %v1428 = vsub.f32 %v304, %v1427
        %v1429 = vand.u32 %v1428, 4294901760
        %1430 = vmatmul.f32.gmra.mxu0 %v1429
        %v1431 = vpop.f32.mrf.mxu0
        %v1432 = vadd.f32 %v1388, %v1431
        %v1433 = vand.u32 %v308, 4294901760
        %v1434 = vsub.f32 %v308, %v1433
        %v1435 = vand.u32 %v1434, 4294901760
        %1436 = vmatmul.f32.gmra.mxu0 %v1435
        %v1437 = vpop.f32.mrf.mxu0
        %v1438 = vadd.f32 %v1393, %v1437
        %1439 = vdwg.mxu0
        %v1440 = vand.u32 %v404, 4294901760
        %v1441 = vsub.f32 %v404, %v1440
        %v1442 = vand.u32 %v1441, 4294901760
        %1443 = vmatpush.msra.mxu0 %v1442
        %v1444 = vand.u32 %v402, 4294901760
        %v1445 = vsub.f32 %v402, %v1444
        %v1446 = vand.u32 %v1445, 4294901760
        %1447 = vmatpush.msra.mxu0 %v1446
        %v1448 = vand.u32 %v400, 4294901760
        %v1449 = vsub.f32 %v400, %v1448
        %v1450 = vand.u32 %v1449, 4294901760
        %1451 = vmatpush.msra.mxu0 %v1450
        %v1452 = vand.u32 %v398, 4294901760
        %v1453 = vsub.f32 %v398, %v1452
        %v1454 = vand.u32 %v1453, 4294901760
        %1455 = vmatpush.msra.mxu0 %v1454
        %v1456 = vand.u32 %v396, 4294901760
        %v1457 = vsub.f32 %v396, %v1456
        %v1458 = vand.u32 %v1457, 4294901760
        %1459 = vmatpush.msra.mxu0 %v1458
        %v1460 = vand.u32 %v394, 4294901760
        %v1461 = vsub.f32 %v394, %v1460
        %v1462 = vand.u32 %v1461, 4294901760
        %1463 = vmatpush.msra.mxu0 %v1462
        %v1464 = vand.u32 %v392, 4294901760
        %v1465 = vsub.f32 %v392, %v1464
        %v1466 = vand.u32 %v1465, 4294901760
        %1467 = vmatpush.msra.mxu0 %v1466
        %v1468 = vand.u32 %v390, 4294901760
        %v1469 = vsub.f32 %v390, %v1468
        %v1470 = vand.u32 %v1469, 4294901760
        %1471 = vmatpush.msra.mxu0 %v1470
        %v1472 = vand.u32 %v388, 4294901760
        %v1473 = vsub.f32 %v388, %v1472
        %v1474 = vand.u32 %v1473, 4294901760
        %1475 = vmatpush.msra.mxu0 %v1474
        %v1476 = vand.u32 %v386, 4294901760
        %v1477 = vsub.f32 %v386, %v1476
        %v1478 = vand.u32 %v1477, 4294901760
        %1479 = vmatpush.msra.mxu0 %v1478
        %v1480 = vand.u32 %v384, 4294901760
        %v1481 = vsub.f32 %v384, %v1480
        %v1482 = vand.u32 %v1481, 4294901760
        %1483 = vmatpush.msra.mxu0 %v1482
        %v1484 = vand.u32 %v382, 4294901760
        %v1485 = vsub.f32 %v382, %v1484
        %v1486 = vand.u32 %v1485, 4294901760
        %1487 = vmatpush.msra.mxu0 %v1486
        %v1488 = vand.u32 %v380, 4294901760
        %v1489 = vsub.f32 %v380, %v1488
        %v1490 = vand.u32 %v1489, 4294901760
        %1491 = vmatpush.msra.mxu0 %v1490
        %v1492 = vand.u32 %v378, 4294901760
        %v1493 = vsub.f32 %v378, %v1492
        %v1494 = vand.u32 %v1493, 4294901760
        %1495 = vmatpush.msra.mxu0 %v1494
        %v1496 = vand.u32 %v376, 4294901760
        %v1497 = vsub.f32 %v376, %v1496
        %v1498 = vand.u32 %v1497, 4294901760
        %1499 = vmatpush.msra.mxu0 %v1498
        %v1500 = vand.u32 %v374, 4294901760
        %v1501 = vsub.f32 %v374, %v1500
        %v1502 = vand.u32 %v1501, 4294901760
        %1503 = vmatpush.msra.mxu0 %v1502
        %v1504 = vand.u32 %v304, 4294901760
        %1505 = vmatmul.f32.gmra.mxu0 %v1504
        %v1506 = vpop.f32.mrf.mxu0
        %v1507 = vadd.f32 %v1432, %v1506
        %v1508 = vand.u32 %v308, 4294901760
        %1509 = vmatmul.f32.gmra.mxu0 %v1508
        %v1510 = vpop.f32.mrf.mxu0
        %v1511 = vadd.f32 %v1438, %v1510
        %1512 = vdwg.mxu0
        %v1513 = vand.u32 %v404, 4294901760
        %1514 = vmatpush.msra.mxu0 %v1513
        %v1515 = vand.u32 %v402, 4294901760
        %1516 = vmatpush.msra.mxu0 %v1515
        %v1517 = vand.u32 %v400, 4294901760
        %1518 = vmatpush.msra.mxu0 %v1517
        %v1519 = vand.u32 %v398, 4294901760
        %1520 = vmatpush.msra.mxu0 %v1519
        %v1521 = vand.u32 %v396, 4294901760
        %1522 = vmatpush.msra.mxu0 %v1521
        %v1523 = vand.u32 %v394, 4294901760
        %1524 = vmatpush.msra.mxu0 %v1523
        %v1525 = vand.u32 %v392, 4294901760
        %1526 = vmatpush.msra.mxu0 %v1525
        %v1527 = vand.u32 %v390, 4294901760
        %1528 = vmatpush.msra.mxu0 %v1527
        %v1529 = vand.u32 %v388, 4294901760
        %1530 = vmatpush.msra.mxu0 %v1529
        %v1531 = vand.u32 %v386, 4294901760
        %1532 = vmatpush.msra.mxu0 %v1531
        %v1533 = vand.u32 %v384, 4294901760
        %1534 = vmatpush.msra.mxu0 %v1533
        %v1535 = vand.u32 %v382, 4294901760
        %1536 = vmatpush.msra.mxu0 %v1535
        %v1537 = vand.u32 %v380, 4294901760
        %1538 = vmatpush.msra.mxu0 %v1537
        %v1539 = vand.u32 %v378, 4294901760
        %1540 = vmatpush.msra.mxu0 %v1539
        %v1541 = vand.u32 %v376, 4294901760
        %1542 = vmatpush.msra.mxu0 %v1541
        %v1543 = vand.u32 %v374, 4294901760
        %1544 = vmatpush.msra.mxu0 %v1543
        %v1545 = vand.u32 %v304, 4294901760
        %1546 = vmatmul.f32.gmra.mxu0 %v1545
        %v1547 = vpop.f32.mrf.mxu0
        %v1548 = vadd.f32 %v1507, %v1547
        %v1549 = vand.u32 %v308, 4294901760
        %1550 = vmatmul.f32.gmra.mxu0 %v1549
        %v1551 = vpop.f32.mrf.mxu0
        %v1552 = vadd.f32 %v1511, %v1551
        %1553 = vdwg.mxu0
        %v1554 = vand.u32 %v436, 4294901760
        %1555 = vmatpush.msra.mxu0 %v1554
        %v1556 = vand.u32 %v434, 4294901760
        %1557 = vmatpush.msra.mxu0 %v1556
        %v1558 = vand.u32 %v432, 4294901760
        %1559 = vmatpush.msra.mxu0 %v1558
        %v1560 = vand.u32 %v430, 4294901760
        %1561 = vmatpush.msra.mxu0 %v1560
        %v1562 = vand.u32 %v428, 4294901760
        %1563 = vmatpush.msra.mxu0 %v1562
        %v1564 = vand.u32 %v426, 4294901760
        %1565 = vmatpush.msra.mxu0 %v1564
        %v1566 = vand.u32 %v424, 4294901760
        %1567 = vmatpush.msra.mxu0 %v1566
        %v1568 = vand.u32 %v422, 4294901760
        %1569 = vmatpush.msra.mxu0 %v1568
        %v1570 = vand.u32 %v420, 4294901760
        %1571 = vmatpush.msra.mxu0 %v1570
        %v1572 = vand.u32 %v418, 4294901760
        %1573 = vmatpush.msra.mxu0 %v1572
        %v1574 = vand.u32 %v416, 4294901760
        %1575 = vmatpush.msra.mxu0 %v1574
        %v1576 = vand.u32 %v414, 4294901760
        %1577 = vmatpush.msra.mxu0 %v1576
        %v1578 = vand.u32 %v412, 4294901760
        %1579 = vmatpush.msra.mxu0 %v1578
        %v1580 = vand.u32 %v410, 4294901760
        %1581 = vmatpush.msra.mxu0 %v1580
        %v1582 = vand.u32 %v408, 4294901760
        %1583 = vmatpush.msra.mxu0 %v1582
        %v1584 = vand.u32 %v406, 4294901760
        %1585 = vmatpush.msra.mxu0 %v1584
        %v1586 = vand.u32 %v305, 4294901760
        %v1587 = vsub.f32 %v305, %v1586
        %v1588 = vand.u32 %v1587, 4294901760
        %v1589 = vsub.f32 %v1587, %v1588
        %v1590 = vand.u32 %v1589, 4294901760
        %1591 = vmatmul.f32.gmra.mxu0 %v1590
        %v1592 = vpop.f32.mrf.mxu0
        %v1593 = vadd.f32 %v1548, %v1592
        %v1594 = vand.u32 %v309, 4294901760
        %v1595 = vsub.f32 %v309, %v1594
        %v1596 = vand.u32 %v1595, 4294901760
        %v1597 = vsub.f32 %v1595, %v1596
        %v1598 = vand.u32 %v1597, 4294901760
        %1599 = vmatmul.f32.gmra.mxu0 %v1598
        %v1600 = vpop.f32.mrf.mxu0
        %v1601 = vadd.f32 %v1552, %v1600
        %1602 = vdwg.mxu0
        %v1603 = vand.u32 %v436, 4294901760
        %v1604 = vsub.f32 %v436, %v1603
        %v1605 = vand.u32 %v1604, 4294901760
        %v1606 = vsub.f32 %v1604, %v1605
        %v1607 = vand.u32 %v1606, 4294901760
        %1608 = vmatpush.msra.mxu0 %v1607
        %v1609 = vand.u32 %v434, 4294901760
        %v1610 = vsub.f32 %v434, %v1609
        %v1611 = vand.u32 %v1610, 4294901760
        %v1612 = vsub.f32 %v1610, %v1611
        %v1613 = vand.u32 %v1612, 4294901760
        %1614 = vmatpush.msra.mxu0 %v1613
        %v1615 = vand.u32 %v432, 4294901760
        %v1616 = vsub.f32 %v432, %v1615
        %v1617 = vand.u32 %v1616, 4294901760
        %v1618 = vsub.f32 %v1616, %v1617
        %v1619 = vand.u32 %v1618, 4294901760
        %1620 = vmatpush.msra.mxu0 %v1619
        %v1621 = vand.u32 %v430, 4294901760
        %v1622 = vsub.f32 %v430, %v1621
        %v1623 = vand.u32 %v1622, 4294901760
        %v1624 = vsub.f32 %v1622, %v1623
        %v1625 = vand.u32 %v1624, 4294901760
        %1626 = vmatpush.msra.mxu0 %v1625
        %v1627 = vand.u32 %v428, 4294901760
        %v1628 = vsub.f32 %v428, %v1627
        %v1629 = vand.u32 %v1628, 4294901760
        %v1630 = vsub.f32 %v1628, %v1629
        %v1631 = vand.u32 %v1630, 4294901760
        %1632 = vmatpush.msra.mxu0 %v1631
        %v1633 = vand.u32 %v426, 4294901760
        %v1634 = vsub.f32 %v426, %v1633
        %v1635 = vand.u32 %v1634, 4294901760
        %v1636 = vsub.f32 %v1634, %v1635
        %v1637 = vand.u32 %v1636, 4294901760
        %1638 = vmatpush.msra.mxu0 %v1637
        %v1639 = vand.u32 %v424, 4294901760
        %v1640 = vsub.f32 %v424, %v1639
        %v1641 = vand.u32 %v1640, 4294901760
        %v1642 = vsub.f32 %v1640, %v1641
        %v1643 = vand.u32 %v1642, 4294901760
        %1644 = vmatpush.msra.mxu0 %v1643
        %v1645 = vand.u32 %v422, 4294901760
        %v1646 = vsub.f32 %v422, %v1645
        %v1647 = vand.u32 %v1646, 4294901760
        %v1648 = vsub.f32 %v1646, %v1647
        %v1649 = vand.u32 %v1648, 4294901760
        %1650 = vmatpush.msra.mxu0 %v1649
        %v1651 = vand.u32 %v420, 4294901760
        %v1652 = vsub.f32 %v420, %v1651
        %v1653 = vand.u32 %v1652, 4294901760
        %v1654 = vsub.f32 %v1652, %v1653
        %v1655 = vand.u32 %v1654, 4294901760
        %1656 = vmatpush.msra.mxu0 %v1655
        %v1657 = vand.u32 %v418, 4294901760
        %v1658 = vsub.f32 %v418, %v1657
        %v1659 = vand.u32 %v1658, 4294901760
        %v1660 = vsub.f32 %v1658, %v1659
        %v1661 = vand.u32 %v1660, 4294901760
        %1662 = vmatpush.msra.mxu0 %v1661
        %v1663 = vand.u32 %v416, 4294901760
        %v1664 = vsub.f32 %v416, %v1663
        %v1665 = vand.u32 %v1664, 4294901760
        %v1666 = vsub.f32 %v1664, %v1665
        %v1667 = vand.u32 %v1666, 4294901760
        %1668 = vmatpush.msra.mxu0 %v1667
        %v1669 = vand.u32 %v414, 4294901760
        %v1670 = vsub.f32 %v414, %v1669
        %v1671 = vand.u32 %v1670, 4294901760
        %v1672 = vsub.f32 %v1670, %v1671
        %v1673 = vand.u32 %v1672, 4294901760
        %1674 = vmatpush.msra.mxu0 %v1673
        %v1675 = vand.u32 %v412, 4294901760
        %v1676 = vsub.f32 %v412, %v1675
        %v1677 = vand.u32 %v1676, 4294901760
        %v1678 = vsub.f32 %v1676, %v1677
        %v1679 = vand.u32 %v1678, 4294901760
        %1680 = vmatpush.msra.mxu0 %v1679
        %v1681 = vand.u32 %v410, 4294901760
        %v1682 = vsub.f32 %v410, %v1681
        %v1683 = vand.u32 %v1682, 4294901760
        %v1684 = vsub.f32 %v1682, %v1683
        %v1685 = vand.u32 %v1684, 4294901760
        %1686 = vmatpush.msra.mxu0 %v1685
        %v1687 = vand.u32 %v408, 4294901760
        %v1688 = vsub.f32 %v408, %v1687
        %v1689 = vand.u32 %v1688, 4294901760
        %v1690 = vsub.f32 %v1688, %v1689
        %v1691 = vand.u32 %v1690, 4294901760
        %1692 = vmatpush.msra.mxu0 %v1691
        %v1693 = vand.u32 %v406, 4294901760
        %v1694 = vsub.f32 %v406, %v1693
        %v1695 = vand.u32 %v1694, 4294901760
        %v1696 = vsub.f32 %v1694, %v1695
        %v1697 = vand.u32 %v1696, 4294901760
        %1698 = vmatpush.msra.mxu0 %v1697
        %v1699 = vand.u32 %v305, 4294901760
        %1700 = vmatmul.f32.gmra.mxu0 %v1699
        %v1701 = vpop.f32.mrf.mxu0
        %v1702 = vadd.f32 %v1593, %v1701
        %v1703 = vand.u32 %v309, 4294901760
        %1704 = vmatmul.f32.gmra.mxu0 %v1703
        %v1705 = vpop.f32.mrf.mxu0
        %v1706 = vadd.f32 %v1601, %v1705
        %1707 = vdwg.mxu0
        %v1708 = vand.u32 %v436, 4294901760
        %v1709 = vsub.f32 %v436, %v1708
        %1710 = vmatpush.msra.mxu0 %v1709
        %v1711 = vand.u32 %v434, 4294901760
        %v1712 = vsub.f32 %v434, %v1711
        %1713 = vmatpush.msra.mxu0 %v1712
        %v1714 = vand.u32 %v432, 4294901760
        %v1715 = vsub.f32 %v432, %v1714
        %1716 = vmatpush.msra.mxu0 %v1715
        %v1717 = vand.u32 %v430, 4294901760
        %v1718 = vsub.f32 %v430, %v1717
        %1719 = vmatpush.msra.mxu0 %v1718
        %v1720 = vand.u32 %v428, 4294901760
        %v1721 = vsub.f32 %v428, %v1720
        %1722 = vmatpush.msra.mxu0 %v1721
        %v1723 = vand.u32 %v426, 4294901760
        %v1724 = vsub.f32 %v426, %v1723
        %1725 = vmatpush.msra.mxu0 %v1724
        %v1726 = vand.u32 %v424, 4294901760
        %v1727 = vsub.f32 %v424, %v1726
        %1728 = vmatpush.msra.mxu0 %v1727
        %v1729 = vand.u32 %v422, 4294901760
        %v1730 = vsub.f32 %v422, %v1729
        %1731 = vmatpush.msra.mxu0 %v1730
        %v1732 = vand.u32 %v420, 4294901760
        %v1733 = vsub.f32 %v420, %v1732
        %1734 = vmatpush.msra.mxu0 %v1733
        %v1735 = vand.u32 %v418, 4294901760
        %v1736 = vsub.f32 %v418, %v1735
        %1737 = vmatpush.msra.mxu0 %v1736
        %v1738 = vand.u32 %v416, 4294901760
        %v1739 = vsub.f32 %v416, %v1738
        %1740 = vmatpush.msra.mxu0 %v1739
        %v1741 = vand.u32 %v414, 4294901760
        %v1742 = vsub.f32 %v414, %v1741
        %1743 = vmatpush.msra.mxu0 %v1742
        %v1744 = vand.u32 %v412, 4294901760
        %v1745 = vsub.f32 %v412, %v1744
        %1746 = vmatpush.msra.mxu0 %v1745
        %v1747 = vand.u32 %v410, 4294901760
        %v1748 = vsub.f32 %v410, %v1747
        %1749 = vmatpush.msra.mxu0 %v1748
        %v1750 = vand.u32 %v408, 4294901760
        %v1751 = vsub.f32 %v408, %v1750
        %1752 = vmatpush.msra.mxu0 %v1751
        %v1753 = vand.u32 %v406, 4294901760
        %v1754 = vsub.f32 %v406, %v1753
        %1755 = vmatpush.msra.mxu0 %v1754
        %v1756 = vand.u32 %v305, 4294901760
        %v1757 = vsub.f32 %v305, %v1756
        %1758 = vmatmul.f32.gmra.mxu0 %v1757
        %v1759 = vpop.f32.mrf.mxu0
        %v1760 = vadd.f32 %v1702, %v1759
        %v1761 = vand.u32 %v309, 4294901760
        %v1762 = vsub.f32 %v309, %v1761
        %1763 = vmatmul.f32.gmra.mxu0 %v1762
        %v1764 = vpop.f32.mrf.mxu0
        %v1765 = vadd.f32 %v1706, %v1764
        %1766 = vdwg.mxu0
        %v1767 = vand.u32 %v436, 4294901760
        %1768 = vmatpush.msra.mxu0 %v1767
        %v1769 = vand.u32 %v434, 4294901760
        %1770 = vmatpush.msra.mxu0 %v1769
        %v1771 = vand.u32 %v432, 4294901760
        %1772 = vmatpush.msra.mxu0 %v1771
        %v1773 = vand.u32 %v430, 4294901760
        %1774 = vmatpush.msra.mxu0 %v1773
        %v1775 = vand.u32 %v428, 4294901760
        %1776 = vmatpush.msra.mxu0 %v1775
        %v1777 = vand.u32 %v426, 4294901760
        %1778 = vmatpush.msra.mxu0 %v1777
        %v1779 = vand.u32 %v424, 4294901760
        %1780 = vmatpush.msra.mxu0 %v1779
        %v1781 = vand.u32 %v422, 4294901760
        %1782 = vmatpush.msra.mxu0 %v1781
        %v1783 = vand.u32 %v420, 4294901760
        %1784 = vmatpush.msra.mxu0 %v1783
        %v1785 = vand.u32 %v418, 4294901760
        %1786 = vmatpush.msra.mxu0 %v1785
        %v1787 = vand.u32 %v416, 4294901760
        %1788 = vmatpush.msra.mxu0 %v1787
        %v1789 = vand.u32 %v414, 4294901760
        %1790 = vmatpush.msra.mxu0 %v1789
        %v1791 = vand.u32 %v412, 4294901760
        %1792 = vmatpush.msra.mxu0 %v1791
        %v1793 = vand.u32 %v410, 4294901760
        %1794 = vmatpush.msra.mxu0 %v1793
        %v1795 = vand.u32 %v408, 4294901760
        %1796 = vmatpush.msra.mxu0 %v1795
        %v1797 = vand.u32 %v406, 4294901760
        %1798 = vmatpush.msra.mxu0 %v1797
        %v1799 = vand.u32 %v305, 4294901760
        %v1800 = vsub.f32 %v305, %v1799
        %v1801 = vand.u32 %v1800, 4294901760
        %1802 = vmatmul.f32.gmra.mxu0 %v1801
        %v1803 = vpop.f32.mrf.mxu0
        %v1804 = vadd.f32 %v1760, %v1803
        %v1805 = vand.u32 %v309, 4294901760
        %v1806 = vsub.f32 %v309, %v1805
        %v1807 = vand.u32 %v1806, 4294901760
        %1808 = vmatmul.f32.gmra.mxu0 %v1807
        %v1809 = vpop.f32.mrf.mxu0
        %v1810 = vadd.f32 %v1765, %v1809
        %1811 = vdwg.mxu0
        %v1812 = vand.u32 %v436, 4294901760
        %v1813 = vsub.f32 %v436, %v1812
        %v1814 = vand.u32 %v1813, 4294901760
        %1815 = vmatpush.msra.mxu0 %v1814
        %v1816 = vand.u32 %v434, 4294901760
        %v1817 = vsub.f32 %v434, %v1816
        %v1818 = vand.u32 %v1817, 4294901760
        %1819 = vmatpush.msra.mxu0 %v1818
        %v1820 = vand.u32 %v432, 4294901760
        %v1821 = vsub.f32 %v432, %v1820
        %v1822 = vand.u32 %v1821, 4294901760
        %1823 = vmatpush.msra.mxu0 %v1822
        %v1824 = vand.u32 %v430, 4294901760
        %v1825 = vsub.f32 %v430, %v1824
        %v1826 = vand.u32 %v1825, 4294901760
        %1827 = vmatpush.msra.mxu0 %v1826
        %v1828 = vand.u32 %v428, 4294901760
        %v1829 = vsub.f32 %v428, %v1828
        %v1830 = vand.u32 %v1829, 4294901760
        %1831 = vmatpush.msra.mxu0 %v1830
        %v1832 = vand.u32 %v426, 4294901760
        %v1833 = vsub.f32 %v426, %v1832
        %v1834 = vand.u32 %v1833, 4294901760
        %1835 = vmatpush.msra.mxu0 %v1834
        %v1836 = vand.u32 %v424, 4294901760
        %v1837 = vsub.f32 %v424, %v1836
        %v1838 = vand.u32 %v1837, 4294901760
        %1839 = vmatpush.msra.mxu0 %v1838
        %v1840 = vand.u32 %v422, 4294901760
        %v1841 = vsub.f32 %v422, %v1840
        %v1842 = vand.u32 %v1841, 4294901760
        %1843 = vmatpush.msra.mxu0 %v1842
        %v1844 = vand.u32 %v420, 4294901760
        %v1845 = vsub.f32 %v420, %v1844
        %v1846 = vand.u32 %v1845, 4294901760
        %1847 = vmatpush.msra.mxu0 %v1846
        %v1848 = vand.u32 %v418, 4294901760
        %v1849 = vsub.f32 %v418, %v1848
        %v1850 = vand.u32 %v1849, 4294901760
        %1851 = vmatpush.msra.mxu0 %v1850
        %v1852 = vand.u32 %v416, 4294901760
        %v1853 = vsub.f32 %v416, %v1852
        %v1854 = vand.u32 %v1853, 4294901760
        %1855 = vmatpush.msra.mxu0 %v1854
        %v1856 = vand.u32 %v414, 4294901760
        %v1857 = vsub.f32 %v414, %v1856
        %v1858 = vand.u32 %v1857, 4294901760
        %1859 = vmatpush.msra.mxu0 %v1858
        %v1860 = vand.u32 %v412, 4294901760
        %v1861 = vsub.f32 %v412, %v1860
        %v1862 = vand.u32 %v1861, 4294901760
        %1863 = vmatpush.msra.mxu0 %v1862
        %v1864 = vand.u32 %v410, 4294901760
        %v1865 = vsub.f32 %v410, %v1864
        %v1866 = vand.u32 %v1865, 4294901760
        %1867 = vmatpush.msra.mxu0 %v1866
        %v1868 = vand.u32 %v408, 4294901760
        %v1869 = vsub.f32 %v408, %v1868
        %v1870 = vand.u32 %v1869, 4294901760
        %1871 = vmatpush.msra.mxu0 %v1870
        %v1872 = vand.u32 %v406, 4294901760
        %v1873 = vsub.f32 %v406, %v1872
        %v1874 = vand.u32 %v1873, 4294901760
        %1875 = vmatpush.msra.mxu0 %v1874
        %v1876 = vand.u32 %v305, 4294901760
        %1877 = vmatmul.f32.gmra.mxu0 %v1876
        %v1878 = vpop.f32.mrf.mxu0
        %v1879 = vadd.f32 %v1804, %v1878
        %v1880 = vand.u32 %v309, 4294901760
        %1881 = vmatmul.f32.gmra.mxu0 %v1880
        %v1882 = vpop.f32.mrf.mxu0
        %v1883 = vadd.f32 %v1810, %v1882
        %1884 = vdwg.mxu0
        %v1885 = vand.u32 %v436, 4294901760
        %1886 = vmatpush.msra.mxu0 %v1885
        %v1887 = vand.u32 %v434, 4294901760
        %1888 = vmatpush.msra.mxu0 %v1887
        %v1889 = vand.u32 %v432, 4294901760
        %1890 = vmatpush.msra.mxu0 %v1889
        %v1891 = vand.u32 %v430, 4294901760
        %1892 = vmatpush.msra.mxu0 %v1891
        %v1893 = vand.u32 %v428, 4294901760
        %1894 = vmatpush.msra.mxu0 %v1893
        %v1895 = vand.u32 %v426, 4294901760
        %1896 = vmatpush.msra.mxu0 %v1895
        %v1897 = vand.u32 %v424, 4294901760
        %1898 = vmatpush.msra.mxu0 %v1897
        %v1899 = vand.u32 %v422, 4294901760
        %1900 = vmatpush.msra.mxu0 %v1899
        %v1901 = vand.u32 %v420, 4294901760
        %1902 = vmatpush.msra.mxu0 %v1901
        %v1903 = vand.u32 %v418, 4294901760
        %1904 = vmatpush.msra.mxu0 %v1903
        %v1905 = vand.u32 %v416, 4294901760
        %1906 = vmatpush.msra.mxu0 %v1905
        %v1907 = vand.u32 %v414, 4294901760
        %1908 = vmatpush.msra.mxu0 %v1907
        %v1909 = vand.u32 %v412, 4294901760
        %1910 = vmatpush.msra.mxu0 %v1909
        %v1911 = vand.u32 %v410, 4294901760
        %1912 = vmatpush.msra.mxu0 %v1911
        %v1913 = vand.u32 %v408, 4294901760
        %1914 = vmatpush.msra.mxu0 %v1913
        %v1915 = vand.u32 %v406, 4294901760
        %1916 = vmatpush.msra.mxu0 %v1915
        %v1917 = vand.u32 %v305, 4294901760
        %1918 = vmatmul.f32.gmra.mxu0 %v1917
        %v1919 = vpop.f32.mrf.mxu0
        %v1920 = vadd.f32 %v1879, %v1919
        %v1921 = vand.u32 %v309, 4294901760
        %1922 = vmatmul.f32.gmra.mxu0 %v1921
        %v1923 = vpop.f32.mrf.mxu0
        %v1924 = vadd.f32 %v1883, %v1923
        %1925 = vdwg.mxu0
        %v1926 = vand.u32 %v341, 4294901760
        %1927 = vmatpush.msra.mxu0 %v1926
        %v1928 = vand.u32 %v339, 4294901760
        %1929 = vmatpush.msra.mxu0 %v1928
        %v1930 = vand.u32 %v337, 4294901760
        %1931 = vmatpush.msra.mxu0 %v1930
        %v1932 = vand.u32 %v335, 4294901760
        %1933 = vmatpush.msra.mxu0 %v1932
        %v1934 = vand.u32 %v333, 4294901760
        %1935 = vmatpush.msra.mxu0 %v1934
        %v1936 = vand.u32 %v331, 4294901760
        %1937 = vmatpush.msra.mxu0 %v1936
        %v1938 = vand.u32 %v329, 4294901760
        %1939 = vmatpush.msra.mxu0 %v1938
        %v1940 = vand.u32 %v327, 4294901760
        %1941 = vmatpush.msra.mxu0 %v1940
        %v1942 = vand.u32 %v325, 4294901760
        %1943 = vmatpush.msra.mxu0 %v1942
        %v1944 = vand.u32 %v323, 4294901760
        %1945 = vmatpush.msra.mxu0 %v1944
        %v1946 = vand.u32 %v321, 4294901760
        %1947 = vmatpush.msra.mxu0 %v1946
        %v1948 = vand.u32 %v319, 4294901760
        %1949 = vmatpush.msra.mxu0 %v1948
        %v1950 = vand.u32 %v317, 4294901760
        %1951 = vmatpush.msra.mxu0 %v1950
        %v1952 = vand.u32 %v315, 4294901760
        %1953 = vmatpush.msra.mxu0 %v1952
        %v1954 = vand.u32 %v313, 4294901760
        %1955 = vmatpush.msra.mxu0 %v1954
        %v1956 = vand.u32 %v311, 4294901760
        %1957 = vmatpush.msra.mxu0 %v1956
        %v1958 = vand.u32 %v302, 4294901760
        %v1959 = vsub.f32 %v302, %v1958
        %v1960 = vand.u32 %v1959, 4294901760
        %v1961 = vsub.f32 %v1959, %v1960
        %v1962 = vand.u32 %v1961, 4294901760
        %1963 = vmatmul.f32.gmra.mxu0 %v1962
        %v1964 = vpop.f32.mrf.mxu0
        %v1965 = vadd.f32 0.0, %v1964
        %v1966 = vand.u32 %v306, 4294901760
        %v1967 = vsub.f32 %v306, %v1966
        %v1968 = vand.u32 %v1967, 4294901760
        %v1969 = vsub.f32 %v1967, %v1968
        %v1970 = vand.u32 %v1969, 4294901760
        %1971 = vmatmul.f32.gmra.mxu0 %v1970
        %v1972 = vpop.f32.mrf.mxu0
        %v1973 = vadd.f32 0.0, %v1972
        %1974 = vdwg.mxu0
        %v1975 = vand.u32 %v341, 4294901760
        %v1976 = vsub.f32 %v341, %v1975
        %v1977 = vand.u32 %v1976, 4294901760
        %v1978 = vsub.f32 %v1976, %v1977
        %v1979 = vand.u32 %v1978, 4294901760
        %1980 = vmatpush.msra.mxu0 %v1979
        %v1981 = vand.u32 %v339, 4294901760
        %v1982 = vsub.f32 %v339, %v1981
        %v1983 = vand.u32 %v1982, 4294901760
        %v1984 = vsub.f32 %v1982, %v1983
        %v1985 = vand.u32 %v1984, 4294901760
        %1986 = vmatpush.msra.mxu0 %v1985
        %v1987 = vand.u32 %v337, 4294901760
        %v1988 = vsub.f32 %v337, %v1987
        %v1989 = vand.u32 %v1988, 4294901760
        %v1990 = vsub.f32 %v1988, %v1989
        %v1991 = vand.u32 %v1990, 4294901760
        %1992 = vmatpush.msra.mxu0 %v1991
        %v1993 = vand.u32 %v335, 4294901760
        %v1994 = vsub.f32 %v335, %v1993
        %v1995 = vand.u32 %v1994, 4294901760
        %v1996 = vsub.f32 %v1994, %v1995
        %v1997 = vand.u32 %v1996, 4294901760
        %1998 = vmatpush.msra.mxu0 %v1997
        %v1999 = vand.u32 %v333, 4294901760
        %v2000 = vsub.f32 %v333, %v1999
        %v2001 = vand.u32 %v2000, 4294901760
        %v2002 = vsub.f32 %v2000, %v2001
        %v2003 = vand.u32 %v2002, 4294901760
        %2004 = vmatpush.msra.mxu0 %v2003
        %v2005 = vand.u32 %v331, 4294901760
        %v2006 = vsub.f32 %v331, %v2005
        %v2007 = vand.u32 %v2006, 4294901760
        %v2008 = vsub.f32 %v2006, %v2007
        %v2009 = vand.u32 %v2008, 4294901760
        %2010 = vmatpush.msra.mxu0 %v2009
        %v2011 = vand.u32 %v329, 4294901760
        %v2012 = vsub.f32 %v329, %v2011
        %v2013 = vand.u32 %v2012, 4294901760
        %v2014 = vsub.f32 %v2012, %v2013
        %v2015 = vand.u32 %v2014, 4294901760
        %2016 = vmatpush.msra.mxu0 %v2015
        %v2017 = vand.u32 %v327, 4294901760
        %v2018 = vsub.f32 %v327, %v2017
        %v2019 = vand.u32 %v2018, 4294901760
        %v2020 = vsub.f32 %v2018, %v2019
        %v2021 = vand.u32 %v2020, 4294901760
        %2022 = vmatpush.msra.mxu0 %v2021
        %v2023 = vand.u32 %v325, 4294901760
        %v2024 = vsub.f32 %v325, %v2023
        %v2025 = vand.u32 %v2024, 4294901760
        %v2026 = vsub.f32 %v2024, %v2025
        %v2027 = vand.u32 %v2026, 4294901760
        %2028 = vmatpush.msra.mxu0 %v2027
        %v2029 = vand.u32 %v323, 4294901760
        %v2030 = vsub.f32 %v323, %v2029
        %v2031 = vand.u32 %v2030, 4294901760
        %v2032 = vsub.f32 %v2030, %v2031
        %v2033 = vand.u32 %v2032, 4294901760
        %2034 = vmatpush.msra.mxu0 %v2033
        %v2035 = vand.u32 %v321, 4294901760
        %v2036 = vsub.f32 %v321, %v2035
        %v2037 = vand.u32 %v2036, 4294901760
        %v2038 = vsub.f32 %v2036, %v2037
        %v2039 = vand.u32 %v2038, 4294901760
        %2040 = vmatpush.msra.mxu0 %v2039
        %v2041 = vand.u32 %v319, 4294901760
        %v2042 = vsub.f32 %v319, %v2041
        %v2043 = vand.u32 %v2042, 4294901760
        %v2044 = vsub.f32 %v2042, %v2043
        %v2045 = vand.u32 %v2044, 4294901760
        %2046 = vmatpush.msra.mxu0 %v2045
        %v2047 = vand.u32 %v317, 4294901760
        %v2048 = vsub.f32 %v317, %v2047
        %v2049 = vand.u32 %v2048, 4294901760
        %v2050 = vsub.f32 %v2048, %v2049
        %v2051 = vand.u32 %v2050, 4294901760
        %2052 = vmatpush.msra.mxu0 %v2051
        %v2053 = vand.u32 %v315, 4294901760
        %v2054 = vsub.f32 %v315, %v2053
        %v2055 = vand.u32 %v2054, 4294901760
        %v2056 = vsub.f32 %v2054, %v2055
        %v2057 = vand.u32 %v2056, 4294901760
        %2058 = vmatpush.msra.mxu0 %v2057
        %v2059 = vand.u32 %v313, 4294901760
        %v2060 = vsub.f32 %v313, %v2059
        %v2061 = vand.u32 %v2060, 4294901760
        %v2062 = vsub.f32 %v2060, %v2061
        %v2063 = vand.u32 %v2062, 4294901760
        %2064 = vmatpush.msra.mxu0 %v2063
        %v2065 = vand.u32 %v311, 4294901760
        %v2066 = vsub.f32 %v311, %v2065
        %v2067 = vand.u32 %v2066, 4294901760
        %v2068 = vsub.f32 %v2066, %v2067
        %v2069 = vand.u32 %v2068, 4294901760
        %2070 = vmatpush.msra.mxu0 %v2069
        %v2071 = vand.u32 %v302, 4294901760
        %2072 = vmatmul.f32.gmra.mxu0 %v2071
        %v2073 = vpop.f32.mrf.mxu0
        %v2074 = vadd.f32 %v1965, %v2073
        %v2075 = vand.u32 %v306, 4294901760
        %2076 = vmatmul.f32.gmra.mxu0 %v2075
        %v2077 = vpop.f32.mrf.mxu0
        %v2078 = vadd.f32 %v1973, %v2077
        %2079 = vdwg.mxu0
        %v2080 = vand.u32 %v341, 4294901760
        %v2081 = vsub.f32 %v341, %v2080
        %2082 = vmatpush.msra.mxu0 %v2081
        %v2083 = vand.u32 %v339, 4294901760
        %v2084 = vsub.f32 %v339, %v2083
        %2085 = vmatpush.msra.mxu0 %v2084
        %v2086 = vand.u32 %v337, 4294901760
        %v2087 = vsub.f32 %v337, %v2086
        %2088 = vmatpush.msra.mxu0 %v2087
        %v2089 = vand.u32 %v335, 4294901760
        %v2090 = vsub.f32 %v335, %v2089
        %2091 = vmatpush.msra.mxu0 %v2090
        %v2092 = vand.u32 %v333, 4294901760
        %v2093 = vsub.f32 %v333, %v2092
        %2094 = vmatpush.msra.mxu0 %v2093
        %v2095 = vand.u32 %v331, 4294901760
        %v2096 = vsub.f32 %v331, %v2095
        %2097 = vmatpush.msra.mxu0 %v2096
        %v2098 = vand.u32 %v329, 4294901760
        %v2099 = vsub.f32 %v329, %v2098
        %2100 = vmatpush.msra.mxu0 %v2099
        %v2101 = vand.u32 %v327, 4294901760
        %v2102 = vsub.f32 %v327, %v2101
        %2103 = vmatpush.msra.mxu0 %v2102
        %v2104 = vand.u32 %v325, 4294901760
        %v2105 = vsub.f32 %v325, %v2104
        %2106 = vmatpush.msra.mxu0 %v2105
        %v2107 = vand.u32 %v323, 4294901760
        %v2108 = vsub.f32 %v323, %v2107
        %2109 = vmatpush.msra.mxu0 %v2108
        %v2110 = vand.u32 %v321, 4294901760
        %v2111 = vsub.f32 %v321, %v2110
        %2112 = vmatpush.msra.mxu0 %v2111
        %v2113 = vand.u32 %v319, 4294901760
        %v2114 = vsub.f32 %v319, %v2113
        %2115 = vmatpush.msra.mxu0 %v2114
        %v2116 = vand.u32 %v317, 4294901760
        %v2117 = vsub.f32 %v317, %v2116
        %2118 = vmatpush.msra.mxu0 %v2117
        %v2119 = vand.u32 %v315, 4294901760
        %v2120 = vsub.f32 %v315, %v2119
        %2121 = vmatpush.msra.mxu0 %v2120
        %v2122 = vand.u32 %v313, 4294901760
        %v2123 = vsub.f32 %v313, %v2122
        %2124 = vmatpush.msra.mxu0 %v2123
        %v2125 = vand.u32 %v311, 4294901760
        %v2126 = vsub.f32 %v311, %v2125
        %2127 = vmatpush.msra.mxu0 %v2126
        %v2128 = vand.u32 %v302, 4294901760
        %v2129 = vsub.f32 %v302, %v2128
        %2130 = vmatmul.f32.gmra.mxu0 %v2129
        %v2131 = vpop.f32.mrf.mxu0
        %v2132 = vadd.f32 %v2074, %v2131
        %v2133 = vand.u32 %v306, 4294901760
        %v2134 = vsub.f32 %v306, %v2133
        %2135 = vmatmul.f32.gmra.mxu0 %v2134
        %v2136 = vpop.f32.mrf.mxu0
        %v2137 = vadd.f32 %v2078, %v2136
        %2138 = vdwg.mxu0
        %v2139 = vand.u32 %v341, 4294901760
        %2140 = vmatpush.msra.mxu0 %v2139
        %v2141 = vand.u32 %v339, 4294901760
        %2142 = vmatpush.msra.mxu0 %v2141
        %v2143 = vand.u32 %v337, 4294901760
        %2144 = vmatpush.msra.mxu0 %v2143
        %v2145 = vand.u32 %v335, 4294901760
        %2146 = vmatpush.msra.mxu0 %v2145
        %v2147 = vand.u32 %v333, 4294901760
        %2148 = vmatpush.msra.mxu0 %v2147
        %v2149 = vand.u32 %v331, 4294901760
        %2150 = vmatpush.msra.mxu0 %v2149
        %v2151 = vand.u32 %v329, 4294901760
        %2152 = vmatpush.msra.mxu0 %v2151
        %v2153 = vand.u32 %v327, 4294901760
        %2154 = vmatpush.msra.mxu0 %v2153
        %v2155 = vand.u32 %v325, 4294901760
        %2156 = vmatpush.msra.mxu0 %v2155
        %v2157 = vand.u32 %v323, 4294901760
        %2158 = vmatpush.msra.mxu0 %v2157
        %v2159 = vand.u32 %v321, 4294901760
        %2160 = vmatpush.msra.mxu0 %v2159
        %v2161 = vand.u32 %v319, 4294901760
        %2162 = vmatpush.msra.mxu0 %v2161
        %v2163 = vand.u32 %v317, 4294901760
        %2164 = vmatpush.msra.mxu0 %v2163
        %v2165 = vand.u32 %v315, 4294901760
        %2166 = vmatpush.msra.mxu0 %v2165
        %v2167 = vand.u32 %v313, 4294901760
        %2168 = vmatpush.msra.mxu0 %v2167
        %v2169 = vand.u32 %v311, 4294901760
        %2170 = vmatpush.msra.mxu0 %v2169
        %v2171 = vand.u32 %v302, 4294901760
        %v2172 = vsub.f32 %v302, %v2171
        %v2173 = vand.u32 %v2172, 4294901760
        %2174 = vmatmul.f32.gmra.mxu0 %v2173
        %v2175 = vpop.f32.mrf.mxu0
        %v2176 = vadd.f32 %v2132, %v2175
        %v2177 = vand.u32 %v306, 4294901760
        %v2178 = vsub.f32 %v306, %v2177
        %v2179 = vand.u32 %v2178, 4294901760
        %2180 = vmatmul.f32.gmra.mxu0 %v2179
        %v2181 = vpop.f32.mrf.mxu0
        %v2182 = vadd.f32 %v2137, %v2181
        %2183 = vdwg.mxu0
        %v2184 = vand.u32 %v341, 4294901760
        %v2185 = vsub.f32 %v341, %v2184
        %v2186 = vand.u32 %v2185, 4294901760
        %2187 = vmatpush.msra.mxu0 %v2186
        %v2188 = vand.u32 %v339, 4294901760
        %v2189 = vsub.f32 %v339, %v2188
        %v2190 = vand.u32 %v2189, 4294901760
        %2191 = vmatpush.msra.mxu0 %v2190
        %v2192 = vand.u32 %v337, 4294901760
        %v2193 = vsub.f32 %v337, %v2192
        %v2194 = vand.u32 %v2193, 4294901760
        %2195 = vmatpush.msra.mxu0 %v2194
        %v2196 = vand.u32 %v335, 4294901760
        %v2197 = vsub.f32 %v335, %v2196
        %v2198 = vand.u32 %v2197, 4294901760
        %2199 = vmatpush.msra.mxu0 %v2198
        %v2200 = vand.u32 %v333, 4294901760
        %v2201 = vsub.f32 %v333, %v2200
        %v2202 = vand.u32 %v2201, 4294901760
        %2203 = vmatpush.msra.mxu0 %v2202
        %v2204 = vand.u32 %v331, 4294901760
        %v2205 = vsub.f32 %v331, %v2204
        %v2206 = vand.u32 %v2205, 4294901760
        %2207 = vmatpush.msra.mxu0 %v2206
        %v2208 = vand.u32 %v329, 4294901760
        %v2209 = vsub.f32 %v329, %v2208
        %v2210 = vand.u32 %v2209, 4294901760
        %2211 = vmatpush.msra.mxu0 %v2210
        %v2212 = vand.u32 %v327, 4294901760
        %v2213 = vsub.f32 %v327, %v2212
        %v2214 = vand.u32 %v2213, 4294901760
        %2215 = vmatpush.msra.mxu0 %v2214
        %v2216 = vand.u32 %v325, 4294901760
        %v2217 = vsub.f32 %v325, %v2216
        %v2218 = vand.u32 %v2217, 4294901760
        %2219 = vmatpush.msra.mxu0 %v2218
        %v2220 = vand.u32 %v323, 4294901760
        %v2221 = vsub.f32 %v323, %v2220
        %v2222 = vand.u32 %v2221, 4294901760
        %2223 = vmatpush.msra.mxu0 %v2222
        %v2224 = vand.u32 %v321, 4294901760
        %v2225 = vsub.f32 %v321, %v2224
        %v2226 = vand.u32 %v2225, 4294901760
        %2227 = vmatpush.msra.mxu0 %v2226
        %v2228 = vand.u32 %v319, 4294901760
        %v2229 = vsub.f32 %v319, %v2228
        %v2230 = vand.u32 %v2229, 4294901760
        %2231 = vmatpush.msra.mxu0 %v2230
        %v2232 = vand.u32 %v317, 4294901760
        %v2233 = vsub.f32 %v317, %v2232
        %v2234 = vand.u32 %v2233, 4294901760
        %2235 = vmatpush.msra.mxu0 %v2234
        %v2236 = vand.u32 %v315, 4294901760
        %v2237 = vsub.f32 %v315, %v2236
        %v2238 = vand.u32 %v2237, 4294901760
        %2239 = vmatpush.msra.mxu0 %v2238
        %v2240 = vand.u32 %v313, 4294901760
        %v2241 = vsub.f32 %v313, %v2240
        %v2242 = vand.u32 %v2241, 4294901760
        %2243 = vmatpush.msra.mxu0 %v2242
        %v2244 = vand.u32 %v311, 4294901760
        %v2245 = vsub.f32 %v311, %v2244
        %v2246 = vand.u32 %v2245, 4294901760
        %2247 = vmatpush.msra.mxu0 %v2246
        %v2248 = vand.u32 %v302, 4294901760
        %2249 = vmatmul.f32.gmra.mxu0 %v2248
        %v2250 = vpop.f32.mrf.mxu0
        %v2251 = vadd.f32 %v2176, %v2250
        %v2252 = vand.u32 %v306, 4294901760
        %2253 = vmatmul.f32.gmra.mxu0 %v2252
        %v2254 = vpop.f32.mrf.mxu0
        %v2255 = vadd.f32 %v2182, %v2254
        %2256 = vdwg.mxu0
        %v2257 = vand.u32 %v341, 4294901760
        %2258 = vmatpush.msra.mxu0 %v2257
        %v2259 = vand.u32 %v339, 4294901760
        %2260 = vmatpush.msra.mxu0 %v2259
        %v2261 = vand.u32 %v337, 4294901760
        %2262 = vmatpush.msra.mxu0 %v2261
        %v2263 = vand.u32 %v335, 4294901760
        %2264 = vmatpush.msra.mxu0 %v2263
        %v2265 = vand.u32 %v333, 4294901760
        %2266 = vmatpush.msra.mxu0 %v2265
        %v2267 = vand.u32 %v331, 4294901760
        %2268 = vmatpush.msra.mxu0 %v2267
        %v2269 = vand.u32 %v329, 4294901760
        %2270 = vmatpush.msra.mxu0 %v2269
        %v2271 = vand.u32 %v327, 4294901760
        %2272 = vmatpush.msra.mxu0 %v2271
        %v2273 = vand.u32 %v325, 4294901760
        %2274 = vmatpush.msra.mxu0 %v2273
        %v2275 = vand.u32 %v323, 4294901760
        %2276 = vmatpush.msra.mxu0 %v2275
        %v2277 = vand.u32 %v321, 4294901760
        %2278 = vmatpush.msra.mxu0 %v2277
        %v2279 = vand.u32 %v319, 4294901760
        %2280 = vmatpush.msra.mxu0 %v2279
        %v2281 = vand.u32 %v317, 4294901760
        %2282 = vmatpush.msra.mxu0 %v2281
        %v2283 = vand.u32 %v315, 4294901760
        %2284 = vmatpush.msra.mxu0 %v2283
        %v2285 = vand.u32 %v313, 4294901760
        %2286 = vmatpush.msra.mxu0 %v2285
        %v2287 = vand.u32 %v311, 4294901760
        %2288 = vmatpush.msra.mxu0 %v2287
        %v2289 = vand.u32 %v302, 4294901760
        %2290 = vmatmul.f32.gmra.mxu0 %v2289
        %v2291 = vpop.f32.mrf.mxu0
        %v2292 = vadd.f32 %v2251, %v2291
        %v2293 = vand.u32 %v306, 4294901760
        %2294 = vmatmul.f32.gmra.mxu0 %v2293
        %v2295 = vpop.f32.mrf.mxu0
        %v2296 = vadd.f32 %v2255, %v2295
        %2297 = vdwg.mxu0
        %v2298 = vand.u32 %v373, 4294901760
        %2299 = vmatpush.msra.mxu0 %v2298
        %v2300 = vand.u32 %v371, 4294901760
        %2301 = vmatpush.msra.mxu0 %v2300
        %v2302 = vand.u32 %v369, 4294901760
        %2303 = vmatpush.msra.mxu0 %v2302
        %v2304 = vand.u32 %v367, 4294901760
        %2305 = vmatpush.msra.mxu0 %v2304
        %v2306 = vand.u32 %v365, 4294901760
        %2307 = vmatpush.msra.mxu0 %v2306
        %v2308 = vand.u32 %v363, 4294901760
        %2309 = vmatpush.msra.mxu0 %v2308
        %v2310 = vand.u32 %v361, 4294901760
        %2311 = vmatpush.msra.mxu0 %v2310
        %v2312 = vand.u32 %v359, 4294901760
        %2313 = vmatpush.msra.mxu0 %v2312
        %v2314 = vand.u32 %v357, 4294901760
        %2315 = vmatpush.msra.mxu0 %v2314
        %v2316 = vand.u32 %v355, 4294901760
        %2317 = vmatpush.msra.mxu0 %v2316
        %v2318 = vand.u32 %v353, 4294901760
        %2319 = vmatpush.msra.mxu0 %v2318
        %v2320 = vand.u32 %v351, 4294901760
        %2321 = vmatpush.msra.mxu0 %v2320
        %v2322 = vand.u32 %v349, 4294901760
        %2323 = vmatpush.msra.mxu0 %v2322
        %v2324 = vand.u32 %v347, 4294901760
        %2325 = vmatpush.msra.mxu0 %v2324
        %v2326 = vand.u32 %v345, 4294901760
        %2327 = vmatpush.msra.mxu0 %v2326
        %v2328 = vand.u32 %v343, 4294901760
        %2329 = vmatpush.msra.mxu0 %v2328
        %v2330 = vand.u32 %v303, 4294901760
        %v2331 = vsub.f32 %v303, %v2330
        %v2332 = vand.u32 %v2331, 4294901760
        %v2333 = vsub.f32 %v2331, %v2332
        %v2334 = vand.u32 %v2333, 4294901760
        %2335 = vmatmul.f32.gmra.mxu0 %v2334
        %v2336 = vpop.f32.mrf.mxu0
        %v2337 = vadd.f32 %v2292, %v2336
        %v2338 = vand.u32 %v307, 4294901760
        %v2339 = vsub.f32 %v307, %v2338
        %v2340 = vand.u32 %v2339, 4294901760
        %v2341 = vsub.f32 %v2339, %v2340
        %v2342 = vand.u32 %v2341, 4294901760
        %2343 = vmatmul.f32.gmra.mxu0 %v2342
        %v2344 = vpop.f32.mrf.mxu0
        %v2345 = vadd.f32 %v2296, %v2344
        %2346 = vdwg.mxu0
        %v2347 = vand.u32 %v373, 4294901760
        %v2348 = vsub.f32 %v373, %v2347
        %v2349 = vand.u32 %v2348, 4294901760
        %v2350 = vsub.f32 %v2348, %v2349
        %v2351 = vand.u32 %v2350, 4294901760
        %2352 = vmatpush.msra.mxu0 %v2351
        %v2353 = vand.u32 %v371, 4294901760
        %v2354 = vsub.f32 %v371, %v2353
        %v2355 = vand.u32 %v2354, 4294901760
        %v2356 = vsub.f32 %v2354, %v2355
        %v2357 = vand.u32 %v2356, 4294901760
        %2358 = vmatpush.msra.mxu0 %v2357
        %v2359 = vand.u32 %v369, 4294901760
        %v2360 = vsub.f32 %v369, %v2359
        %v2361 = vand.u32 %v2360, 4294901760
        %v2362 = vsub.f32 %v2360, %v2361
        %v2363 = vand.u32 %v2362, 4294901760
        %2364 = vmatpush.msra.mxu0 %v2363
        %v2365 = vand.u32 %v367, 4294901760
        %v2366 = vsub.f32 %v367, %v2365
        %v2367 = vand.u32 %v2366, 4294901760
        %v2368 = vsub.f32 %v2366, %v2367
        %v2369 = vand.u32 %v2368, 4294901760
        %2370 = vmatpush.msra.mxu0 %v2369
        %v2371 = vand.u32 %v365, 4294901760
        %v2372 = vsub.f32 %v365, %v2371
        %v2373 = vand.u32 %v2372, 4294901760
        %v2374 = vsub.f32 %v2372, %v2373
        %v2375 = vand.u32 %v2374, 4294901760
        %2376 = vmatpush.msra.mxu0 %v2375
        %v2377 = vand.u32 %v363, 4294901760
        %v2378 = vsub.f32 %v363, %v2377
        %v2379 = vand.u32 %v2378, 4294901760
        %v2380 = vsub.f32 %v2378, %v2379
        %v2381 = vand.u32 %v2380, 4294901760
        %2382 = vmatpush.msra.mxu0 %v2381
        %v2383 = vand.u32 %v361, 4294901760
        %v2384 = vsub.f32 %v361, %v2383
        %v2385 = vand.u32 %v2384, 4294901760
        %v2386 = vsub.f32 %v2384, %v2385
        %v2387 = vand.u32 %v2386, 4294901760
        %2388 = vmatpush.msra.mxu0 %v2387
        %v2389 = vand.u32 %v359, 4294901760
        %v2390 = vsub.f32 %v359, %v2389
        %v2391 = vand.u32 %v2390, 4294901760
        %v2392 = vsub.f32 %v2390, %v2391
        %v2393 = vand.u32 %v2392, 4294901760
        %2394 = vmatpush.msra.mxu0 %v2393
        %v2395 = vand.u32 %v357, 4294901760
        %v2396 = vsub.f32 %v357, %v2395
        %v2397 = vand.u32 %v2396, 4294901760
        %v2398 = vsub.f32 %v2396, %v2397
        %v2399 = vand.u32 %v2398, 4294901760
        %2400 = vmatpush.msra.mxu0 %v2399
        %v2401 = vand.u32 %v355, 4294901760
        %v2402 = vsub.f32 %v355, %v2401
        %v2403 = vand.u32 %v2402, 4294901760
        %v2404 = vsub.f32 %v2402, %v2403
        %v2405 = vand.u32 %v2404, 4294901760
        %2406 = vmatpush.msra.mxu0 %v2405
        %v2407 = vand.u32 %v353, 4294901760
        %v2408 = vsub.f32 %v353, %v2407
        %v2409 = vand.u32 %v2408, 4294901760
        %v2410 = vsub.f32 %v2408, %v2409
        %v2411 = vand.u32 %v2410, 4294901760
        %2412 = vmatpush.msra.mxu0 %v2411
        %v2413 = vand.u32 %v351, 4294901760
        %v2414 = vsub.f32 %v351, %v2413
        %v2415 = vand.u32 %v2414, 4294901760
        %v2416 = vsub.f32 %v2414, %v2415
        %v2417 = vand.u32 %v2416, 4294901760
        %2418 = vmatpush.msra.mxu0 %v2417
        %v2419 = vand.u32 %v349, 4294901760
        %v2420 = vsub.f32 %v349, %v2419
        %v2421 = vand.u32 %v2420, 4294901760
        %v2422 = vsub.f32 %v2420, %v2421
        %v2423 = vand.u32 %v2422, 4294901760
        %2424 = vmatpush.msra.mxu0 %v2423
        %v2425 = vand.u32 %v347, 4294901760
        %v2426 = vsub.f32 %v347, %v2425
        %v2427 = vand.u32 %v2426, 4294901760
        %v2428 = vsub.f32 %v2426, %v2427
        %v2429 = vand.u32 %v2428, 4294901760
        %2430 = vmatpush.msra.mxu0 %v2429
        %v2431 = vand.u32 %v345, 4294901760
        %v2432 = vsub.f32 %v345, %v2431
        %v2433 = vand.u32 %v2432, 4294901760
        %v2434 = vsub.f32 %v2432, %v2433
        %v2435 = vand.u32 %v2434, 4294901760
        %2436 = vmatpush.msra.mxu0 %v2435
        %v2437 = vand.u32 %v343, 4294901760
        %v2438 = vsub.f32 %v343, %v2437
        %v2439 = vand.u32 %v2438, 4294901760
        %v2440 = vsub.f32 %v2438, %v2439
        %v2441 = vand.u32 %v2440, 4294901760
        %2442 = vmatpush.msra.mxu0 %v2441
        %v2443 = vand.u32 %v303, 4294901760
        %2444 = vmatmul.f32.gmra.mxu0 %v2443
        %v2445 = vpop.f32.mrf.mxu0
        %v2446 = vadd.f32 %v2337, %v2445
        %v2447 = vand.u32 %v307, 4294901760
        %2448 = vmatmul.f32.gmra.mxu0 %v2447
        %v2449 = vpop.f32.mrf.mxu0
        %v2450 = vadd.f32 %v2345, %v2449
        %2451 = vdwg.mxu0
        %v2452 = vand.u32 %v373, 4294901760
        %v2453 = vsub.f32 %v373, %v2452
        %2454 = vmatpush.msra.mxu0 %v2453
        %v2455 = vand.u32 %v371, 4294901760
        %v2456 = vsub.f32 %v371, %v2455
        %2457 = vmatpush.msra.mxu0 %v2456
        %v2458 = vand.u32 %v369, 4294901760
        %v2459 = vsub.f32 %v369, %v2458
        %2460 = vmatpush.msra.mxu0 %v2459
        %v2461 = vand.u32 %v367, 4294901760
        %v2462 = vsub.f32 %v367, %v2461
        %2463 = vmatpush.msra.mxu0 %v2462
        %v2464 = vand.u32 %v365, 4294901760
        %v2465 = vsub.f32 %v365, %v2464
        %2466 = vmatpush.msra.mxu0 %v2465
        %v2467 = vand.u32 %v363, 4294901760
        %v2468 = vsub.f32 %v363, %v2467
        %2469 = vmatpush.msra.mxu0 %v2468
        %v2470 = vand.u32 %v361, 4294901760
        %v2471 = vsub.f32 %v361, %v2470
        %2472 = vmatpush.msra.mxu0 %v2471
        %v2473 = vand.u32 %v359, 4294901760
        %v2474 = vsub.f32 %v359, %v2473
        %2475 = vmatpush.msra.mxu0 %v2474
        %v2476 = vand.u32 %v357, 4294901760
        %v2477 = vsub.f32 %v357, %v2476
        %2478 = vmatpush.msra.mxu0 %v2477
        %v2479 = vand.u32 %v355, 4294901760
        %v2480 = vsub.f32 %v355, %v2479
        %2481 = vmatpush.msra.mxu0 %v2480
        %v2482 = vand.u32 %v353, 4294901760
        %v2483 = vsub.f32 %v353, %v2482
        %2484 = vmatpush.msra.mxu0 %v2483
        %v2485 = vand.u32 %v351, 4294901760
        %v2486 = vsub.f32 %v351, %v2485
        %2487 = vmatpush.msra.mxu0 %v2486
        %v2488 = vand.u32 %v349, 4294901760
        %v2489 = vsub.f32 %v349, %v2488
        %2490 = vmatpush.msra.mxu0 %v2489
        %v2491 = vand.u32 %v347, 4294901760
        %v2492 = vsub.f32 %v347, %v2491
        %2493 = vmatpush.msra.mxu0 %v2492
        %v2494 = vand.u32 %v345, 4294901760
        %v2495 = vsub.f32 %v345, %v2494
        %2496 = vmatpush.msra.mxu0 %v2495
        %v2497 = vand.u32 %v343, 4294901760
        %v2498 = vsub.f32 %v343, %v2497
        %2499 = vmatpush.msra.mxu0 %v2498
        %v2500 = vand.u32 %v303, 4294901760
        %v2501 = vsub.f32 %v303, %v2500
        %2502 = vmatmul.f32.gmra.mxu0 %v2501
        %v2503 = vpop.f32.mrf.mxu0
        %v2504 = vadd.f32 %v2446, %v2503
        %v2505 = vand.u32 %v307, 4294901760
        %v2506 = vsub.f32 %v307, %v2505
        %2507 = vmatmul.f32.gmra.mxu0 %v2506
        %v2508 = vpop.f32.mrf.mxu0
        %v2509 = vadd.f32 %v2450, %v2508
        %2510 = vdwg.mxu0
        %v2511 = vand.u32 %v373, 4294901760
        %2512 = vmatpush.msra.mxu0 %v2511
        %v2513 = vand.u32 %v371, 4294901760
        %2514 = vmatpush.msra.mxu0 %v2513
        %v2515 = vand.u32 %v369, 4294901760
        %2516 = vmatpush.msra.mxu0 %v2515
        %v2517 = vand.u32 %v367, 4294901760
        %2518 = vmatpush.msra.mxu0 %v2517
        %v2519 = vand.u32 %v365, 4294901760
        %2520 = vmatpush.msra.mxu0 %v2519
        %v2521 = vand.u32 %v363, 4294901760
        %2522 = vmatpush.msra.mxu0 %v2521
        %v2523 = vand.u32 %v361, 4294901760
        %2524 = vmatpush.msra.mxu0 %v2523
        %v2525 = vand.u32 %v359, 4294901760
        %2526 = vmatpush.msra.mxu0 %v2525
        %v2527 = vand.u32 %v357, 4294901760
        %2528 = vmatpush.msra.mxu0 %v2527
        %v2529 = vand.u32 %v355, 4294901760
        %2530 = vmatpush.msra.mxu0 %v2529
        %v2531 = vand.u32 %v353, 4294901760
        %2532 = vmatpush.msra.mxu0 %v2531
        %v2533 = vand.u32 %v351, 4294901760
        %2534 = vmatpush.msra.mxu0 %v2533
        %v2535 = vand.u32 %v349, 4294901760
        %2536 = vmatpush.msra.mxu0 %v2535
        %v2537 = vand.u32 %v347, 4294901760
        %2538 = vmatpush.msra.mxu0 %v2537
        %v2539 = vand.u32 %v345, 4294901760
        %2540 = vmatpush.msra.mxu0 %v2539
        %v2541 = vand.u32 %v343, 4294901760
        %2542 = vmatpush.msra.mxu0 %v2541
        %v2543 = vand.u32 %v303, 4294901760
        %v2544 = vsub.f32 %v303, %v2543
        %v2545 = vand.u32 %v2544, 4294901760
        %2546 = vmatmul.f32.gmra.mxu0 %v2545
        %v2547 = vpop.f32.mrf.mxu0
        %v2548 = vadd.f32 %v2504, %v2547
        %v2549 = vand.u32 %v307, 4294901760
        %v2550 = vsub.f32 %v307, %v2549
        %v2551 = vand.u32 %v2550, 4294901760
        %2552 = vmatmul.f32.gmra.mxu0 %v2551
        %v2553 = vpop.f32.mrf.mxu0
        %v2554 = vadd.f32 %v2509, %v2553
        %2555 = vdwg.mxu0
        %v2556 = vand.u32 %v373, 4294901760
        %v2557 = vsub.f32 %v373, %v2556
        %v2558 = vand.u32 %v2557, 4294901760
        %2559 = vmatpush.msra.mxu0 %v2558
        %v2560 = vand.u32 %v371, 4294901760
        %v2561 = vsub.f32 %v371, %v2560
        %v2562 = vand.u32 %v2561, 4294901760
        %2563 = vmatpush.msra.mxu0 %v2562
        %v2564 = vand.u32 %v369, 4294901760
        %v2565 = vsub.f32 %v369, %v2564
        %v2566 = vand.u32 %v2565, 4294901760
        %2567 = vmatpush.msra.mxu0 %v2566
        %v2568 = vand.u32 %v367, 4294901760
        %v2569 = vsub.f32 %v367, %v2568
        %v2570 = vand.u32 %v2569, 4294901760
        %2571 = vmatpush.msra.mxu0 %v2570
        %v2572 = vand.u32 %v365, 4294901760
        %v2573 = vsub.f32 %v365, %v2572
        %v2574 = vand.u32 %v2573, 4294901760
        %2575 = vmatpush.msra.mxu0 %v2574
        %v2576 = vand.u32 %v363, 4294901760
        %v2577 = vsub.f32 %v363, %v2576
        %v2578 = vand.u32 %v2577, 4294901760
        %2579 = vmatpush.msra.mxu0 %v2578
        %v2580 = vand.u32 %v361, 4294901760
        %v2581 = vsub.f32 %v361, %v2580
        %v2582 = vand.u32 %v2581, 4294901760
        %2583 = vmatpush.msra.mxu0 %v2582
        %v2584 = vand.u32 %v359, 4294901760
        %v2585 = vsub.f32 %v359, %v2584
        %v2586 = vand.u32 %v2585, 4294901760
        %2587 = vmatpush.msra.mxu0 %v2586
        %v2588 = vand.u32 %v357, 4294901760
        %v2589 = vsub.f32 %v357, %v2588
        %v2590 = vand.u32 %v2589, 4294901760
        %2591 = vmatpush.msra.mxu0 %v2590
        %v2592 = vand.u32 %v355, 4294901760
        %v2593 = vsub.f32 %v355, %v2592
        %v2594 = vand.u32 %v2593, 4294901760
        %2595 = vmatpush.msra.mxu0 %v2594
        %v2596 = vand.u32 %v353, 4294901760
        %v2597 = vsub.f32 %v353, %v2596
        %v2598 = vand.u32 %v2597, 4294901760
        %2599 = vmatpush.msra.mxu0 %v2598
        %v2600 = vand.u32 %v351, 4294901760
        %v2601 = vsub.f32 %v351, %v2600
        %v2602 = vand.u32 %v2601, 4294901760
        %2603 = vmatpush.msra.mxu0 %v2602
        %v2604 = vand.u32 %v349, 4294901760
        %v2605 = vsub.f32 %v349, %v2604
        %v2606 = vand.u32 %v2605, 4294901760
        %2607 = vmatpush.msra.mxu0 %v2606
        %v2608 = vand.u32 %v347, 4294901760
        %v2609 = vsub.f32 %v347, %v2608
        %v2610 = vand.u32 %v2609, 4294901760
        %2611 = vmatpush.msra.mxu0 %v2610
        %v2612 = vand.u32 %v345, 4294901760
        %v2613 = vsub.f32 %v345, %v2612
        %v2614 = vand.u32 %v2613, 4294901760
        %2615 = vmatpush.msra.mxu0 %v2614
        %v2616 = vand.u32 %v343, 4294901760
        %v2617 = vsub.f32 %v343, %v2616
        %v2618 = vand.u32 %v2617, 4294901760
        %2619 = vmatpush.msra.mxu0 %v2618
        %v2620 = vand.u32 %v303, 4294901760
        %2621 = vmatmul.f32.gmra.mxu0 %v2620
        %v2622 = vpop.f32.mrf.mxu0
        %v2623 = vadd.f32 %v2548, %v2622
        %v2624 = vand.u32 %v307, 4294901760
        %2625 = vmatmul.f32.gmra.mxu0 %v2624
        %v2626 = vpop.f32.mrf.mxu0
        %v2627 = vadd.f32 %v2554, %v2626
        %2628 = vdwg.mxu0
        %v2629 = vand.u32 %v373, 4294901760
        %2630 = vmatpush.msra.mxu0 %v2629
        %v2631 = vand.u32 %v371, 4294901760
        %2632 = vmatpush.msra.mxu0 %v2631
        %v2633 = vand.u32 %v369, 4294901760
        %2634 = vmatpush.msra.mxu0 %v2633
        %v2635 = vand.u32 %v367, 4294901760
        %2636 = vmatpush.msra.mxu0 %v2635
        %v2637 = vand.u32 %v365, 4294901760
        %2638 = vmatpush.msra.mxu0 %v2637
        %v2639 = vand.u32 %v363, 4294901760
        %2640 = vmatpush.msra.mxu0 %v2639
        %v2641 = vand.u32 %v361, 4294901760
        %2642 = vmatpush.msra.mxu0 %v2641
        %v2643 = vand.u32 %v359, 4294901760
        %2644 = vmatpush.msra.mxu0 %v2643
        %v2645 = vand.u32 %v357, 4294901760
        %2646 = vmatpush.msra.mxu0 %v2645
        %v2647 = vand.u32 %v355, 4294901760
        %2648 = vmatpush.msra.mxu0 %v2647
        %v2649 = vand.u32 %v353, 4294901760
        %2650 = vmatpush.msra.mxu0 %v2649
        %v2651 = vand.u32 %v351, 4294901760
        %2652 = vmatpush.msra.mxu0 %v2651
        %v2653 = vand.u32 %v349, 4294901760
        %2654 = vmatpush.msra.mxu0 %v2653
        %v2655 = vand.u32 %v347, 4294901760
        %2656 = vmatpush.msra.mxu0 %v2655
        %v2657 = vand.u32 %v345, 4294901760
        %2658 = vmatpush.msra.mxu0 %v2657
        %v2659 = vand.u32 %v343, 4294901760
        %2660 = vmatpush.msra.mxu0 %v2659
        %v2661 = vand.u32 %v303, 4294901760
        %2662 = vmatmul.f32.gmra.mxu0 %v2661
        %v2663 = vpop.f32.mrf.mxu0
        %v2664 = vadd.f32 %v2623, %v2663
        %v2665 = vand.u32 %v307, 4294901760
        %2666 = vmatmul.f32.gmra.mxu0 %v2665
        %v2667 = vpop.f32.mrf.mxu0
        %v2668 = vadd.f32 %v2627, %v2667
        %2669 = vdwg.mxu0
        %v2670 = vand.u32 %v405, 4294901760
        %2671 = vmatpush.msra.mxu0 %v2670
        %v2672 = vand.u32 %v403, 4294901760
        %2673 = vmatpush.msra.mxu0 %v2672
        %v2674 = vand.u32 %v401, 4294901760
        %2675 = vmatpush.msra.mxu0 %v2674
        %v2676 = vand.u32 %v399, 4294901760
        %2677 = vmatpush.msra.mxu0 %v2676
        %v2678 = vand.u32 %v397, 4294901760
        %2679 = vmatpush.msra.mxu0 %v2678
        %v2680 = vand.u32 %v395, 4294901760
        %2681 = vmatpush.msra.mxu0 %v2680
        %v2682 = vand.u32 %v393, 4294901760
        %2683 = vmatpush.msra.mxu0 %v2682
        %v2684 = vand.u32 %v391, 4294901760
        %2685 = vmatpush.msra.mxu0 %v2684
        %v2686 = vand.u32 %v389, 4294901760
        %2687 = vmatpush.msra.mxu0 %v2686
        %v2688 = vand.u32 %v387, 4294901760
        %2689 = vmatpush.msra.mxu0 %v2688
        %v2690 = vand.u32 %v385, 4294901760
        %2691 = vmatpush.msra.mxu0 %v2690
        %v2692 = vand.u32 %v383, 4294901760
        %2693 = vmatpush.msra.mxu0 %v2692
        %v2694 = vand.u32 %v381, 4294901760
        %2695 = vmatpush.msra.mxu0 %v2694
        %v2696 = vand.u32 %v379, 4294901760
        %2697 = vmatpush.msra.mxu0 %v2696
        %v2698 = vand.u32 %v377, 4294901760
        %2699 = vmatpush.msra.mxu0 %v2698
        %v2700 = vand.u32 %v375, 4294901760
        %2701 = vmatpush.msra.mxu0 %v2700
        %v2702 = vand.u32 %v304, 4294901760
        %v2703 = vsub.f32 %v304, %v2702
        %v2704 = vand.u32 %v2703, 4294901760
        %v2705 = vsub.f32 %v2703, %v2704
        %v2706 = vand.u32 %v2705, 4294901760
        %2707 = vmatmul.f32.gmra.mxu0 %v2706
        %v2708 = vpop.f32.mrf.mxu0
        %v2709 = vadd.f32 %v2664, %v2708
        %v2710 = vand.u32 %v308, 4294901760
        %v2711 = vsub.f32 %v308, %v2710
        %v2712 = vand.u32 %v2711, 4294901760
        %v2713 = vsub.f32 %v2711, %v2712
        %v2714 = vand.u32 %v2713, 4294901760
        %2715 = vmatmul.f32.gmra.mxu0 %v2714
        %v2716 = vpop.f32.mrf.mxu0
        %v2717 = vadd.f32 %v2668, %v2716
        %2718 = vdwg.mxu0
        %v2719 = vand.u32 %v405, 4294901760
        %v2720 = vsub.f32 %v405, %v2719
        %v2721 = vand.u32 %v2720, 4294901760
        %v2722 = vsub.f32 %v2720, %v2721
        %v2723 = vand.u32 %v2722, 4294901760
        %2724 = vmatpush.msra.mxu0 %v2723
        %v2725 = vand.u32 %v403, 4294901760
        %v2726 = vsub.f32 %v403, %v2725
        %v2727 = vand.u32 %v2726, 4294901760
        %v2728 = vsub.f32 %v2726, %v2727
        %v2729 = vand.u32 %v2728, 4294901760
        %2730 = vmatpush.msra.mxu0 %v2729
        %v2731 = vand.u32 %v401, 4294901760
        %v2732 = vsub.f32 %v401, %v2731
        %v2733 = vand.u32 %v2732, 4294901760
        %v2734 = vsub.f32 %v2732, %v2733
        %v2735 = vand.u32 %v2734, 4294901760
        %2736 = vmatpush.msra.mxu0 %v2735
        %v2737 = vand.u32 %v399, 4294901760
        %v2738 = vsub.f32 %v399, %v2737
        %v2739 = vand.u32 %v2738, 4294901760
        %v2740 = vsub.f32 %v2738, %v2739
        %v2741 = vand.u32 %v2740, 4294901760
        %2742 = vmatpush.msra.mxu0 %v2741
        %v2743 = vand.u32 %v397, 4294901760
        %v2744 = vsub.f32 %v397, %v2743
        %v2745 = vand.u32 %v2744, 4294901760
        %v2746 = vsub.f32 %v2744, %v2745
        %v2747 = vand.u32 %v2746, 4294901760
        %2748 = vmatpush.msra.mxu0 %v2747
        %v2749 = vand.u32 %v395, 4294901760
        %v2750 = vsub.f32 %v395, %v2749
        %v2751 = vand.u32 %v2750, 4294901760
        %v2752 = vsub.f32 %v2750, %v2751
        %v2753 = vand.u32 %v2752, 4294901760
        %2754 = vmatpush.msra.mxu0 %v2753
        %v2755 = vand.u32 %v393, 4294901760
        %v2756 = vsub.f32 %v393, %v2755
        %v2757 = vand.u32 %v2756, 4294901760
        %v2758 = vsub.f32 %v2756, %v2757
        %v2759 = vand.u32 %v2758, 4294901760
        %2760 = vmatpush.msra.mxu0 %v2759
        %v2761 = vand.u32 %v391, 4294901760
        %v2762 = vsub.f32 %v391, %v2761
        %v2763 = vand.u32 %v2762, 4294901760
        %v2764 = vsub.f32 %v2762, %v2763
        %v2765 = vand.u32 %v2764, 4294901760
        %2766 = vmatpush.msra.mxu0 %v2765
        %v2767 = vand.u32 %v389, 4294901760
        %v2768 = vsub.f32 %v389, %v2767
        %v2769 = vand.u32 %v2768, 4294901760
        %v2770 = vsub.f32 %v2768, %v2769
        %v2771 = vand.u32 %v2770, 4294901760
        %2772 = vmatpush.msra.mxu0 %v2771
        %v2773 = vand.u32 %v387, 4294901760
        %v2774 = vsub.f32 %v387, %v2773
        %v2775 = vand.u32 %v2774, 4294901760
        %v2776 = vsub.f32 %v2774, %v2775
        %v2777 = vand.u32 %v2776, 4294901760
        %2778 = vmatpush.msra.mxu0 %v2777
        %v2779 = vand.u32 %v385, 4294901760
        %v2780 = vsub.f32 %v385, %v2779
        %v2781 = vand.u32 %v2780, 4294901760
        %v2782 = vsub.f32 %v2780, %v2781
        %v2783 = vand.u32 %v2782, 4294901760
        %2784 = vmatpush.msra.mxu0 %v2783
        %v2785 = vand.u32 %v383, 4294901760
        %v2786 = vsub.f32 %v383, %v2785
        %v2787 = vand.u32 %v2786, 4294901760
        %v2788 = vsub.f32 %v2786, %v2787
        %v2789 = vand.u32 %v2788, 4294901760
        %2790 = vmatpush.msra.mxu0 %v2789
        %v2791 = vand.u32 %v381, 4294901760
        %v2792 = vsub.f32 %v381, %v2791
        %v2793 = vand.u32 %v2792, 4294901760
        %v2794 = vsub.f32 %v2792, %v2793
        %v2795 = vand.u32 %v2794, 4294901760
        %2796 = vmatpush.msra.mxu0 %v2795
        %v2797 = vand.u32 %v379, 4294901760
        %v2798 = vsub.f32 %v379, %v2797
        %v2799 = vand.u32 %v2798, 4294901760
        %v2800 = vsub.f32 %v2798, %v2799
        %v2801 = vand.u32 %v2800, 4294901760
        %2802 = vmatpush.msra.mxu0 %v2801
        %v2803 = vand.u32 %v377, 4294901760
        %v2804 = vsub.f32 %v377, %v2803
        %v2805 = vand.u32 %v2804, 4294901760
        %v2806 = vsub.f32 %v2804, %v2805
        %v2807 = vand.u32 %v2806, 4294901760
        %2808 = vmatpush.msra.mxu0 %v2807
        %v2809 = vand.u32 %v375, 4294901760
        %v2810 = vsub.f32 %v375, %v2809
        %v2811 = vand.u32 %v2810, 4294901760
        %v2812 = vsub.f32 %v2810, %v2811
        %v2813 = vand.u32 %v2812, 4294901760
        %2814 = vmatpush.msra.mxu0 %v2813
        %v2815 = vand.u32 %v304, 4294901760
        %2816 = vmatmul.f32.gmra.mxu0 %v2815
        %v2817 = vpop.f32.mrf.mxu0
        %v2818 = vadd.f32 %v2709, %v2817
        %v2819 = vand.u32 %v308, 4294901760
        %2820 = vmatmul.f32.gmra.mxu0 %v2819
        %v2821 = vpop.f32.mrf.mxu0
        %v2822 = vadd.f32 %v2717, %v2821
        %2823 = vdwg.mxu0
        %v2824 = vand.u32 %v405, 4294901760
        %v2825 = vsub.f32 %v405, %v2824
        %2826 = vmatpush.msra.mxu0 %v2825
        %v2827 = vand.u32 %v403, 4294901760
        %v2828 = vsub.f32 %v403, %v2827
        %2829 = vmatpush.msra.mxu0 %v2828
        %v2830 = vand.u32 %v401, 4294901760
        %v2831 = vsub.f32 %v401, %v2830
        %2832 = vmatpush.msra.mxu0 %v2831
        %v2833 = vand.u32 %v399, 4294901760
        %v2834 = vsub.f32 %v399, %v2833
        %2835 = vmatpush.msra.mxu0 %v2834
        %v2836 = vand.u32 %v397, 4294901760
        %v2837 = vsub.f32 %v397, %v2836
        %2838 = vmatpush.msra.mxu0 %v2837
        %v2839 = vand.u32 %v395, 4294901760
        %v2840 = vsub.f32 %v395, %v2839
        %2841 = vmatpush.msra.mxu0 %v2840
        %v2842 = vand.u32 %v393, 4294901760
        %v2843 = vsub.f32 %v393, %v2842
        %2844 = vmatpush.msra.mxu0 %v2843
        %v2845 = vand.u32 %v391, 4294901760
        %v2846 = vsub.f32 %v391, %v2845
        %2847 = vmatpush.msra.mxu0 %v2846
        %v2848 = vand.u32 %v389, 4294901760
        %v2849 = vsub.f32 %v389, %v2848
        %2850 = vmatpush.msra.mxu0 %v2849
        %v2851 = vand.u32 %v387, 4294901760
        %v2852 = vsub.f32 %v387, %v2851
        %2853 = vmatpush.msra.mxu0 %v2852
        %v2854 = vand.u32 %v385, 4294901760
        %v2855 = vsub.f32 %v385, %v2854
        %2856 = vmatpush.msra.mxu0 %v2855
        %v2857 = vand.u32 %v383, 4294901760
        %v2858 = vsub.f32 %v383, %v2857
        %2859 = vmatpush.msra.mxu0 %v2858
        %v2860 = vand.u32 %v381, 4294901760
        %v2861 = vsub.f32 %v381, %v2860
        %2862 = vmatpush.msra.mxu0 %v2861
        %v2863 = vand.u32 %v379, 4294901760
        %v2864 = vsub.f32 %v379, %v2863
        %2865 = vmatpush.msra.mxu0 %v2864
        %v2866 = vand.u32 %v377, 4294901760
        %v2867 = vsub.f32 %v377, %v2866
        %2868 = vmatpush.msra.mxu0 %v2867
        %v2869 = vand.u32 %v375, 4294901760
        %v2870 = vsub.f32 %v375, %v2869
        %2871 = vmatpush.msra.mxu0 %v2870
        %v2872 = vand.u32 %v304, 4294901760
        %v2873 = vsub.f32 %v304, %v2872
        %2874 = vmatmul.f32.gmra.mxu0 %v2873
        %v2875 = vpop.f32.mrf.mxu0
        %v2876 = vadd.f32 %v2818, %v2875
        %v2877 = vand.u32 %v308, 4294901760
        %v2878 = vsub.f32 %v308, %v2877
        %2879 = vmatmul.f32.gmra.mxu0 %v2878
        %v2880 = vpop.f32.mrf.mxu0
        %v2881 = vadd.f32 %v2822, %v2880
        %2882 = vdwg.mxu0
        %v2883 = vand.u32 %v405, 4294901760
        %2884 = vmatpush.msra.mxu0 %v2883
        %v2885 = vand.u32 %v403, 4294901760
        %2886 = vmatpush.msra.mxu0 %v2885
        %v2887 = vand.u32 %v401, 4294901760
        %2888 = vmatpush.msra.mxu0 %v2887
        %v2889 = vand.u32 %v399, 4294901760
        %2890 = vmatpush.msra.mxu0 %v2889
        %v2891 = vand.u32 %v397, 4294901760
        %2892 = vmatpush.msra.mxu0 %v2891
        %v2893 = vand.u32 %v395, 4294901760
        %2894 = vmatpush.msra.mxu0 %v2893
        %v2895 = vand.u32 %v393, 4294901760
        %2896 = vmatpush.msra.mxu0 %v2895
        %v2897 = vand.u32 %v391, 4294901760
        %2898 = vmatpush.msra.mxu0 %v2897
        %v2899 = vand.u32 %v389, 4294901760
        %2900 = vmatpush.msra.mxu0 %v2899
        %v2901 = vand.u32 %v387, 4294901760
        %2902 = vmatpush.msra.mxu0 %v2901
        %v2903 = vand.u32 %v385, 4294901760
        %2904 = vmatpush.msra.mxu0 %v2903
        %v2905 = vand.u32 %v383, 4294901760
        %2906 = vmatpush.msra.mxu0 %v2905
        %v2907 = vand.u32 %v381, 4294901760
        %2908 = vmatpush.msra.mxu0 %v2907
        %v2909 = vand.u32 %v379, 4294901760
        %2910 = vmatpush.msra.mxu0 %v2909
        %v2911 = vand.u32 %v377, 4294901760
        %2912 = vmatpush.msra.mxu0 %v2911
        %v2913 = vand.u32 %v375, 4294901760
        %2914 = vmatpush.msra.mxu0 %v2913
        %v2915 = vand.u32 %v304, 4294901760
        %v2916 = vsub.f32 %v304, %v2915
        %v2917 = vand.u32 %v2916, 4294901760
        %2918 = vmatmul.f32.gmra.mxu0 %v2917
        %v2919 = vpop.f32.mrf.mxu0
        %v2920 = vadd.f32 %v2876, %v2919
        %v2921 = vand.u32 %v308, 4294901760
        %v2922 = vsub.f32 %v308, %v2921
        %v2923 = vand.u32 %v2922, 4294901760
        %2924 = vmatmul.f32.gmra.mxu0 %v2923
        %v2925 = vpop.f32.mrf.mxu0
        %v2926 = vadd.f32 %v2881, %v2925
        %2927 = vdwg.mxu0
        %v2928 = vand.u32 %v405, 4294901760
        %v2929 = vsub.f32 %v405, %v2928
        %v2930 = vand.u32 %v2929, 4294901760
        %2931 = vmatpush.msra.mxu0 %v2930
        %v2932 = vand.u32 %v403, 4294901760
        %v2933 = vsub.f32 %v403, %v2932
        %v2934 = vand.u32 %v2933, 4294901760
        %2935 = vmatpush.msra.mxu0 %v2934
        %v2936 = vand.u32 %v401, 4294901760
        %v2937 = vsub.f32 %v401, %v2936
        %v2938 = vand.u32 %v2937, 4294901760
        %2939 = vmatpush.msra.mxu0 %v2938
        %v2940 = vand.u32 %v399, 4294901760
        %v2941 = vsub.f32 %v399, %v2940
        %v2942 = vand.u32 %v2941, 4294901760
        %2943 = vmatpush.msra.mxu0 %v2942
        %v2944 = vand.u32 %v397, 4294901760
        %v2945 = vsub.f32 %v397, %v2944
        %v2946 = vand.u32 %v2945, 4294901760
        %2947 = vmatpush.msra.mxu0 %v2946
        %v2948 = vand.u32 %v395, 4294901760
        %v2949 = vsub.f32 %v395, %v2948
        %v2950 = vand.u32 %v2949, 4294901760
        %2951 = vmatpush.msra.mxu0 %v2950
        %v2952 = vand.u32 %v393, 4294901760
        %v2953 = vsub.f32 %v393, %v2952
        %v2954 = vand.u32 %v2953, 4294901760
        %2955 = vmatpush.msra.mxu0 %v2954
        %v2956 = vand.u32 %v391, 4294901760
        %v2957 = vsub.f32 %v391, %v2956
        %v2958 = vand.u32 %v2957, 4294901760
        %2959 = vmatpush.msra.mxu0 %v2958
        %v2960 = vand.u32 %v389, 4294901760
        %v2961 = vsub.f32 %v389, %v2960
        %v2962 = vand.u32 %v2961, 4294901760
        %2963 = vmatpush.msra.mxu0 %v2962
        %v2964 = vand.u32 %v387, 4294901760
        %v2965 = vsub.f32 %v387, %v2964
        %v2966 = vand.u32 %v2965, 4294901760
        %2967 = vmatpush.msra.mxu0 %v2966
        %v2968 = vand.u32 %v385, 4294901760
        %v2969 = vsub.f32 %v385, %v2968
        %v2970 = vand.u32 %v2969, 4294901760
        %2971 = vmatpush.msra.mxu0 %v2970
        %v2972 = vand.u32 %v383, 4294901760
        %v2973 = vsub.f32 %v383, %v2972
        %v2974 = vand.u32 %v2973, 4294901760
        %2975 = vmatpush.msra.mxu0 %v2974
        %v2976 = vand.u32 %v381, 4294901760
        %v2977 = vsub.f32 %v381, %v2976
        %v2978 = vand.u32 %v2977, 4294901760
        %2979 = vmatpush.msra.mxu0 %v2978
        %v2980 = vand.u32 %v379, 4294901760
        %v2981 = vsub.f32 %v379, %v2980
        %v2982 = vand.u32 %v2981, 4294901760
        %2983 = vmatpush.msra.mxu0 %v2982
        %v2984 = vand.u32 %v377, 4294901760
        %v2985 = vsub.f32 %v377, %v2984
        %v2986 = vand.u32 %v2985, 4294901760
        %2987 = vmatpush.msra.mxu0 %v2986
        %v2988 = vand.u32 %v375, 4294901760
        %v2989 = vsub.f32 %v375, %v2988
        %v2990 = vand.u32 %v2989, 4294901760
        %2991 = vmatpush.msra.mxu0 %v2990
        %v2992 = vand.u32 %v304, 4294901760
        %2993 = vmatmul.f32.gmra.mxu0 %v2992
        %v2994 = vpop.f32.mrf.mxu0
        %v2995 = vadd.f32 %v2920, %v2994
        %v2996 = vand.u32 %v308, 4294901760
        %2997 = vmatmul.f32.gmra.mxu0 %v2996
        %v2998 = vpop.f32.mrf.mxu0
        %v2999 = vadd.f32 %v2926, %v2998
        %3000 = vdwg.mxu0
        %v3001 = vand.u32 %v405, 4294901760
        %3002 = vmatpush.msra.mxu0 %v3001
        %v3003 = vand.u32 %v403, 4294901760
        %3004 = vmatpush.msra.mxu0 %v3003
        %v3005 = vand.u32 %v401, 4294901760
        %3006 = vmatpush.msra.mxu0 %v3005
        %v3007 = vand.u32 %v399, 4294901760
        %3008 = vmatpush.msra.mxu0 %v3007
        %v3009 = vand.u32 %v397, 4294901760
        %3010 = vmatpush.msra.mxu0 %v3009
        %v3011 = vand.u32 %v395, 4294901760
        %3012 = vmatpush.msra.mxu0 %v3011
        %v3013 = vand.u32 %v393, 4294901760
        %3014 = vmatpush.msra.mxu0 %v3013
        %v3015 = vand.u32 %v391, 4294901760
        %3016 = vmatpush.msra.mxu0 %v3015
        %v3017 = vand.u32 %v389, 4294901760
        %3018 = vmatpush.msra.mxu0 %v3017
        %v3019 = vand.u32 %v387, 4294901760
        %3020 = vmatpush.msra.mxu0 %v3019
        %v3021 = vand.u32 %v385, 4294901760
        %3022 = vmatpush.msra.mxu0 %v3021
        %v3023 = vand.u32 %v383, 4294901760
        %3024 = vmatpush.msra.mxu0 %v3023
        %v3025 = vand.u32 %v381, 4294901760
        %3026 = vmatpush.msra.mxu0 %v3025
        %v3027 = vand.u32 %v379, 4294901760
        %3028 = vmatpush.msra.mxu0 %v3027
        %v3029 = vand.u32 %v377, 4294901760
        %3030 = vmatpush.msra.mxu0 %v3029
        %v3031 = vand.u32 %v375, 4294901760
        %3032 = vmatpush.msra.mxu0 %v3031
        %v3033 = vand.u32 %v304, 4294901760
        %3034 = vmatmul.f32.gmra.mxu0 %v3033
        %v3035 = vpop.f32.mrf.mxu0
        %v3036 = vadd.f32 %v2995, %v3035
        %v3037 = vand.u32 %v308, 4294901760
        %3038 = vmatmul.f32.gmra.mxu0 %v3037
        %v3039 = vpop.f32.mrf.mxu0
        %v3040 = vadd.f32 %v2999, %v3039
        %3041 = vdwg.mxu0
        %v3042 = vand.u32 %v437, 4294901760
        %3043 = vmatpush.msra.mxu0 %v3042
        %v3044 = vand.u32 %v435, 4294901760
        %3045 = vmatpush.msra.mxu0 %v3044
        %v3046 = vand.u32 %v433, 4294901760
        %3047 = vmatpush.msra.mxu0 %v3046
        %v3048 = vand.u32 %v431, 4294901760
        %3049 = vmatpush.msra.mxu0 %v3048
        %v3050 = vand.u32 %v429, 4294901760
        %3051 = vmatpush.msra.mxu0 %v3050
        %v3052 = vand.u32 %v427, 4294901760
        %3053 = vmatpush.msra.mxu0 %v3052
        %v3054 = vand.u32 %v425, 4294901760
        %3055 = vmatpush.msra.mxu0 %v3054
        %v3056 = vand.u32 %v423, 4294901760
        %3057 = vmatpush.msra.mxu0 %v3056
        %v3058 = vand.u32 %v421, 4294901760
        %3059 = vmatpush.msra.mxu0 %v3058
        %v3060 = vand.u32 %v419, 4294901760
        %3061 = vmatpush.msra.mxu0 %v3060
        %v3062 = vand.u32 %v417, 4294901760
        %3063 = vmatpush.msra.mxu0 %v3062
        %v3064 = vand.u32 %v415, 4294901760
        %3065 = vmatpush.msra.mxu0 %v3064
        %v3066 = vand.u32 %v413, 4294901760
        %3067 = vmatpush.msra.mxu0 %v3066
        %v3068 = vand.u32 %v411, 4294901760
        %3069 = vmatpush.msra.mxu0 %v3068
        %v3070 = vand.u32 %v409, 4294901760
        %3071 = vmatpush.msra.mxu0 %v3070
        %v3072 = vand.u32 %v407, 4294901760
        %3073 = vmatpush.msra.mxu0 %v3072
        %v3074 = vand.u32 %v305, 4294901760
        %v3075 = vsub.f32 %v305, %v3074
        %v3076 = vand.u32 %v3075, 4294901760
        %v3077 = vsub.f32 %v3075, %v3076
        %v3078 = vand.u32 %v3077, 4294901760
        %3079 = vmatmul.f32.gmra.mxu0 %v3078
        %v3080 = vpop.f32.mrf.mxu0
        %v3081 = vadd.f32 %v3036, %v3080
        %v3082 = vand.u32 %v309, 4294901760
        %v3083 = vsub.f32 %v309, %v3082
        %v3084 = vand.u32 %v3083, 4294901760
        %v3085 = vsub.f32 %v3083, %v3084
        %v3086 = vand.u32 %v3085, 4294901760
        %3087 = vmatmul.f32.gmra.mxu0 %v3086
        %v3088 = vpop.f32.mrf.mxu0
        %v3089 = vadd.f32 %v3040, %v3088
        %3090 = vdwg.mxu0
        %v3091 = vand.u32 %v437, 4294901760
        %v3092 = vsub.f32 %v437, %v3091
        %v3093 = vand.u32 %v3092, 4294901760
        %v3094 = vsub.f32 %v3092, %v3093
        %v3095 = vand.u32 %v3094, 4294901760
        %3096 = vmatpush.msra.mxu0 %v3095
        %v3097 = vand.u32 %v435, 4294901760
        %v3098 = vsub.f32 %v435, %v3097
        %v3099 = vand.u32 %v3098, 4294901760
        %v3100 = vsub.f32 %v3098, %v3099
        %v3101 = vand.u32 %v3100, 4294901760
        %3102 = vmatpush.msra.mxu0 %v3101
        %v3103 = vand.u32 %v433, 4294901760
        %v3104 = vsub.f32 %v433, %v3103
        %v3105 = vand.u32 %v3104, 4294901760
        %v3106 = vsub.f32 %v3104, %v3105
        %v3107 = vand.u32 %v3106, 4294901760
        %3108 = vmatpush.msra.mxu0 %v3107
        %v3109 = vand.u32 %v431, 4294901760
        %v3110 = vsub.f32 %v431, %v3109
        %v3111 = vand.u32 %v3110, 4294901760
        %v3112 = vsub.f32 %v3110, %v3111
        %v3113 = vand.u32 %v3112, 4294901760
        %3114 = vmatpush.msra.mxu0 %v3113
        %v3115 = vand.u32 %v429, 4294901760
        %v3116 = vsub.f32 %v429, %v3115
        %v3117 = vand.u32 %v3116, 4294901760
        %v3118 = vsub.f32 %v3116, %v3117
        %v3119 = vand.u32 %v3118, 4294901760
        %3120 = vmatpush.msra.mxu0 %v3119
        %v3121 = vand.u32 %v427, 4294901760
        %v3122 = vsub.f32 %v427, %v3121
        %v3123 = vand.u32 %v3122, 4294901760
        %v3124 = vsub.f32 %v3122, %v3123
        %v3125 = vand.u32 %v3124, 4294901760
        %3126 = vmatpush.msra.mxu0 %v3125
        %v3127 = vand.u32 %v425, 4294901760
        %v3128 = vsub.f32 %v425, %v3127
        %v3129 = vand.u32 %v3128, 4294901760
        %v3130 = vsub.f32 %v3128, %v3129
        %v3131 = vand.u32 %v3130, 4294901760
        %3132 = vmatpush.msra.mxu0 %v3131
        %v3133 = vand.u32 %v423, 4294901760
        %v3134 = vsub.f32 %v423, %v3133
        %v3135 = vand.u32 %v3134, 4294901760
        %v3136 = vsub.f32 %v3134, %v3135
        %v3137 = vand.u32 %v3136, 4294901760
        %3138 = vmatpush.msra.mxu0 %v3137
        %v3139 = vand.u32 %v421, 4294901760
        %v3140 = vsub.f32 %v421, %v3139
        %v3141 = vand.u32 %v3140, 4294901760
        %v3142 = vsub.f32 %v3140, %v3141
        %v3143 = vand.u32 %v3142, 4294901760
        %3144 = vmatpush.msra.mxu0 %v3143
        %v3145 = vand.u32 %v419, 4294901760
        %v3146 = vsub.f32 %v419, %v3145
        %v3147 = vand.u32 %v3146, 4294901760
        %v3148 = vsub.f32 %v3146, %v3147
        %v3149 = vand.u32 %v3148, 4294901760
        %3150 = vmatpush.msra.mxu0 %v3149
        %v3151 = vand.u32 %v417, 4294901760
        %v3152 = vsub.f32 %v417, %v3151
        %v3153 = vand.u32 %v3152, 4294901760
        %v3154 = vsub.f32 %v3152, %v3153
        %v3155 = vand.u32 %v3154, 4294901760
        %3156 = vmatpush.msra.mxu0 %v3155
        %v3157 = vand.u32 %v415, 4294901760
        %v3158 = vsub.f32 %v415, %v3157
        %v3159 = vand.u32 %v3158, 4294901760
        %v3160 = vsub.f32 %v3158, %v3159
        %v3161 = vand.u32 %v3160, 4294901760
        %3162 = vmatpush.msra.mxu0 %v3161
        %v3163 = vand.u32 %v413, 4294901760
        %v3164 = vsub.f32 %v413, %v3163
        %v3165 = vand.u32 %v3164, 4294901760
        %v3166 = vsub.f32 %v3164, %v3165
        %v3167 = vand.u32 %v3166, 4294901760
        %3168 = vmatpush.msra.mxu0 %v3167
        %v3169 = vand.u32 %v411, 4294901760
        %v3170 = vsub.f32 %v411, %v3169
        %v3171 = vand.u32 %v3170, 4294901760
        %v3172 = vsub.f32 %v3170, %v3171
        %v3173 = vand.u32 %v3172, 4294901760
        %3174 = vmatpush.msra.mxu0 %v3173
        %v3175 = vand.u32 %v409, 4294901760
        %v3176 = vsub.f32 %v409, %v3175
        %v3177 = vand.u32 %v3176, 4294901760
        %v3178 = vsub.f32 %v3176, %v3177
        %v3179 = vand.u32 %v3178, 4294901760
        %3180 = vmatpush.msra.mxu0 %v3179
        %v3181 = vand.u32 %v407, 4294901760
        %v3182 = vsub.f32 %v407, %v3181
        %v3183 = vand.u32 %v3182, 4294901760
        %v3184 = vsub.f32 %v3182, %v3183
        %v3185 = vand.u32 %v3184, 4294901760
        %3186 = vmatpush.msra.mxu0 %v3185
        %v3187 = vand.u32 %v305, 4294901760
        %3188 = vmatmul.f32.gmra.mxu0 %v3187
        %v3189 = vpop.f32.mrf.mxu0
        %v3190 = vadd.f32 %v3081, %v3189
        %v3191 = vand.u32 %v309, 4294901760
        %3192 = vmatmul.f32.gmra.mxu0 %v3191
        %v3193 = vpop.f32.mrf.mxu0
        %v3194 = vadd.f32 %v3089, %v3193
        %3195 = vdwg.mxu0
        %v3196 = vand.u32 %v437, 4294901760
        %v3197 = vsub.f32 %v437, %v3196
        %3198 = vmatpush.msra.mxu0 %v3197
        %v3199 = vand.u32 %v435, 4294901760
        %v3200 = vsub.f32 %v435, %v3199
        %3201 = vmatpush.msra.mxu0 %v3200
        %v3202 = vand.u32 %v433, 4294901760
        %v3203 = vsub.f32 %v433, %v3202
        %3204 = vmatpush.msra.mxu0 %v3203
        %v3205 = vand.u32 %v431, 4294901760
        %v3206 = vsub.f32 %v431, %v3205
        %3207 = vmatpush.msra.mxu0 %v3206
        %v3208 = vand.u32 %v429, 4294901760
        %v3209 = vsub.f32 %v429, %v3208
        %3210 = vmatpush.msra.mxu0 %v3209
        %v3211 = vand.u32 %v427, 4294901760
        %v3212 = vsub.f32 %v427, %v3211
        %3213 = vmatpush.msra.mxu0 %v3212
        %v3214 = vand.u32 %v425, 4294901760
        %v3215 = vsub.f32 %v425, %v3214
        %3216 = vmatpush.msra.mxu0 %v3215
        %v3217 = vand.u32 %v423, 4294901760
        %v3218 = vsub.f32 %v423, %v3217
        %3219 = vmatpush.msra.mxu0 %v3218
        %v3220 = vand.u32 %v421, 4294901760
        %v3221 = vsub.f32 %v421, %v3220
        %3222 = vmatpush.msra.mxu0 %v3221
        %v3223 = vand.u32 %v419, 4294901760
        %v3224 = vsub.f32 %v419, %v3223
        %3225 = vmatpush.msra.mxu0 %v3224
        %v3226 = vand.u32 %v417, 4294901760
        %v3227 = vsub.f32 %v417, %v3226
        %3228 = vmatpush.msra.mxu0 %v3227
        %v3229 = vand.u32 %v415, 4294901760
        %v3230 = vsub.f32 %v415, %v3229
        %3231 = vmatpush.msra.mxu0 %v3230
        %v3232 = vand.u32 %v413, 4294901760
        %v3233 = vsub.f32 %v413, %v3232
        %3234 = vmatpush.msra.mxu0 %v3233
        %v3235 = vand.u32 %v411, 4294901760
        %v3236 = vsub.f32 %v411, %v3235
        %3237 = vmatpush.msra.mxu0 %v3236
        %v3238 = vand.u32 %v409, 4294901760
        %v3239 = vsub.f32 %v409, %v3238
        %3240 = vmatpush.msra.mxu0 %v3239
        %v3241 = vand.u32 %v407, 4294901760
        %v3242 = vsub.f32 %v407, %v3241
        %3243 = vmatpush.msra.mxu0 %v3242
        %v3244 = vand.u32 %v305, 4294901760
        %v3245 = vsub.f32 %v305, %v3244
        %3246 = vmatmul.f32.gmra.mxu0 %v3245
        %v3247 = vpop.f32.mrf.mxu0
        %v3248 = vadd.f32 %v3190, %v3247
        %v3249 = vand.u32 %v309, 4294901760
        %v3250 = vsub.f32 %v309, %v3249
        %3251 = vmatmul.f32.gmra.mxu0 %v3250
        %v3252 = vpop.f32.mrf.mxu0
        %v3253 = vadd.f32 %v3194, %v3252
        %3254 = vdwg.mxu0
        %v3255 = vand.u32 %v437, 4294901760
        %3256 = vmatpush.msra.mxu0 %v3255
        %v3257 = vand.u32 %v435, 4294901760
        %3258 = vmatpush.msra.mxu0 %v3257
        %v3259 = vand.u32 %v433, 4294901760
        %3260 = vmatpush.msra.mxu0 %v3259
        %v3261 = vand.u32 %v431, 4294901760
        %3262 = vmatpush.msra.mxu0 %v3261
        %v3263 = vand.u32 %v429, 4294901760
        %3264 = vmatpush.msra.mxu0 %v3263
        %v3265 = vand.u32 %v427, 4294901760
        %3266 = vmatpush.msra.mxu0 %v3265
        %v3267 = vand.u32 %v425, 4294901760
        %3268 = vmatpush.msra.mxu0 %v3267
        %v3269 = vand.u32 %v423, 4294901760
        %3270 = vmatpush.msra.mxu0 %v3269
        %v3271 = vand.u32 %v421, 4294901760
        %3272 = vmatpush.msra.mxu0 %v3271
        %v3273 = vand.u32 %v419, 4294901760
        %3274 = vmatpush.msra.mxu0 %v3273
        %v3275 = vand.u32 %v417, 4294901760
        %3276 = vmatpush.msra.mxu0 %v3275
        %v3277 = vand.u32 %v415, 4294901760
        %3278 = vmatpush.msra.mxu0 %v3277
        %v3279 = vand.u32 %v413, 4294901760
        %3280 = vmatpush.msra.mxu0 %v3279
        %v3281 = vand.u32 %v411, 4294901760
        %3282 = vmatpush.msra.mxu0 %v3281
        %v3283 = vand.u32 %v409, 4294901760
        %3284 = vmatpush.msra.mxu0 %v3283
        %v3285 = vand.u32 %v407, 4294901760
        %3286 = vmatpush.msra.mxu0 %v3285
        %v3287 = vand.u32 %v305, 4294901760
        %v3288 = vsub.f32 %v305, %v3287
        %v3289 = vand.u32 %v3288, 4294901760
        %3290 = vmatmul.f32.gmra.mxu0 %v3289
        %v3291 = vpop.f32.mrf.mxu0
        %v3292 = vadd.f32 %v3248, %v3291
        %v3293 = vand.u32 %v309, 4294901760
        %v3294 = vsub.f32 %v309, %v3293
        %v3295 = vand.u32 %v3294, 4294901760
        %3296 = vmatmul.f32.gmra.mxu0 %v3295
        %v3297 = vpop.f32.mrf.mxu0
        %v3298 = vadd.f32 %v3253, %v3297
        %3299 = vdwg.mxu0
        %v3300 = vand.u32 %v437, 4294901760
        %v3301 = vsub.f32 %v437, %v3300
        %v3302 = vand.u32 %v3301, 4294901760
        %3303 = vmatpush.msra.mxu0 %v3302
        %v3304 = vand.u32 %v435, 4294901760
        %v3305 = vsub.f32 %v435, %v3304
        %v3306 = vand.u32 %v3305, 4294901760
        %3307 = vmatpush.msra.mxu0 %v3306
        %v3308 = vand.u32 %v433, 4294901760
        %v3309 = vsub.f32 %v433, %v3308
        %v3310 = vand.u32 %v3309, 4294901760
        %3311 = vmatpush.msra.mxu0 %v3310
        %v3312 = vand.u32 %v431, 4294901760
        %v3313 = vsub.f32 %v431, %v3312
        %v3314 = vand.u32 %v3313, 4294901760
        %3315 = vmatpush.msra.mxu0 %v3314
        %v3316 = vand.u32 %v429, 4294901760
        %v3317 = vsub.f32 %v429, %v3316
        %v3318 = vand.u32 %v3317, 4294901760
        %3319 = vmatpush.msra.mxu0 %v3318
        %v3320 = vand.u32 %v427, 4294901760
        %v3321 = vsub.f32 %v427, %v3320
        %v3322 = vand.u32 %v3321, 4294901760
        %3323 = vmatpush.msra.mxu0 %v3322
        %v3324 = vand.u32 %v425, 4294901760
        %v3325 = vsub.f32 %v425, %v3324
        %v3326 = vand.u32 %v3325, 4294901760
        %3327 = vmatpush.msra.mxu0 %v3326
        %v3328 = vand.u32 %v423, 4294901760
        %v3329 = vsub.f32 %v423, %v3328
        %v3330 = vand.u32 %v3329, 4294901760
        %3331 = vmatpush.msra.mxu0 %v3330
        %v3332 = vand.u32 %v421, 4294901760
        %v3333 = vsub.f32 %v421, %v3332
        %v3334 = vand.u32 %v3333, 4294901760
        %3335 = vmatpush.msra.mxu0 %v3334
        %v3336 = vand.u32 %v419, 4294901760
        %v3337 = vsub.f32 %v419, %v3336
        %v3338 = vand.u32 %v3337, 4294901760
        %3339 = vmatpush.msra.mxu0 %v3338
        %v3340 = vand.u32 %v417, 4294901760
        %v3341 = vsub.f32 %v417, %v3340
        %v3342 = vand.u32 %v3341, 4294901760
        %3343 = vmatpush.msra.mxu0 %v3342
        %v3344 = vand.u32 %v415, 4294901760
        %v3345 = vsub.f32 %v415, %v3344
        %v3346 = vand.u32 %v3345, 4294901760
        %3347 = vmatpush.msra.mxu0 %v3346
        %v3348 = vand.u32 %v413, 4294901760
        %v3349 = vsub.f32 %v413, %v3348
        %v3350 = vand.u32 %v3349, 4294901760
        %3351 = vmatpush.msra.mxu0 %v3350
        %v3352 = vand.u32 %v411, 4294901760
        %v3353 = vsub.f32 %v411, %v3352
        %v3354 = vand.u32 %v3353, 4294901760
        %3355 = vmatpush.msra.mxu0 %v3354
        %v3356 = vand.u32 %v409, 4294901760
        %v3357 = vsub.f32 %v409, %v3356
        %v3358 = vand.u32 %v3357, 4294901760
        %3359 = vmatpush.msra.mxu0 %v3358
        %v3360 = vand.u32 %v407, 4294901760
        %v3361 = vsub.f32 %v407, %v3360
        %v3362 = vand.u32 %v3361, 4294901760
        %3363 = vmatpush.msra.mxu0 %v3362
        %v3364 = vand.u32 %v305, 4294901760
        %3365 = vmatmul.f32.gmra.mxu0 %v3364
        %v3366 = vpop.f32.mrf.mxu0
        %v3367 = vadd.f32 %v3292, %v3366
        %v3368 = vand.u32 %v309, 4294901760
        %3369 = vmatmul.f32.gmra.mxu0 %v3368
        %v3370 = vpop.f32.mrf.mxu0
        %v3371 = vadd.f32 %v3298, %v3370
        %3372 = vdwg.mxu0
        %v3373 = vand.u32 %v437, 4294901760
        %3374 = vmatpush.msra.mxu0 %v3373
        %v3375 = vand.u32 %v435, 4294901760
        %3376 = vmatpush.msra.mxu0 %v3375
        %v3377 = vand.u32 %v433, 4294901760
        %3378 = vmatpush.msra.mxu0 %v3377
        %v3379 = vand.u32 %v431, 4294901760
        %3380 = vmatpush.msra.mxu0 %v3379
        %v3381 = vand.u32 %v429, 4294901760
        %3382 = vmatpush.msra.mxu0 %v3381
        %v3383 = vand.u32 %v427, 4294901760
        %3384 = vmatpush.msra.mxu0 %v3383
        %v3385 = vand.u32 %v425, 4294901760
        %3386 = vmatpush.msra.mxu0 %v3385
        %v3387 = vand.u32 %v423, 4294901760
        %3388 = vmatpush.msra.mxu0 %v3387
        %v3389 = vand.u32 %v421, 4294901760
        %3390 = vmatpush.msra.mxu0 %v3389
        %v3391 = vand.u32 %v419, 4294901760
        %3392 = vmatpush.msra.mxu0 %v3391
        %v3393 = vand.u32 %v417, 4294901760
        %3394 = vmatpush.msra.mxu0 %v3393
        %v3395 = vand.u32 %v415, 4294901760
        %3396 = vmatpush.msra.mxu0 %v3395
        %v3397 = vand.u32 %v413, 4294901760
        %3398 = vmatpush.msra.mxu0 %v3397
        %v3399 = vand.u32 %v411, 4294901760
        %3400 = vmatpush.msra.mxu0 %v3399
        %v3401 = vand.u32 %v409, 4294901760
        %3402 = vmatpush.msra.mxu0 %v3401
        %v3403 = vand.u32 %v407, 4294901760
        %3404 = vmatpush.msra.mxu0 %v3403
        %v3405 = vand.u32 %v305, 4294901760
        %3406 = vmatmul.f32.gmra.mxu0 %v3405
        %v3407 = vpop.f32.mrf.mxu0
        %v3408 = vadd.f32 %v3367, %v3407
        %v3409 = vand.u32 %v309, 4294901760
        %3410 = vmatmul.f32.gmra.mxu0 %v3409
        %v3411 = vpop.f32.mrf.mxu0
        %v3412 = vadd.f32 %v3371, %v3411
        %3413 = vdwg.mxu0
        %v3414 = vadd.f32 %v298, %v1920
        %v3415 = vadd.f32 %v299, %v3408
        %v3416 = vadd.f32 %v300, %v1924
        %v3417 = vadd.f32 %v301, %v3412
        %3418 = vst [vmem:[#allocation2] sm:$0xff] %v3414
        %3419 = vst [vmem:[#allocation2 + $0x8] sm:$0xff] %v3415
        %3420 = vst [vmem:[#allocation2 + $0x10] sm:$0xff] %v3416
        %3421 = vst [vmem:[#allocation2 + $0x18] sm:$0xff] %v3417
        // Predicated region
        $region49: #{tpu_custom_call.1} parent=31 // pred_check
          %p3422 = pneg %p290
        $region50: #{tpu_custom_call.1} parent=31 // pred_check_branch
          %3424 = sbr.rel (%p3422) target = $region52
        $region51: #{tpu_custom_call.1} parent=31 // pred_region
          %v3425 = vld [vmem:[#allocation2] sm:$0xff]
          %v3426 = vld [vmem:[#allocation2 + $0x8] sm:$0xff]
          %v3427 = vld [vmem:[#allocation2 + $0x10] sm:$0xff]
          %v3428 = vld [vmem:[#allocation2 + $0x18] sm:$0xff]
          %v3429 = vld [vmem:[%s254] sm:$0x3]
          %v3431 = vperm.slane %v3429, 0
          %v3432 = vperm.slane %v3429, 1
          %v3435 = vadd.f32 %v3425, %v3431
          %v3436 = vadd.f32 %v3426, %v3432
          %v3437 = vadd.f32 %v3427, %v3431
          %v3438 = vadd.f32 %v3428, %v3432
          %v3439 = vmul.f32 %v3435, 0.5
          %v3440 = vmul.f32 %v3436, 0.5
          %v3441 = vmul.f32 %v3437, 0.5
          %v3442 = vmul.f32 %v3438, 0.5
          %v3443 = vmul.f32 %v3435, 0.70710677
          %v3444 = vmul.f32 %v3436, 0.70710677
          %v3445 = vmul.f32 %v3437, 0.70710677
          %v3446 = vmul.f32 %v3438, 0.70710677
          %vm3447 = vcmp.ge.f32.partialorder %v3443, 0.0
          %vm3448 = vcmp.ge.f32.partialorder %v3444, 0.0
          %vm3449 = vcmp.ge.f32.partialorder %v3445, 0.0
          %vm3450 = vcmp.ge.f32.partialorder %v3446, 0.0
          %v3451 = vsel %vm3447, 1.0, -1.0
          %v3452 = vsel %vm3448, 1.0, -1.0
          %v3453 = vsel %vm3449, 1.0, -1.0
          %v3454 = vsel %vm3450, 1.0, -1.0
          %v3455 = vand.u32 2147483647, %v3443
          %v3456 = vand.u32 2147483647, %v3444
          %v3457 = vand.u32 2147483647, %v3445
          %v3458 = vand.u32 2147483647, %v3446
          %v3459 = vmul.f32 %v3455, 0.3275911
          %v3460 = vmul.f32 %v3456, 0.3275911
          %v3461 = vmul.f32 %v3457, 0.3275911
          %v3462 = vmul.f32 %v3458, 0.3275911
          %v3463 = vadd.f32 %v3459, 1.0
          %v3464 = vadd.f32 %v3460, 1.0
          %v3465 = vadd.f32 %v3461, 1.0
          %v3466 = vadd.f32 %v3462, 1.0
          %v3467 = vrcp.pop %v3463
          %v3468 = vmul.f32 %v3463, %v3467
          %v3469 = vsub.f32 1.0, %v3468
          %v3470 = vmul.f32 %v3467, %v3469
          %v3471 = vadd.f32 %v3467, %v3470
          %vm3472 = vweird.f32 %v3463
          %vm3473 = vweird.f32 %v3467
          %vm3474 = vmor %vm3472, %vm3473
          %v3475 = vsel %vm3474, %v3467, %v3471
          %v3476 = vand.u32 2147483647, %v3463
          %vm3477 = vcmp.eq.f32.partialorder %v3476, 8.507059e+37
          %v3478 = vand.u32 %v3463, 2147483648
          %v3479 = vor.u32 1.1754944e-38, %v3478
          %v3480 = vsel %vm3477, %v3479, %v3475
          %v3481 = vmul.f32 1.0, %v3480
          %v3482 = vrcp.pop %v3464
          %v3483 = vmul.f32 %v3464, %v3482
          %v3484 = vsub.f32 1.0, %v3483
          %v3485 = vmul.f32 %v3482, %v3484
          %v3486 = vadd.f32 %v3482, %v3485
          %vm3487 = vweird.f32 %v3464
          %vm3488 = vweird.f32 %v3482
          %vm3489 = vmor %vm3487, %vm3488
          %v3490 = vsel %vm3489, %v3482, %v3486
          %v3491 = vand.u32 2147483647, %v3464
          %vm3492 = vcmp.eq.f32.partialorder %v3491, 8.507059e+37
          %v3493 = vand.u32 %v3464, 2147483648
          %v3494 = vor.u32 1.1754944e-38, %v3493
          %v3495 = vsel %vm3492, %v3494, %v3490
          %v3496 = vmul.f32 1.0, %v3495
          %v3497 = vrcp.pop %v3465
          %v3498 = vmul.f32 %v3465, %v3497
          %v3499 = vsub.f32 1.0, %v3498
          %v3500 = vmul.f32 %v3497, %v3499
          %v3501 = vadd.f32 %v3497, %v3500
          %vm3502 = vweird.f32 %v3465
          %vm3503 = vweird.f32 %v3497
          %vm3504 = vmor %vm3502, %vm3503
          %v3505 = vsel %vm3504, %v3497, %v3501
          %v3506 = vand.u32 2147483647, %v3465
          %vm3507 = vcmp.eq.f32.partialorder %v3506, 8.507059e+37
          %v3508 = vand.u32 %v3465, 2147483648
          %v3509 = vor.u32 1.1754944e-38, %v3508
          %v3510 = vsel %vm3507, %v3509, %v3505
          %v3511 = vmul.f32 1.0, %v3510
          %v3512 = vrcp.pop %v3466
          %v3513 = vmul.f32 %v3466, %v3512
          %v3514 = vsub.f32 1.0, %v3513
          %v3515 = vmul.f32 %v3512, %v3514
          %v3516 = vadd.f32 %v3512, %v3515
          %vm3517 = vweird.f32 %v3466
          %vm3518 = vweird.f32 %v3512
          %vm3519 = vmor %vm3517, %vm3518
          %v3520 = vsel %vm3519, %v3512, %v3516
          %v3521 = vand.u32 2147483647, %v3466
          %vm3522 = vcmp.eq.f32.partialorder %v3521, 8.507059e+37
          %v3523 = vand.u32 %v3466, 2147483648
          %v3524 = vor.u32 1.1754944e-38, %v3523
          %v3525 = vsel %vm3522, %v3524, %v3520
          %v3526 = vmul.f32 1.0, %v3525
          %v3527 = vmul.f32 %v3481, 1.0614054
          %v3528 = vmul.f32 %v3496, 1.0614054
          %v3529 = vmul.f32 %v3511, 1.0614054
          %v3530 = vmul.f32 %v3526, 1.0614054
          %v3531 = vadd.f32 %v3527, -1.4531521
          %v3532 = vadd.f32 %v3528, -1.4531521
          %v3533 = vadd.f32 %v3529, -1.4531521
          %v3534 = vadd.f32 %v3530, -1.4531521
          %v3535 = vmul.f32 %v3531, %v3481
          %v3536 = vmul.f32 %v3532, %v3496
          %v3537 = vmul.f32 %v3533, %v3511
          %v3538 = vmul.f32 %v3534, %v3526
          %v3539 = vadd.f32 %v3535, 1.4214138
          %v3540 = vadd.f32 %v3536, 1.4214138
          %v3541 = vadd.f32 %v3537, 1.4214138
          %v3542 = vadd.f32 %v3538, 1.4214138
          %v3543 = vmul.f32 %v3539, %v3481
          %v3544 = vmul.f32 %v3540, %v3496
          %v3545 = vmul.f32 %v3541, %v3511
          %v3546 = vmul.f32 %v3542, %v3526
          %v3547 = vadd.f32 %v3543, -0.28449672
          %v3548 = vadd.f32 %v3544, -0.28449672
          %v3549 = vadd.f32 %v3545, -0.28449672
          %v3550 = vadd.f32 %v3546, -0.28449672
          %v3551 = vmul.f32 %v3547, %v3481
          %v3552 = vmul.f32 %v3548, %v3496
          %v3553 = vmul.f32 %v3549, %v3511
          %v3554 = vmul.f32 %v3550, %v3526
          %v3555 = vadd.f32 %v3551, 0.2548296
          %v3556 = vadd.f32 %v3552, 0.2548296
          %v3557 = vadd.f32 %v3553, 0.2548296
          %v3558 = vadd.f32 %v3554, 0.2548296
          %v3559 = vmul.f32 %v3555, %v3481
          %v3560 = vmul.f32 %v3556, %v3496
          %v3561 = vmul.f32 %v3557, %v3511
          %v3562 = vmul.f32 %v3558, %v3526
          %v3563 = vsub.f32 0.0, %v3455
          %v3564 = vsub.f32 0.0, %v3456
          %v3565 = vsub.f32 0.0, %v3457
          %v3566 = vsub.f32 0.0, %v3458
          %v3567 = vmul.f32 %v3563, %v3455
          %v3568 = vmul.f32 %v3564, %v3456
          %v3569 = vmul.f32 %v3565, %v3457
          %v3570 = vmul.f32 %v3566, %v3458
          %v3571 = vmul.f32 %v3567, 1.442695
          %v3572 = vpow.pop %v3571
          %v3573 = vmul.f32 %v3568, 1.442695
          %v3574 = vpow.pop %v3573
          %v3575 = vmul.f32 %v3569, 1.442695
          %v3576 = vpow.pop %v3575
          %v3577 = vmul.f32 %v3570, 1.442695
          %v3578 = vpow.pop %v3577
          %v3579 = vmul.f32 %v3559, %v3572
          %v3580 = vmul.f32 %v3560, %v3574
          %v3581 = vmul.f32 %v3561, %v3576
          %v3582 = vmul.f32 %v3562, %v3578
          %v3583 = vsub.f32 1.0, %v3579
          %v3584 = vsub.f32 1.0, %v3580
          %v3585 = vsub.f32 1.0, %v3581
          %v3586 = vsub.f32 1.0, %v3582
          %v3587 = vmul.f32 %v3451, %v3583
          %v3588 = vmul.f32 %v3452, %v3584
          %v3589 = vmul.f32 %v3453, %v3585
          %v3590 = vmul.f32 %v3454, %v3586
          %v3591 = vadd.f32 %v3587, 1.0
          %v3592 = vadd.f32 %v3588, 1.0
          %v3593 = vadd.f32 %v3589, 1.0
          %v3594 = vadd.f32 %v3590, 1.0
          %v3595 = vmul.f32 %v3439, %v3591
          %v3596 = vmul.f32 %v3440, %v3592
          %v3597 = vmul.f32 %v3441, %v3593
          %v3598 = vmul.f32 %v3442, %v3594
          %3599 = vst [vmem:[%s282] sm:$0xff] %v3595
          %3600 = vst [vmem:[%s282 + $0x8] sm:$0xff] %v3596
          %3601 = vst [vmem:[%s282 + $0x10] sm:$0xff] %v3597
          %3602 = vst [vmem:[%s282 + $0x18] sm:$0xff] %v3598
        $region52: #{tpu_custom_call.1} parent=31 // pred_fallthru
          _
        %s3603 = sand.u32 %s132, 1
        %s3604 = scalar_lea.sflag [#allocation5], %s3603
        %s3605 = sand.u32 %s132, 1
        %s3606 = smul.addr %s3605, 32
        %s3607 = scalar_lea.vmem [#allocation9], %s3606
        // Predicated region
        $region53: #{tpu_custom_call.1} parent=31 // pred_check
          %p3608 = pneg %p142
        $region54: #{tpu_custom_call.1} parent=31 // pred_check_branch
          %3610 = sbr.rel (%p3608) target = $region56
        $region55: #{tpu_custom_call.1} parent=31 // pred_region
          %s3611 = smul.u32 2, %s26
          %s3612 = smul.u32 2, %s27
          %3614 = vsyncadd %s3604, 0
          %s3615 = smul.addr %s3611, 4
          %s3616 = sadd.s32 %s3612, %s3615
          %s3617 = smul.addr %s3616, 8
          %s3618 = scalar_lea.hbm %s3, %s3617
          %s3619 = sshll.u32 %s3607, 4
          %s3620 = int_to_ptr.vmem [resolvable:$true] %s3619
          %s3621 = sshll.u32 %s3618, 4
          %s3622 = int_to_ptr.hbm [resolvable:$true] %s3621
          %3627 = dma.vmem_to_hbm [thread:$0]  %s3620, 512, %s3622, %s3604, 256, 512, 16
        $region56: #{tpu_custom_call.1} parent=31 // pred_fallthru
          _
      $region32: #{tpu_custom_call.1} parent=5 // pred_fallthru
        _
      %p3628 = scmp.le.s32.totalorder 2, %s16
      // Predicated region
      $region57: #{tpu_custom_call.1} parent=5 // pred_check
        %p3629 = pneg %p3628
      $region58: #{tpu_custom_call.1} parent=5 // pred_check_branch
        %3631 = sbr.rel (%p3629) target = $region60
      $region59: #{tpu_custom_call.1} parent=5 // pred_region
        %s3632 = ssub.s32 %s16, 2
        // Predicated region
        $region61: #{tpu_custom_call.1} parent=59 // pred_check
          %p3633 = pneg %p148
        $region62: #{tpu_custom_call.1} parent=59 // pred_check_branch
          %3635 = sbr.rel (%p3633) target = $region64
        $region63: #{tpu_custom_call.1} parent=59 // pred_region
          %s3636 = sand.u32 %s133, 1
          %s3637 = scalar_lea.sflag [#allocation5], %s3636
          %s3638 = sand.u32 %s133, 1
          %s3639 = smul.addr %s3638, 32
          %s3640 = scalar_lea.vmem [#allocation9], %s3639
          %3642 = dma.done %s3637, 512
        $region64: #{tpu_custom_call.1} parent=59 // pred_fallthru
          _
      $region60: #{tpu_custom_call.1} parent=5 // pred_fallthru
        _
    $region6: #{tpu_custom_call.1} parent=1 // loop_footer
      %s20 = sadd.s32 1, %s16
    $region7: #{tpu_custom_call.1} parent=1 // loop_footer_branch
      %15 = sbr.rel target = $region3
    $region8: #{tpu_custom_call.1} parent=1 // loop_exit
      _
    %3643 = vsyncpa [#allocation4], 1
    %s3644 = scalar_lea.sflag [#allocation4], 1
    %3645 = vsyncpa %s3644, 1
    %3646 = vsyncpa [#allocation7], 1
    %s3647 = scalar_lea.sflag [#allocation7], 1
    %3648 = vsyncpa %s3647, 1
    %3649 = vsyncpa [#allocation5], 1
    %s3650 = scalar_lea.sflag [#allocation5], 1
    %3651 = vsyncpa %s3650, 1

</llo_original>
